<compile_context>
chip_gen: v7x
topology: tpu7x:2x2x1
jax: 0.10.0
libtpu: 0.0.40
codegen_flags: <defaults>
</compile_context>

<pallas_src>
import jax
import jax.numpy as jnp
from jax.experimental import pallas as pl
from jax.experimental.pallas import tpu as pltpu

# ---- static configuration ----------------------------------------------------
N_LAYERS = 3      # number of flow modules in the sequence
B = 256           # batch
D = 256           # feature dim (split into two halves of D1)
D1 = D // 2       # 128 (lane-aligned)
H = 256           # coupling-MLP hidden size (N >= 256 fills v6e/v7x MXU columns)


def _num_tensorcores() -> int:
    """2 TensorCores per chip on v7x, 1 on v5e/v6e (and on non-TPU backends)."""
    try:
        kind = jax.devices()[0].device_kind.lower()
    except Exception:
        return 1
    return 2 if "v7" in kind else 1


_NUM_TC = _num_tensorcores()
# Generation-dependent batch tile: one grid step on single-TC chips (v5e/v6e),
# >=2 "parallel" tiles only where there are 2 TensorCores (v7x).
TB = B // _NUM_TC
assert B % TB == 0 and TB % 8 == 0


def flow_seq_kernel(x_ref, w1_ref, b1_ref, w2_ref, b2_ref, y_ref, ld_ref):
    """One batch tile: run all N_LAYERS coupling layers and accumulate log|det J|."""
    tb = x_ref.shape[0]
    # Keep the two halves as separate [tb, D1] arrays; swapping halves becomes a
    # Python-variable swap instead of a materialized concatenate each layer.
    x1 = x_ref[:, :D1]
    x2 = x_ref[:, D1:]
    # 2-D (tb, 1) accumulator keeps the XLU lane-reduce result in its natural
    # layout; the (tb,1)->(1,tb) relayout is paid exactly once at the end.
    ld = jnp.zeros((tb, 1), jnp.float32)

    # Static unroll over the (small, fixed) module list -> visible to the scheduler.
    for i in range(N_LAYERS):
        b1 = b1_ref[i : i + 1, :]          # (1, H) f32 bias row
        b2 = b2_ref[i : i + 1, :]          # (1, D) f32 bias row
        # coupling MLP: (s_raw, t) = W2 @ relu(W1 @ x1 + b1) + b2
        # bf16 operands feed the MXU at full rate; accumulation stays f32.
        h = jnp.dot(x1.astype(jnp.bfloat16), w1_ref[i],
                    preferred_element_type=jnp.float32) + b1
        h = jnp.maximum(h, 0.0)
        st = jnp.dot(h.astype(jnp.bfloat16), w2_ref[i],
                     preferred_element_type=jnp.float32) + b2
        # Elementwise work and the reduction stay in f32 (no bf16 VPU/EUP on v5e).
        s = jnp.tanh(st[:, :D1])                           # bounded log-scale
        t = st[:, D1:]
        y2 = x2 * jnp.exp(s) + t                           # affine coupling
        ld = ld + jnp.sum(s, axis=-1, keepdims=True)       # per-sample log|det J|
        x1, x2 = y2, x1                                    # swap halves (log-det 0)

    # Two lane-aligned 128-wide stores instead of concat + full store.
    y_ref[:, :D1] = x1.astype(y_ref.dtype)
    y_ref[:, D1:] = x2.astype(y_ref.dtype)
    # Lane-dense log-det output: one (1, tb) row -> unmasked full-lane store.
    ld_ref[...] = ld.reshape(1, -1)


@jax.jit
def flow_sequential_forward(x, w1, b1, w2, b2):
    """Pallas-backed FlowSequential.forward(x, c=None) -> (x_out, log_det_J)."""
    b, d = x.shape
    assert d == D and b % TB == 0, (b, d, TB)   # no silently dropped rows
    grid = (b // TB,)
    y, ld = pl.pallas_call(
        flow_seq_kernel,
        out_shape=(
            jax.ShapeDtypeStruct((b, d), x.dtype),
            jax.ShapeDtypeStruct((1, b), jnp.float32),     # lane-dense log-det row
        ),
        grid=grid,
        in_specs=[
            pl.BlockSpec((TB, d), lambda i: (i, 0)),                 # x tile
            # Weights/biases are grid-invariant: park whole arrays in VMEM once
            # (no per-step double-buffering).
            pl.BlockSpec(memory_space=pltpu.MemorySpace.VMEM),       # W1 (all layers)
            pl.BlockSpec(memory_space=pltpu.MemorySpace.VMEM),       # b1
            pl.BlockSpec(memory_space=pltpu.MemorySpace.VMEM),       # W2
            pl.BlockSpec(memory_space=pltpu.MemorySpace.VMEM),       # b2
        ],
        out_specs=(
            pl.BlockSpec((TB, d), lambda i: (i, 0)),                 # y tile
            pl.BlockSpec((1, TB), lambda i: (0, i)),                 # log-det row tile
        ),
        compiler_params=pltpu.CompilerParams(
            dimension_semantics=("parallel",),
        ),
    )(x, w1, b1, w2, b2)
    return y, ld.reshape(b)  # log_det_J has shape (B,), like torch.zeros((x.shape[0],))


def flow_sequential_ref(x, w1, b1, w2, b2):
    """Pure-f32 ground-truth reference (weights upcast; same parameter values)."""
    ld = jnp.zeros((x.shape[0],), jnp.float32)
    d1 = x.shape[1] // 2
    w1f = w1.astype(jnp.float32)
    w2f = w2.astype(jnp.float32)
    for i in range(N_LAYERS):
        x1, x2 = x[:, :d1], x[:, d1:]
        h = jax.nn.relu(jnp.dot(x1, w1f[i]) + b1[i])
        st = jnp.dot(h, w2f[i]) + b2[i]
        s = jnp.tanh(st[:, :d1])
        t = st[:, d1:]
        y2 = x2 * jnp.exp(s) + t
        ld = ld + jnp.sum(s, axis=-1)
        x = jnp.concatenate([y2, x1], axis=-1)
    return x, ld


if __name__ == "__main__":
    key = jax.random.PRNGKey(0)
    kx, k1, k2, k3, k4 = jax.random.split(key, 5)

    # Deterministic synthetic inputs & parameters (small-scale init keeps exp() tame).
    x = jax.random.normal(kx, (B, D), dtype=jnp.float32)
    w1 = (0.05 * jax.random.normal(k1, (N_LAYERS, D1, H), dtype=jnp.float32)
          ).astype(jnp.bfloat16)
    b1 = 0.05 * jax.random.normal(k2, (N_LAYERS, H), dtype=jnp.float32)
    w2 = (0.05 * jax.random.normal(k3, (N_LAYERS, H, D), dtype=jnp.float32)
          ).astype(jnp.bfloat16)
    b2 = 0.05 * jax.random.normal(k4, (N_LAYERS, D), dtype=jnp.float32)

    y, log_det = flow_sequential_forward(x, w1, b1, w2, b2)
    jax.block_until_ready((y, log_det))

    y_ref, ld_ref = flow_sequential_ref(x, w1, b1, w2, b2)
    assert y.shape == (B, D) and log_det.shape == (B,)
    # The kernel uses bf16 MXU operands (f32 accumulate); the reference is pure
    # f32, so tolerances are sized for three chained bf16 coupling layers.
    y_err = float(jnp.max(jnp.abs(y - y_ref)))
    ld_err = float(jnp.max(jnp.abs(log_det - ld_ref)))
    assert jnp.allclose(y, y_ref, rtol=2e-2, atol=2e-2), y_err
    assert jnp.allclose(log_det, ld_ref, rtol=3e-2, atol=2.5e-1), ld_err

    print("KERNEL_OK")
</pallas_src>

<mosaic_0001>
module attributes {stable_mosaic.version = 11 : i64} {
  func.func @flow_seq_kernel(%arg0: i32, %arg1: memref<256x256xf32, #tpu.memory_space<vmem>>, %arg2: memref<3x128x256xbf16, #tpu.memory_space<vmem>>, %arg3: memref<3x256xf32, #tpu.memory_space<vmem>>, %arg4: memref<3x256x256xbf16, #tpu.memory_space<vmem>>, %arg5: memref<3x256xf32, #tpu.memory_space<vmem>>, %arg6: memref<256x256xf32, #tpu.memory_space<vmem>>, %arg7: memref<1x256xf32, #tpu.memory_space<vmem>>) attributes {dimension_semantics = [#tpu.dimension_semantics<parallel>], iteration_bounds = array<i64: 1>, scalar_prefetch = 0 : i64, scratch_operands = 0 : i64, tpu.core_type = #tpu.core_type<tc>, window_params = [{transform_indices = @transform_0, window_bounds = array<i64: 256, 256>}, {pipeline_mode = #tpu.pipeline_mode<synchronous>, transform_indices = @transform_1, window_bounds = array<i64: 3, 128, 256>}, {pipeline_mode = #tpu.pipeline_mode<synchronous>, transform_indices = @transform_2, window_bounds = array<i64: 3, 256>}, {pipeline_mode = #tpu.pipeline_mode<synchronous>, transform_indices = @transform_3, window_bounds = array<i64: 3, 256, 256>}, {pipeline_mode = #tpu.pipeline_mode<synchronous>, transform_indices = @transform_4, window_bounds = array<i64: 3, 256>}, {transform_indices = @transform_5, window_bounds = array<i64: 256, 256>}, {transform_indices = @transform_6, window_bounds = array<i64: 1, 256>}]} {
    %c0 = arith.constant 0 : index
    %c0_0 = arith.constant 0 : index
    %0 = vector.load %arg1[%c0, %c0_0] : memref<256x256xf32, #tpu.memory_space<vmem>>, vector<256x128xf32>
    %c0_1 = arith.constant 0 : index
    %c128 = arith.constant 128 : index
    %1 = vector.load %arg1[%c0_1, %c128] : memref<256x256xf32, #tpu.memory_space<vmem>>, vector<256x128xf32>
    %cst = arith.constant 0.000000e+00 : f32
    %2 = vector.broadcast %cst : f32 to vector<256x1xf32>
    %c0_2 = arith.constant 0 : index
    %c0_3 = arith.constant 0 : index
    %3 = vector.load %arg3[%c0_2, %c0_3] : memref<3x256xf32, #tpu.memory_space<vmem>>, vector<1x256xf32>
    %c0_4 = arith.constant 0 : index
    %c0_5 = arith.constant 0 : index
    %4 = vector.load %arg5[%c0_4, %c0_5] : memref<3x256xf32, #tpu.memory_space<vmem>>, vector<1x256xf32>
    %5 = arith.truncf %0 : vector<256x128xf32> to vector<256x128xbf16>
    %c0_6 = arith.constant 0 : index
    %c0_7 = arith.constant 0 : index
    %c0_8 = arith.constant 0 : index
    %6 = vector.load %arg2[%c0_6, %c0_7, %c0_8] : memref<3x128x256xbf16, #tpu.memory_space<vmem>>, vector<1x128x256xbf16>
    %7 = vector.shape_cast %6 : vector<1x128x256xbf16> to vector<128x256xbf16>
    %cst_9 = arith.constant dense<0.000000e+00> : vector<256x256xf32>
    %8 = tpu.matmul %5, %7, %cst_9 {dimension_numbers = #tpu.dot_dimension_numbers<[1], [0], [0], [1], [0, 0, 1, 1], [], []>} : vector<256x128xbf16>, vector<128x256xbf16>, vector<256x256xf32> -> vector<256x256xf32>
    %9 = vector.broadcast %3 : vector<1x256xf32> to vector<256x256xf32>
    %10 = arith.addf %8, %9 : vector<256x256xf32>
    %cst_10 = arith.constant 0.000000e+00 : f32
    %11 = vector.broadcast %cst_10 : f32 to vector<256x256xf32>
    %12 = arith.maximumf %10, %11 : vector<256x256xf32>
    %13 = arith.truncf %12 : vector<256x256xf32> to vector<256x256xbf16>
    %c0_11 = arith.constant 0 : index
    %c0_12 = arith.constant 0 : index
    %c0_13 = arith.constant 0 : index
    %14 = vector.load %arg4[%c0_11, %c0_12, %c0_13] : memref<3x256x256xbf16, #tpu.memory_space<vmem>>, vector<1x256x256xbf16>
    %15 = vector.shape_cast %14 : vector<1x256x256xbf16> to vector<256x256xbf16>
    %cst_14 = arith.constant dense<0.000000e+00> : vector<256x256xf32>
    %16 = tpu.matmul %13, %15, %cst_14 {dimension_numbers = #tpu.dot_dimension_numbers<[1], [0], [0], [1], [0, 0, 1, 1], [], []>} : vector<256x256xbf16>, vector<256x256xbf16>, vector<256x256xf32> -> vector<256x256xf32>
    %17 = vector.broadcast %4 : vector<1x256xf32> to vector<256x256xf32>
    %18 = arith.addf %16, %17 : vector<256x256xf32>
    %19 = vector.extract_strided_slice %18 {offsets = [0, 0], sizes = [256, 128], strides = [1, 1]} : vector<256x256xf32> to vector<256x128xf32>
    %20 = math.tanh %19 : vector<256x128xf32>
    %21 = vector.extract_strided_slice %18 {offsets = [0, 128], sizes = [256, 128], strides = [1, 1]} : vector<256x256xf32> to vector<256x128xf32>
    %22 = math.exp %20 : vector<256x128xf32>
    %23 = arith.mulf %1, %22 : vector<256x128xf32>
    %24 = arith.addf %23, %21 : vector<256x128xf32>
    %cst_15 = arith.constant dense<0.000000e+00> : vector<256xf32>
    %25 = vector.multi_reduction <add>, %20, %cst_15 [1] : vector<256x128xf32> to vector<256xf32>
    %26 = vector.shape_cast %25 : vector<256xf32> to vector<256x1xf32>
    %27 = arith.addf %2, %26 : vector<256x1xf32>
    %c1 = arith.constant 1 : index
    %c0_16 = arith.constant 0 : index
    %28 = vector.load %arg3[%c1, %c0_16] : memref<3x256xf32, #tpu.memory_space<vmem>>, vector<1x256xf32>
    %c1_17 = arith.constant 1 : index
    %c0_18 = arith.constant 0 : index
    %29 = vector.load %arg5[%c1_17, %c0_18] : memref<3x256xf32, #tpu.memory_space<vmem>>, vector<1x256xf32>
    %30 = arith.truncf %24 : vector<256x128xf32> to vector<256x128xbf16>
    %c1_19 = arith.constant 1 : index
    %c0_20 = arith.constant 0 : index
    %c0_21 = arith.constant 0 : index
    %31 = vector.load %arg2[%c1_19, %c0_20, %c0_21] : memref<3x128x256xbf16, #tpu.memory_space<vmem>>, vector<1x128x256xbf16>
    %32 = vector.shape_cast %31 : vector<1x128x256xbf16> to vector<128x256xbf16>
    %cst_22 = arith.constant dense<0.000000e+00> : vector<256x256xf32>
    %33 = tpu.matmul %30, %32, %cst_22 {dimension_numbers = #tpu.dot_dimension_numbers<[1], [0], [0], [1], [0, 0, 1, 1], [], []>} : vector<256x128xbf16>, vector<128x256xbf16>, vector<256x256xf32> -> vector<256x256xf32>
    %34 = vector.broadcast %28 : vector<1x256xf32> to vector<256x256xf32>
    %35 = arith.addf %33, %34 : vector<256x256xf32>
    %cst_23 = arith.constant 0.000000e+00 : f32
    %36 = vector.broadcast %cst_23 : f32 to vector<256x256xf32>
    %37 = arith.maximumf %35, %36 : vector<256x256xf32>
    %38 = arith.truncf %37 : vector<256x256xf32> to vector<256x256xbf16>
    %c1_24 = arith.constant 1 : index
    %c0_25 = arith.constant 0 : index
    %c0_26 = arith.constant 0 : index
    %39 = vector.load %arg4[%c1_24, %c0_25, %c0_26] : memref<3x256x256xbf16, #tpu.memory_space<vmem>>, vector<1x256x256xbf16>
    %40 = vector.shape_cast %39 : vector<1x256x256xbf16> to vector<256x256xbf16>
    %cst_27 = arith.constant dense<0.000000e+00> : vector<256x256xf32>
    %41 = tpu.matmul %38, %40, %cst_27 {dimension_numbers = #tpu.dot_dimension_numbers<[1], [0], [0], [1], [0, 0, 1, 1], [], []>} : vector<256x256xbf16>, vector<256x256xbf16>, vector<256x256xf32> -> vector<256x256xf32>
    %42 = vector.broadcast %29 : vector<1x256xf32> to vector<256x256xf32>
    %43 = arith.addf %41, %42 : vector<256x256xf32>
    %44 = vector.extract_strided_slice %43 {offsets = [0, 0], sizes = [256, 128], strides = [1, 1]} : vector<256x256xf32> to vector<256x128xf32>
    %45 = math.tanh %44 : vector<256x128xf32>
    %46 = vector.extract_strided_slice %43 {offsets = [0, 128], sizes = [256, 128], strides = [1, 1]} : vector<256x256xf32> to vector<256x128xf32>
    %47 = math.exp %45 : vector<256x128xf32>
    %48 = arith.mulf %0, %47 : vector<256x128xf32>
    %49 = arith.addf %48, %46 : vector<256x128xf32>
    %cst_28 = arith.constant dense<0.000000e+00> : vector<256xf32>
    %50 = vector.multi_reduction <add>, %45, %cst_28 [1] : vector<256x128xf32> to vector<256xf32>
    %51 = vector.shape_cast %50 : vector<256xf32> to vector<256x1xf32>
    %52 = arith.addf %27, %51 : vector<256x1xf32>
    %c2 = arith.constant 2 : index
    %c0_29 = arith.constant 0 : index
    %53 = vector.load %arg3[%c2, %c0_29] : memref<3x256xf32, #tpu.memory_space<vmem>>, vector<1x256xf32>
    %c2_30 = arith.constant 2 : index
    %c0_31 = arith.constant 0 : index
    %54 = vector.load %arg5[%c2_30, %c0_31] : memref<3x256xf32, #tpu.memory_space<vmem>>, vector<1x256xf32>
    %55 = arith.truncf %49 : vector<256x128xf32> to vector<256x128xbf16>
    %c2_32 = arith.constant 2 : index
    %c0_33 = arith.constant 0 : index
    %c0_34 = arith.constant 0 : index
    %56 = vector.load %arg2[%c2_32, %c0_33, %c0_34] : memref<3x128x256xbf16, #tpu.memory_space<vmem>>, vector<1x128x256xbf16>
    %57 = vector.shape_cast %56 : vector<1x128x256xbf16> to vector<128x256xbf16>
    %cst_35 = arith.constant dense<0.000000e+00> : vector<256x256xf32>
    %58 = tpu.matmul %55, %57, %cst_35 {dimension_numbers = #tpu.dot_dimension_numbers<[1], [0], [0], [1], [0, 0, 1, 1], [], []>} : vector<256x128xbf16>, vector<128x256xbf16>, vector<256x256xf32> -> vector<256x256xf32>
    %59 = vector.broadcast %53 : vector<1x256xf32> to vector<256x256xf32>
    %60 = arith.addf %58, %59 : vector<256x256xf32>
    %cst_36 = arith.constant 0.000000e+00 : f32
    %61 = vector.broadcast %cst_36 : f32 to vector<256x256xf32>
    %62 = arith.maximumf %60, %61 : vector<256x256xf32>
    %63 = arith.truncf %62 : vector<256x256xf32> to vector<256x256xbf16>
    %c2_37 = arith.constant 2 : index
    %c0_38 = arith.constant 0 : index
    %c0_39 = arith.constant 0 : index
    %64 = vector.load %arg4[%c2_37, %c0_38, %c0_39] : memref<3x256x256xbf16, #tpu.memory_space<vmem>>, vector<1x256x256xbf16>
    %65 = vector.shape_cast %64 : vector<1x256x256xbf16> to vector<256x256xbf16>
    %cst_40 = arith.constant dense<0.000000e+00> : vector<256x256xf32>
    %66 = tpu.matmul %63, %65, %cst_40 {dimension_numbers = #tpu.dot_dimension_numbers<[1], [0], [0], [1], [0, 0, 1, 1], [], []>} : vector<256x256xbf16>, vector<256x256xbf16>, vector<256x256xf32> -> vector<256x256xf32>
    %67 = vector.broadcast %54 : vector<1x256xf32> to vector<256x256xf32>
    %68 = arith.addf %66, %67 : vector<256x256xf32>
    %69 = vector.extract_strided_slice %68 {offsets = [0, 0], sizes = [256, 128], strides = [1, 1]} : vector<256x256xf32> to vector<256x128xf32>
    %70 = math.tanh %69 : vector<256x128xf32>
    %71 = vector.extract_strided_slice %68 {offsets = [0, 128], sizes = [256, 128], strides = [1, 1]} : vector<256x256xf32> to vector<256x128xf32>
    %72 = math.exp %70 : vector<256x128xf32>
    %73 = arith.mulf %24, %72 : vector<256x128xf32>
    %74 = arith.addf %73, %71 : vector<256x128xf32>
    %cst_41 = arith.constant dense<0.000000e+00> : vector<256xf32>
    %75 = vector.multi_reduction <add>, %70, %cst_41 [1] : vector<256x128xf32> to vector<256xf32>
    %76 = vector.shape_cast %75 : vector<256xf32> to vector<256x1xf32>
    %77 = arith.addf %52, %76 : vector<256x1xf32>
    %c0_42 = arith.constant 0 : index
    %c0_43 = arith.constant 0 : index
    %78 = vector.load %arg6[%c0_42, %c0_43] : memref<256x256xf32, #tpu.memory_space<vmem>>, vector<256x128xf32>
    tpu.vector_store %arg6[%c0_42, %c0_43], %74 {strides = array<i32>} : memref<256x256xf32, #tpu.memory_space<vmem>>, vector<256x128xf32>,
    %c0_44 = arith.constant 0 : index
    %c128_45 = arith.constant 128 : index
    %79 = vector.load %arg6[%c0_44, %c128_45] : memref<256x256xf32, #tpu.memory_space<vmem>>, vector<256x128xf32>
    tpu.vector_store %arg6[%c0_44, %c128_45], %49 {strides = array<i32>} : memref<256x256xf32, #tpu.memory_space<vmem>>, vector<256x128xf32>,
    %80 = vector.shape_cast %77 : vector<256x1xf32> to vector<1x256xf32>
    %c0_46 = arith.constant 0 : index
    %c0_47 = arith.constant 0 : index
    %81 = vector.load %arg7[%c0_46, %c0_47] : memref<1x256xf32, #tpu.memory_space<vmem>>, vector<1x256xf32>
    tpu.vector_store %arg7[%c0_46, %c0_47], %80 {strides = array<i32>} : memref<1x256xf32, #tpu.memory_space<vmem>>, vector<1x256xf32>,
    return
  }
  func.func @transform_0(%arg0: i32) -> (i32, i32) {
    %c0_i32 = arith.constant 0 : i32
    %c0_i32_0 = arith.constant 0 : i32
    return %arg0, %c0_i32 : i32, i32
  }
  func.func @transform_1(%arg0: i32) -> (i32, i32, i32) {
    %c0_i32 = arith.constant 0 : i32
    %c0_i32_0 = arith.constant 0 : i32
    %c0_i32_1 = arith.constant 0 : i32
    %c0_i32_2 = arith.constant 0 : i32
    return %c0_i32, %c0_i32_0, %c0_i32_1 : i32, i32, i32
  }
  func.func @transform_2(%arg0: i32) -> (i32, i32) {
    %c0_i32 = arith.constant 0 : i32
    %c0_i32_0 = arith.constant 0 : i32
    %c0_i32_1 = arith.constant 0 : i32
    return %c0_i32, %c0_i32_0 : i32, i32
  }
  func.func @transform_3(%arg0: i32) -> (i32, i32, i32) {
    %c0_i32 = arith.constant 0 : i32
    %c0_i32_0 = arith.constant 0 : i32
    %c0_i32_1 = arith.constant 0 : i32
    %c0_i32_2 = arith.constant 0 : i32
    return %c0_i32, %c0_i32_0, %c0_i32_1 : i32, i32, i32
  }
  func.func @transform_4(%arg0: i32) -> (i32, i32) {
    %c0_i32 = arith.constant 0 : i32
    %c0_i32_0 = arith.constant 0 : i32
    %c0_i32_1 = arith.constant 0 : i32
    return %c0_i32, %c0_i32_0 : i32, i32
  }
  func.func @transform_5(%arg0: i32) -> (i32, i32) {
    %c0_i32 = arith.constant 0 : i32
    %c0_i32_0 = arith.constant 0 : i32
    return %arg0, %c0_i32 : i32, i32
  }
  func.func @transform_6(%arg0: i32) -> (i32, i32) {
    %c0_i32 = arith.constant 0 : i32
    %c0_i32_0 = arith.constant 0 : i32
    return %c0_i32, %arg0 : i32, i32
  }
}

</mosaic_0001>

<llo_original>
// kernel: flow_sequential_forward.1
$region0: #{flow_sequential_forward.1}
  #allocation0 [shape = 'u32[]', space=smem, size = 0x4, offset = 0x4, fixed_abs, tag = 'smem constant byte address 0x4 - core index']
  #allocation1 [shape = 'u32[144,128]{1,0:T(1,128)}', space=vmem, size = 0x12000, scoped, tag = 'internal scratch']
  %s0 = inlined_call_operand.hbm [shape: f32[256,256], index: 0, kind: input, shape index: {}]
  %s1 = inlined_call_operand.hbm [shape: bf16[3,128,256], index: 1, kind: input, shape index: {}]
  %s2 = inlined_call_operand.hbm [shape: f32[3,256], index: 2, kind: input, shape index: {}]
  %s3 = inlined_call_operand.hbm [shape: bf16[3,256,256], index: 3, kind: input, shape index: {}]
  %s4 = inlined_call_operand.vmem [shape: f32[3,256], index: 4, kind: input, shape index: {}]
  %s5 = inlined_call_operand.hbm [shape: f32[256,256], index: 5, kind: output, shape index: {0}]
  %s6 = inlined_call_operand.hbm [shape: f32[1,256], index: 6, kind: output, shape index: {1}]
  %7 = xla_tuple %s5, %s6
  %s8 = sld [smem:[#allocation0]]
  $region54: #{flow_sequential_forward.1} parent=0
    _
  %s10 = ssub.s32 1, %s8
  %s11 = scalar_select 0, %s10, %s8
  $region1: #{flow_sequential_forward.1} parent=0
    #allocation2 [shape = 'u8[262144]{0}', space=vmem, size = 0x40000, scoped, tag = 'input window, operand 0, single buffered']
    #allocation3 [shape = 's32[1]{0}', space=sflag, size = 0x4, scoped, tag = 'scoped memory for flow_sequential_forward.1']
    #allocation4 [shape = 's32[1]{0}', space=sflag, size = 0x4, scoped, tag = 'scoped memory for flow_sequential_forward.1']
    #allocation5 [shape = 'u8[196608]{0}', space=vmem, size = 0x30000, scoped, tag = 'input window, operand 1, single buffered']
    #allocation6 [shape = 's32[1]{0}', space=sflag, size = 0x4, scoped, tag = 'scoped memory for flow_sequential_forward.1']
    #allocation7 [shape = 'u8[4096]{0}', space=vmem, size = 0x1000, scoped, tag = 'input window, operand 2, single buffered']
    #allocation8 [shape = 'u8[393216]{0}', space=vmem, size = 0x60000, scoped, tag = 'input window, operand 3, single buffered']
    #allocation9 [shape = 's32[1]{0}', space=sflag, size = 0x4, scoped, tag = 'scoped memory for flow_sequential_forward.1']
    #allocation10 [shape = 'u8[262144]{0}', space=vmem, size = 0x40000, scoped, tag = 'output window, operand 0, single buffered']
    #allocation11 [shape = 'u8[1024]{0}', space=vmem, size = 0x400, scoped, tag = 'output window, operand 1, single buffered']
    #allocation12 [shape = 's32[1]{0}', space=sflag, size = 0x4, scoped, tag = 'scoped memory for flow_sequential_forward.1']
    %12 = vsyncpa [#allocation3], 0
    %13 = vsyncpa [#allocation6], 0
    %14 = vsyncpa [#allocation9], 0
    %15 = vsyncpa [#allocation4], 0
    %16 = vsyncpa [#allocation12], 0
    // Predicated region
    $region2: #{flow_sequential_forward.1} parent=1 // pred_check
      _
    $region3: #{flow_sequential_forward.1} parent=1 // pred_check_branch
      %18 = sbr.rel (0) target = $region5
    $region4: #{flow_sequential_forward.1} parent=1 // pred_region
      %s20 = ssub.s32 8192, 8192
      %21 = vsyncadd [#allocation3], %s20
      %s22 = sshll.u32 [#allocation2], 4
      %s23 = int_to_ptr.vmem [resolvable:$true] %s22
      %28 = dma.hbm_to_vmem [thread:$0]  %s0, 8192, %s23, [#allocation3], 256, 256, 16
    $region5: #{flow_sequential_forward.1} parent=1 // pred_fallthru
      _
    // Predicated region
    $region6: #{flow_sequential_forward.1} parent=1 // pred_check
      _
    $region7: #{flow_sequential_forward.1} parent=1 // pred_check_branch
      %30 = sbr.rel (0) target = $region9
    $region8: #{flow_sequential_forward.1} parent=1 // pred_region
      %s32 = ssub.s32 6144, 6144
      %33 = vsyncadd [#allocation6], %s32
      %s34 = sshll.u32 [#allocation5], 4
      %s35 = int_to_ptr.vmem [resolvable:$true] %s34
      %40 = dma.hbm_to_vmem [thread:$0]  %s1, 6144, %s35, [#allocation6], 128, 128, 8
    $region9: #{flow_sequential_forward.1} parent=1 // pred_fallthru
      _
    // Predicated region
    $region10: #{flow_sequential_forward.1} parent=1 // pred_check
      _
    $region11: #{flow_sequential_forward.1} parent=1 // pred_check_branch
      %42 = sbr.rel (0) target = $region13
    $region12: #{flow_sequential_forward.1} parent=1 // pred_region
      %s44 = ssub.s32 128, 128
      %45 = vsyncadd [#allocation6], %s44
      %s47 = sshll.u32 [#allocation7], 4
      %s48 = int_to_ptr.vmem [resolvable:$true] %s47
      %50 = dma.hbm_to_vmem [thread:$0]  %s2, 128, %s48, [#allocation6]
    $region13: #{flow_sequential_forward.1} parent=1 // pred_fallthru
      _
    // Predicated region
    $region14: #{flow_sequential_forward.1} parent=1 // pred_check
      _
    $region15: #{flow_sequential_forward.1} parent=1 // pred_check_branch
      %52 = sbr.rel (0) target = $region17
    $region16: #{flow_sequential_forward.1} parent=1 // pred_region
      %s54 = ssub.s32 12288, 12288
      %55 = vsyncadd [#allocation9], %s54
      %s56 = sshll.u32 [#allocation8], 4
      %s57 = int_to_ptr.vmem [resolvable:$true] %s56
      %62 = dma.hbm_to_vmem [thread:$0]  %s3, 12288, %s57, [#allocation9], 128, 128, 8
    $region17: #{flow_sequential_forward.1} parent=1 // pred_fallthru
      _
    // Predicated region
    $region18: #{flow_sequential_forward.1} parent=1 // pred_check
      _
    $region19: #{flow_sequential_forward.1} parent=1 // pred_check_branch
      %64 = sbr.rel (0) target = $region21
    $region20: #{flow_sequential_forward.1} parent=1 // pred_region
      _
    $region21: #{flow_sequential_forward.1} parent=1 // pred_fallthru
      _
    // Predicated region
    $region22: #{flow_sequential_forward.1} parent=1 // pred_check
      _
    $region23: #{flow_sequential_forward.1} parent=1 // pred_check_branch
      %66 = sbr.rel (0) target = $region25
    $region24: #{flow_sequential_forward.1} parent=1 // pred_region
      %67 = dma.done [#allocation3], 8192
    $region25: #{flow_sequential_forward.1} parent=1 // pred_fallthru
      _
    // Predicated region
    $region26: #{flow_sequential_forward.1} parent=1 // pred_check
      _
    $region27: #{flow_sequential_forward.1} parent=1 // pred_check_branch
      %69 = sbr.rel (0) target = $region29
    $region28: #{flow_sequential_forward.1} parent=1 // pred_region
      %70 = dma.done [#allocation6], 6144
    $region29: #{flow_sequential_forward.1} parent=1 // pred_fallthru
      _
    // Predicated region
    $region30: #{flow_sequential_forward.1} parent=1 // pred_check
      _
    $region31: #{flow_sequential_forward.1} parent=1 // pred_check_branch
      %72 = sbr.rel (0) target = $region33
    $region32: #{flow_sequential_forward.1} parent=1 // pred_region
      %73 = dma.done [#allocation6], 128
    $region33: #{flow_sequential_forward.1} parent=1 // pred_fallthru
      _
    // Predicated region
    $region34: #{flow_sequential_forward.1} parent=1 // pred_check
      _
    $region35: #{flow_sequential_forward.1} parent=1 // pred_check_branch
      %75 = sbr.rel (0) target = $region37
    $region36: #{flow_sequential_forward.1} parent=1 // pred_region
      %76 = dma.done [#allocation9], 12288
    $region37: #{flow_sequential_forward.1} parent=1 // pred_fallthru
      _
    %v78 = vld [vmem:[#allocation2] sm:$0xff]
    %v79 = vld [vmem:[#allocation2 + $0x10] sm:$0xff]
    %v80 = vld [vmem:[#allocation2 + $0x20] sm:$0xff]
    %v81 = vld [vmem:[#allocation2 + $0x30] sm:$0xff]
    %v82 = vld [vmem:[#allocation2 + $0x40] sm:$0xff]
    %v83 = vld [vmem:[#allocation2 + $0x50] sm:$0xff]
    %v84 = vld [vmem:[#allocation2 + $0x60] sm:$0xff]
    %v85 = vld [vmem:[#allocation2 + $0x70] sm:$0xff]
    %v86 = vld [vmem:[#allocation2 + $0x80] sm:$0xff]
    %v87 = vld [vmem:[#allocation2 + $0x90] sm:$0xff]
    %v88 = vld [vmem:[#allocation2 + $0xa0] sm:$0xff]
    %v89 = vld [vmem:[#allocation2 + $0xb0] sm:$0xff]
    %v90 = vld [vmem:[#allocation2 + $0xc0] sm:$0xff]
    %v91 = vld [vmem:[#allocation2 + $0xd0] sm:$0xff]
    %v92 = vld [vmem:[#allocation2 + $0xe0] sm:$0xff]
    %v93 = vld [vmem:[#allocation2 + $0xf0] sm:$0xff]
    %v94 = vld [vmem:[#allocation2 + $0x100] sm:$0xff]
    %v95 = vld [vmem:[#allocation2 + $0x110] sm:$0xff]
    %v96 = vld [vmem:[#allocation2 + $0x120] sm:$0xff]
    %v97 = vld [vmem:[#allocation2 + $0x130] sm:$0xff]
    %v98 = vld [vmem:[#allocation2 + $0x140] sm:$0xff]
    %v99 = vld [vmem:[#allocation2 + $0x150] sm:$0xff]
    %v100 = vld [vmem:[#allocation2 + $0x160] sm:$0xff]
    %v101 = vld [vmem:[#allocation2 + $0x170] sm:$0xff]
    %v102 = vld [vmem:[#allocation2 + $0x180] sm:$0xff]
    %v103 = vld [vmem:[#allocation2 + $0x190] sm:$0xff]
    %v104 = vld [vmem:[#allocation2 + $0x1a0] sm:$0xff]
    %v105 = vld [vmem:[#allocation2 + $0x1b0] sm:$0xff]
    %v106 = vld [vmem:[#allocation2 + $0x1c0] sm:$0xff]
    %v107 = vld [vmem:[#allocation2 + $0x1d0] sm:$0xff]
    %v108 = vld [vmem:[#allocation2 + $0x1e0] sm:$0xff]
    %v109 = vld [vmem:[#allocation2 + $0x1f0] sm:$0xff]
    %v110 = vld [vmem:[#allocation2 + $0x8] sm:$0xff]
    %v111 = vld [vmem:[#allocation2 + $0x18] sm:$0xff]
    %v112 = vld [vmem:[#allocation2 + $0x28] sm:$0xff]
    %v113 = vld [vmem:[#allocation2 + $0x38] sm:$0xff]
    %v114 = vld [vmem:[#allocation2 + $0x48] sm:$0xff]
    %v115 = vld [vmem:[#allocation2 + $0x58] sm:$0xff]
    %v116 = vld [vmem:[#allocation2 + $0x68] sm:$0xff]
    %v117 = vld [vmem:[#allocation2 + $0x78] sm:$0xff]
    %v118 = vld [vmem:[#allocation2 + $0x88] sm:$0xff]
    %v119 = vld [vmem:[#allocation2 + $0x98] sm:$0xff]
    %v120 = vld [vmem:[#allocation2 + $0xa8] sm:$0xff]
    %v121 = vld [vmem:[#allocation2 + $0xb8] sm:$0xff]
    %v122 = vld [vmem:[#allocation2 + $0xc8] sm:$0xff]
    %v123 = vld [vmem:[#allocation2 + $0xd8] sm:$0xff]
    %v124 = vld [vmem:[#allocation2 + $0xe8] sm:$0xff]
    %v125 = vld [vmem:[#allocation2 + $0xf8] sm:$0xff]
    %v126 = vld [vmem:[#allocation2 + $0x108] sm:$0xff]
    %v127 = vld [vmem:[#allocation2 + $0x118] sm:$0xff]
    %v128 = vld [vmem:[#allocation2 + $0x128] sm:$0xff]
    %v129 = vld [vmem:[#allocation2 + $0x138] sm:$0xff]
    %v130 = vld [vmem:[#allocation2 + $0x148] sm:$0xff]
    %v131 = vld [vmem:[#allocation2 + $0x158] sm:$0xff]
    %v132 = vld [vmem:[#allocation2 + $0x168] sm:$0xff]
    %v133 = vld [vmem:[#allocation2 + $0x178] sm:$0xff]
    %v134 = vld [vmem:[#allocation2 + $0x188] sm:$0xff]
    %v135 = vld [vmem:[#allocation2 + $0x198] sm:$0xff]
    %v136 = vld [vmem:[#allocation2 + $0x1a8] sm:$0xff]
    %v137 = vld [vmem:[#allocation2 + $0x1b8] sm:$0xff]
    %v138 = vld [vmem:[#allocation2 + $0x1c8] sm:$0xff]
    %v139 = vld [vmem:[#allocation2 + $0x1d8] sm:$0xff]
    %v140 = vld [vmem:[#allocation2 + $0x1e8] sm:$0xff]
    %v141 = vld [vmem:[#allocation2 + $0x1f8] sm:$0xff]
    %v142 = vld [vmem:[#allocation7] ss:$4 sm:$0x3]
    %v143 = vld [vmem:[%s4] ss:$4 sm:$0x3]
    %v144 = vpack.c.bf16 %v79, %v78
    %v145 = vpack.c.bf16 %v81, %v80
    %v146 = vpack.c.bf16 %v83, %v82
    %v147 = vpack.c.bf16 %v85, %v84
    %v148 = vpack.c.bf16 %v87, %v86
    %v149 = vpack.c.bf16 %v89, %v88
    %v150 = vpack.c.bf16 %v91, %v90
    %v151 = vpack.c.bf16 %v93, %v92
    %v152 = vpack.c.bf16 %v95, %v94
    %v153 = vpack.c.bf16 %v97, %v96
    %v154 = vpack.c.bf16 %v99, %v98
    %v155 = vpack.c.bf16 %v101, %v100
    %v156 = vpack.c.bf16 %v103, %v102
    %v157 = vpack.c.bf16 %v105, %v104
    %v158 = vpack.c.bf16 %v107, %v106
    %v159 = vpack.c.bf16 %v109, %v108
    %v160 = vld [vmem:[#allocation5] sm:$0xff]
    %v161 = vld [vmem:[#allocation5 + $0x8] sm:$0xff]
    %v162 = vld [vmem:[#allocation5 + $0x10] sm:$0xff]
    %v163 = vld [vmem:[#allocation5 + $0x18] sm:$0xff]
    %v164 = vld [vmem:[#allocation5 + $0x20] sm:$0xff]
    %v165 = vld [vmem:[#allocation5 + $0x28] sm:$0xff]
    %v166 = vld [vmem:[#allocation5 + $0x30] sm:$0xff]
    %v167 = vld [vmem:[#allocation5 + $0x38] sm:$0xff]
    %v168 = vld [vmem:[#allocation5 + $0x40] sm:$0xff]
    %v169 = vld [vmem:[#allocation5 + $0x48] sm:$0xff]
    %v170 = vld [vmem:[#allocation5 + $0x50] sm:$0xff]
    %v171 = vld [vmem:[#allocation5 + $0x58] sm:$0xff]
    %v172 = vld [vmem:[#allocation5 + $0x60] sm:$0xff]
    %v173 = vld [vmem:[#allocation5 + $0x68] sm:$0xff]
    %v174 = vld [vmem:[#allocation5 + $0x70] sm:$0xff]
    %v175 = vld [vmem:[#allocation5 + $0x78] sm:$0xff]
    %v177 = vlaneseq
    %v178 = vshrl.u32 %v177, 7
    %v179 = vsub.s32 0, %v178
    %v180 = vrot.slane %v142, %v179
    %v181 = vlaneseq
    %v182 = vshrl.u32 %v181, 7
    %v183 = vsub.s32 1, %v182
    %v184 = vrot.slane %v142, %v183
    %v203 = vunpack.c.l.b16 %v160
    %v204 = vunpack.c.h.b16 %v160
    %v205 = vunpack.c.l.b16 %v161
    %v206 = vunpack.c.h.b16 %v161
    %v207 = vunpack.c.l.b16 %v162
    %v208 = vunpack.c.h.b16 %v162
    %v209 = vunpack.c.l.b16 %v163
    %v210 = vunpack.c.h.b16 %v163
    %v211 = vunpack.c.l.b16 %v164
    %v212 = vunpack.c.h.b16 %v164
    %v213 = vunpack.c.l.b16 %v165
    %v214 = vunpack.c.h.b16 %v165
    %v215 = vunpack.c.l.b16 %v166
    %v216 = vunpack.c.h.b16 %v166
    %v217 = vunpack.c.l.b16 %v167
    %v218 = vunpack.c.h.b16 %v167
    %v219 = vunpack.c.l.b16 %v168
    %v220 = vunpack.c.h.b16 %v168
    %v221 = vunpack.c.l.b16 %v169
    %v222 = vunpack.c.h.b16 %v169
    %v223 = vunpack.c.l.b16 %v170
    %v224 = vunpack.c.h.b16 %v170
    %v225 = vunpack.c.l.b16 %v171
    %v226 = vunpack.c.h.b16 %v171
    %v227 = vunpack.c.l.b16 %v172
    %v228 = vunpack.c.h.b16 %v172
    %v229 = vunpack.c.l.b16 %v173
    %v230 = vunpack.c.h.b16 %v173
    %v231 = vunpack.c.l.b16 %v174
    %v232 = vunpack.c.h.b16 %v174
    %v233 = vunpack.c.l.b16 %v175
    %v234 = vunpack.c.h.b16 %v175
    %v235 = vpack.c.b16 %v205, %v203
    %v236 = vpack.c.b16 %v206, %v204
    %v237 = vpack.c.b16 %v209, %v207
    %v238 = vpack.c.b16 %v210, %v208
    %v239 = vpack.c.b16 %v213, %v211
    %v240 = vpack.c.b16 %v214, %v212
    %v241 = vpack.c.b16 %v217, %v215
    %v242 = vpack.c.b16 %v218, %v216
    %v243 = vpack.c.b16 %v221, %v219
    %v244 = vpack.c.b16 %v222, %v220
    %v245 = vpack.c.b16 %v225, %v223
    %v246 = vpack.c.b16 %v226, %v224
    %v247 = vpack.c.b16 %v229, %v227
    %v248 = vpack.c.b16 %v230, %v228
    %v249 = vpack.c.b16 %v233, %v231
    %v250 = vpack.c.b16 %v234, %v232
    %267 = vmatprep.subr.bf16.mxu0 %v236
    %268 = vmatpush1.bf16.msra.mxu0 %v235
    %269 = vmatprep.subr.bf16.mxu0 %v238
    %270 = vmatpush1.bf16.msra.mxu0 %v237
    %271 = vmatprep.subr.bf16.mxu0 %v240
    %272 = vmatpush1.bf16.msra.mxu0 %v239
    %273 = vmatprep.subr.bf16.mxu0 %v242
    %274 = vmatpush1.bf16.msra.mxu0 %v241
    %275 = vmatprep.subr.bf16.mxu0 %v244
    %276 = vmatpush1.bf16.msra.mxu0 %v243
    %277 = vmatprep.subr.bf16.mxu0 %v246
    %278 = vmatpush1.bf16.msra.mxu0 %v245
    %279 = vmatprep.subr.bf16.mxu0 %v248
    %280 = vmatpush1.bf16.msra.mxu0 %v247
    %281 = vmatprep.subr.bf16.mxu0 %v250
    %282 = vmatpush1.bf16.msra.mxu0 %v249
    %283 = vmatprep.subr.bf16.mxu0 0
    %284 = vmatpush1.bf16.msra.mxu0 0
    %285 = vmatprep.subr.bf16.mxu0 0
    %286 = vmatpush1.bf16.msra.mxu0 0
    %287 = vmatprep.subr.bf16.mxu0 0
    %288 = vmatpush1.bf16.msra.mxu0 0
    %289 = vmatprep.subr.bf16.mxu0 0
    %290 = vmatpush1.bf16.msra.mxu0 0
    %291 = vmatprep.subr.bf16.mxu0 0
    %292 = vmatpush1.bf16.msra.mxu0 0
    %293 = vmatprep.subr.bf16.mxu0 0
    %294 = vmatpush1.bf16.msra.mxu0 0
    %295 = vmatprep.subr.bf16.mxu0 0
    %296 = vmatpush1.bf16.msra.mxu0 0
    %297 = vmatprep.subr.bf16.mxu0 0
    %298 = vmatpush1.bf16.msra.mxu0 0
    %299 = vmatprep.mubr.bf16.mxu0 0
    %300 = vmatmul.mubr.bf16.gmra.mrb[0].mxu0 %v144
    %v301 = vpop.f32.mrb[0].mxu0
    %v302 = vadd.f32 %v180, %v301
    %v303 = vpop.f32.mrb[0].mxu0
    %v304 = vadd.f32 %v184, %v303
    %v305 = vpop.f32.mrb[0].mxu0
    %v306 = vadd.f32 %v180, %v305
    %v307 = vpop.f32.mrb[0].mxu0
    %v308 = vadd.f32 %v184, %v307
    %309 = vmatprep.mubr.bf16.mxu0 0
    %310 = vmatmul.mubr.bf16.gmra.mrb[0].mxu0 %v145
    %v311 = vpop.f32.mrb[0].mxu0
    %v312 = vadd.f32 %v180, %v311
    %v313 = vpop.f32.mrb[0].mxu0
    %v314 = vadd.f32 %v184, %v313
    %v315 = vpop.f32.mrb[0].mxu0
    %v316 = vadd.f32 %v180, %v315
    %v317 = vpop.f32.mrb[0].mxu0
    %v318 = vadd.f32 %v184, %v317
    %319 = vmatprep.mubr.bf16.mxu0 0
    %320 = vmatmul.mubr.bf16.gmra.mrb[0].mxu0 %v146
    %v321 = vpop.f32.mrb[0].mxu0
    %v322 = vadd.f32 %v180, %v321
    %v323 = vpop.f32.mrb[0].mxu0
    %v324 = vadd.f32 %v184, %v323
    %v325 = vpop.f32.mrb[0].mxu0
    %v326 = vadd.f32 %v180, %v325
    %v327 = vpop.f32.mrb[0].mxu0
    %v328 = vadd.f32 %v184, %v327
    %329 = vmatprep.mubr.bf16.mxu0 0
    %330 = vmatmul.mubr.bf16.gmra.mrb[0].mxu0 %v147
    %v331 = vpop.f32.mrb[0].mxu0
    %v332 = vadd.f32 %v180, %v331
    %v333 = vpop.f32.mrb[0].mxu0
    %v334 = vadd.f32 %v184, %v333
    %v335 = vpop.f32.mrb[0].mxu0
    %v336 = vadd.f32 %v180, %v335
    %v337 = vpop.f32.mrb[0].mxu0
    %v338 = vadd.f32 %v184, %v337
    %339 = vmatprep.mubr.bf16.mxu0 0
    %340 = vmatmul.mubr.bf16.gmra.mrb[0].mxu0 %v148
    %v341 = vpop.f32.mrb[0].mxu0
    %v342 = vadd.f32 %v180, %v341
    %v343 = vpop.f32.mrb[0].mxu0
    %v344 = vadd.f32 %v184, %v343
    %v345 = vpop.f32.mrb[0].mxu0
    %v346 = vadd.f32 %v180, %v345
    %v347 = vpop.f32.mrb[0].mxu0
    %v348 = vadd.f32 %v184, %v347
    %349 = vmatprep.mubr.bf16.mxu0 0
    %350 = vmatmul.mubr.bf16.gmra.mrb[0].mxu0 %v149
    %v351 = vpop.f32.mrb[0].mxu0
    %v352 = vadd.f32 %v180, %v351
    %v353 = vpop.f32.mrb[0].mxu0
    %v354 = vadd.f32 %v184, %v353
    %v355 = vpop.f32.mrb[0].mxu0
    %v356 = vadd.f32 %v180, %v355
    %v357 = vpop.f32.mrb[0].mxu0
    %v358 = vadd.f32 %v184, %v357
    %359 = vmatprep.mubr.bf16.mxu0 0
    %360 = vmatmul.mubr.bf16.gmra.mrb[0].mxu0 %v150
    %v361 = vpop.f32.mrb[0].mxu0
    %v362 = vadd.f32 %v180, %v361
    %v363 = vpop.f32.mrb[0].mxu0
    %v364 = vadd.f32 %v184, %v363
    %v365 = vpop.f32.mrb[0].mxu0
    %v366 = vadd.f32 %v180, %v365
    %v367 = vpop.f32.mrb[0].mxu0
    %v368 = vadd.f32 %v184, %v367
    %369 = vmatprep.mubr.bf16.mxu0 0
    %370 = vmatmul.mubr.bf16.gmra.mrb[0].mxu0 %v151
    %v371 = vpop.f32.mrb[0].mxu0
    %v372 = vadd.f32 %v180, %v371
    %v373 = vpop.f32.mrb[0].mxu0
    %v374 = vadd.f32 %v184, %v373
    %v375 = vpop.f32.mrb[0].mxu0
    %v376 = vadd.f32 %v180, %v375
    %v377 = vpop.f32.mrb[0].mxu0
    %v378 = vadd.f32 %v184, %v377
    %379 = vmatprep.mubr.bf16.mxu0 0
    %380 = vmatmul.mubr.bf16.gmra.mrb[0].mxu0 %v152
    %v381 = vpop.f32.mrb[0].mxu0
    %v382 = vadd.f32 %v180, %v381
    %v383 = vpop.f32.mrb[0].mxu0
    %v384 = vadd.f32 %v184, %v383
    %v385 = vpop.f32.mrb[0].mxu0
    %v386 = vadd.f32 %v180, %v385
    %v387 = vpop.f32.mrb[0].mxu0
    %v388 = vadd.f32 %v184, %v387
    %389 = vmatprep.mubr.bf16.mxu0 0
    %390 = vmatmul.mubr.bf16.gmra.mrb[0].mxu0 %v153
    %v391 = vpop.f32.mrb[0].mxu0
    %v392 = vadd.f32 %v180, %v391
    %v393 = vpop.f32.mrb[0].mxu0
    %v394 = vadd.f32 %v184, %v393
    %v395 = vpop.f32.mrb[0].mxu0
    %v396 = vadd.f32 %v180, %v395
    %v397 = vpop.f32.mrb[0].mxu0
    %v398 = vadd.f32 %v184, %v397
    %399 = vmatprep.mubr.bf16.mxu0 0
    %400 = vmatmul.mubr.bf16.gmra.mrb[0].mxu0 %v154
    %v401 = vpop.f32.mrb[0].mxu0
    %v402 = vadd.f32 %v180, %v401
    %v403 = vpop.f32.mrb[0].mxu0
    %v404 = vadd.f32 %v184, %v403
    %v405 = vpop.f32.mrb[0].mxu0
    %v406 = vadd.f32 %v180, %v405
    %v407 = vpop.f32.mrb[0].mxu0
    %v408 = vadd.f32 %v184, %v407
    %409 = vmatprep.mubr.bf16.mxu0 0
    %410 = vmatmul.mubr.bf16.gmra.mrb[0].mxu0 %v155
    %v411 = vpop.f32.mrb[0].mxu0
    %v412 = vadd.f32 %v180, %v411
    %v413 = vpop.f32.mrb[0].mxu0
    %v414 = vadd.f32 %v184, %v413
    %v415 = vpop.f32.mrb[0].mxu0
    %v416 = vadd.f32 %v180, %v415
    %v417 = vpop.f32.mrb[0].mxu0
    %v418 = vadd.f32 %v184, %v417
    %419 = vmatprep.mubr.bf16.mxu0 0
    %420 = vmatmul.mubr.bf16.gmra.mrb[0].mxu0 %v156
    %v421 = vpop.f32.mrb[0].mxu0
    %v422 = vadd.f32 %v180, %v421
    %v423 = vpop.f32.mrb[0].mxu0
    %v424 = vadd.f32 %v184, %v423
    %v425 = vpop.f32.mrb[0].mxu0
    %v426 = vadd.f32 %v180, %v425
    %v427 = vpop.f32.mrb[0].mxu0
    %v428 = vadd.f32 %v184, %v427
    %429 = vmatprep.mubr.bf16.mxu0 0
    %430 = vmatmul.mubr.bf16.gmra.mrb[0].mxu0 %v157
    %v431 = vpop.f32.mrb[0].mxu0
    %v432 = vadd.f32 %v180, %v431
    %v433 = vpop.f32.mrb[0].mxu0
    %v434 = vadd.f32 %v184, %v433
    %v435 = vpop.f32.mrb[0].mxu0
    %v436 = vadd.f32 %v180, %v435
    %v437 = vpop.f32.mrb[0].mxu0
    %v438 = vadd.f32 %v184, %v437
    %439 = vmatprep.mubr.bf16.mxu0 0
    %440 = vmatmul.mubr.bf16.gmra.mrb[0].mxu0 %v158
    %v441 = vpop.f32.mrb[0].mxu0
    %v442 = vadd.f32 %v180, %v441
    %v443 = vpop.f32.mrb[0].mxu0
    %v444 = vadd.f32 %v184, %v443
    %v445 = vpop.f32.mrb[0].mxu0
    %v446 = vadd.f32 %v180, %v445
    %v447 = vpop.f32.mrb[0].mxu0
    %v448 = vadd.f32 %v184, %v447
    %449 = vmatprep.mubr.bf16.mxu0 0
    %450 = vmatmul.mubr.bf16.gmra.mrb[0].mxu0 %v159
    %v451 = vpop.f32.mrb[0].mxu0
    %v452 = vadd.f32 %v180, %v451
    %v453 = vpop.f32.mrb[0].mxu0
    %v454 = vadd.f32 %v184, %v453
    %v455 = vpop.f32.mrb[0].mxu0
    %v456 = vadd.f32 %v180, %v455
    %v457 = vpop.f32.mrb[0].mxu0
    %v458 = vadd.f32 %v184, %v457
    %459 = vdwg.mxu0
    %v460 = vmax.f32 %v302, 0.0
    %v461 = vmax.f32 %v304, 0.0
    %v462 = vmax.f32 %v306, 0.0
    %v463 = vmax.f32 %v308, 0.0
    %v464 = vmax.f32 %v312, 0.0
    %v465 = vmax.f32 %v314, 0.0
    %v466 = vmax.f32 %v316, 0.0
    %v467 = vmax.f32 %v318, 0.0
    %v468 = vmax.f32 %v322, 0.0
    %v469 = vmax.f32 %v324, 0.0
    %v470 = vmax.f32 %v326, 0.0
    %v471 = vmax.f32 %v328, 0.0
    %v472 = vmax.f32 %v332, 0.0
    %v473 = vmax.f32 %v334, 0.0
    %v474 = vmax.f32 %v336, 0.0
    %v475 = vmax.f32 %v338, 0.0
    %v476 = vmax.f32 %v342, 0.0
    %v477 = vmax.f32 %v344, 0.0
    %v478 = vmax.f32 %v346, 0.0
    %v479 = vmax.f32 %v348, 0.0
    %v480 = vmax.f32 %v352, 0.0
    %v481 = vmax.f32 %v354, 0.0
    %v482 = vmax.f32 %v356, 0.0
    %v483 = vmax.f32 %v358, 0.0
    %v484 = vmax.f32 %v362, 0.0
    %v485 = vmax.f32 %v364, 0.0
    %v486 = vmax.f32 %v366, 0.0
    %v487 = vmax.f32 %v368, 0.0
    %v488 = vmax.f32 %v372, 0.0
    %v489 = vmax.f32 %v374, 0.0
    %v490 = vmax.f32 %v376, 0.0
    %v491 = vmax.f32 %v378, 0.0
    %v492 = vmax.f32 %v382, 0.0
    %v493 = vmax.f32 %v384, 0.0
    %v494 = vmax.f32 %v386, 0.0
    %v495 = vmax.f32 %v388, 0.0
    %v496 = vmax.f32 %v392, 0.0
    %v497 = vmax.f32 %v394, 0.0
    %v498 = vmax.f32 %v396, 0.0
    %v499 = vmax.f32 %v398, 0.0
    %v500 = vmax.f32 %v402, 0.0
    %v501 = vmax.f32 %v404, 0.0
    %v502 = vmax.f32 %v406, 0.0
    %v503 = vmax.f32 %v408, 0.0
    %v504 = vmax.f32 %v412, 0.0
    %v505 = vmax.f32 %v414, 0.0
    %v506 = vmax.f32 %v416, 0.0
    %v507 = vmax.f32 %v418, 0.0
    %v508 = vmax.f32 %v422, 0.0
    %v509 = vmax.f32 %v424, 0.0
    %v510 = vmax.f32 %v426, 0.0
    %v511 = vmax.f32 %v428, 0.0
    %v512 = vmax.f32 %v432, 0.0
    %v513 = vmax.f32 %v434, 0.0
    %v514 = vmax.f32 %v436, 0.0
    %v515 = vmax.f32 %v438, 0.0
    %v516 = vmax.f32 %v442, 0.0
    %v517 = vmax.f32 %v444, 0.0
    %v518 = vmax.f32 %v446, 0.0
    %v519 = vmax.f32 %v448, 0.0
    %v520 = vmax.f32 %v452, 0.0
    %v521 = vmax.f32 %v454, 0.0
    %v522 = vmax.f32 %v456, 0.0
    %v523 = vmax.f32 %v458, 0.0
    %v524 = vpack.c.bf16 %v462, %v460
    %v525 = vpack.c.bf16 %v463, %v461
    %v526 = vpack.c.bf16 %v466, %v464
    %v527 = vpack.c.bf16 %v467, %v465
    %v528 = vpack.c.bf16 %v470, %v468
    %v529 = vpack.c.bf16 %v471, %v469
    %v530 = vpack.c.bf16 %v474, %v472
    %v531 = vpack.c.bf16 %v475, %v473
    %v532 = vpack.c.bf16 %v478, %v476
    %v533 = vpack.c.bf16 %v479, %v477
    %v534 = vpack.c.bf16 %v482, %v480
    %v535 = vpack.c.bf16 %v483, %v481
    %v536 = vpack.c.bf16 %v486, %v484
    %v537 = vpack.c.bf16 %v487, %v485
    %v538 = vpack.c.bf16 %v490, %v488
    %v539 = vpack.c.bf16 %v491, %v489
    %v540 = vpack.c.bf16 %v494, %v492
    %v541 = vpack.c.bf16 %v495, %v493
    %v542 = vpack.c.bf16 %v498, %v496
    %v543 = vpack.c.bf16 %v499, %v497
    %v544 = vpack.c.bf16 %v502, %v500
    %v545 = vpack.c.bf16 %v503, %v501
    %v546 = vpack.c.bf16 %v506, %v504
    %v547 = vpack.c.bf16 %v507, %v505
    %v548 = vpack.c.bf16 %v510, %v508
    %v549 = vpack.c.bf16 %v511, %v509
    %v550 = vpack.c.bf16 %v514, %v512
    %v551 = vpack.c.bf16 %v515, %v513
    %v552 = vpack.c.bf16 %v518, %v516
    %v553 = vpack.c.bf16 %v519, %v517
    %v554 = vpack.c.bf16 %v522, %v520
    %v555 = vpack.c.bf16 %v523, %v521
    %v556 = vld [vmem:[#allocation8] sm:$0xff]
    %v557 = vld [vmem:[#allocation8 + $0x8] sm:$0xff]
    %v558 = vld [vmem:[#allocation8 + $0x10] sm:$0xff]
    %v559 = vld [vmem:[#allocation8 + $0x18] sm:$0xff]
    %v560 = vld [vmem:[#allocation8 + $0x20] sm:$0xff]
    %v561 = vld [vmem:[#allocation8 + $0x28] sm:$0xff]
    %v562 = vld [vmem:[#allocation8 + $0x30] sm:$0xff]
    %v563 = vld [vmem:[#allocation8 + $0x38] sm:$0xff]
    %v564 = vld [vmem:[#allocation8 + $0x40] sm:$0xff]
    %v565 = vld [vmem:[#allocation8 + $0x48] sm:$0xff]
    %v566 = vld [vmem:[#allocation8 + $0x50] sm:$0xff]
    %v567 = vld [vmem:[#allocation8 + $0x58] sm:$0xff]
    %v568 = vld [vmem:[#allocation8 + $0x60] sm:$0xff]
    %v569 = vld [vmem:[#allocation8 + $0x68] sm:$0xff]
    %v570 = vld [vmem:[#allocation8 + $0x70] sm:$0xff]
    %v571 = vld [vmem:[#allocation8 + $0x78] sm:$0xff]
    %v572 = vld [vmem:[#allocation8 + $0x80] sm:$0xff]
    %v573 = vld [vmem:[#allocation8 + $0x88] sm:$0xff]
    %v574 = vld [vmem:[#allocation8 + $0x90] sm:$0xff]
    %v575 = vld [vmem:[#allocation8 + $0x98] sm:$0xff]
    %v576 = vld [vmem:[#allocation8 + $0xa0] sm:$0xff]
    %v577 = vld [vmem:[#allocation8 + $0xa8] sm:$0xff]
    %v578 = vld [vmem:[#allocation8 + $0xb0] sm:$0xff]
    %v579 = vld [vmem:[#allocation8 + $0xb8] sm:$0xff]
    %v580 = vld [vmem:[#allocation8 + $0xc0] sm:$0xff]
    %v581 = vld [vmem:[#allocation8 + $0xc8] sm:$0xff]
    %v582 = vld [vmem:[#allocation8 + $0xd0] sm:$0xff]
    %v583 = vld [vmem:[#allocation8 + $0xd8] sm:$0xff]
    %v584 = vld [vmem:[#allocation8 + $0xe0] sm:$0xff]
    %v585 = vld [vmem:[#allocation8 + $0xe8] sm:$0xff]
    %v586 = vld [vmem:[#allocation8 + $0xf0] sm:$0xff]
    %v587 = vld [vmem:[#allocation8 + $0xf8] sm:$0xff]
    %v589 = vlaneseq
    %v590 = vshrl.u32 %v589, 7
    %v591 = vsub.s32 0, %v590
    %v592 = vrot.slane %v143, %v591
    %v593 = vlaneseq
    %v594 = vshrl.u32 %v593, 7
    %v595 = vsub.s32 1, %v594
    %v596 = vrot.slane %v143, %v595
    %v631 = vunpack.c.l.b16 %v556
    %v632 = vunpack.c.h.b16 %v556
    %v633 = vunpack.c.l.b16 %v557
    %v634 = vunpack.c.h.b16 %v557
    %v635 = vunpack.c.l.b16 %v558
    %v636 = vunpack.c.h.b16 %v558
    %v637 = vunpack.c.l.b16 %v559
    %v638 = vunpack.c.h.b16 %v559
    %v639 = vunpack.c.l.b16 %v560
    %v640 = vunpack.c.h.b16 %v560
    %v641 = vunpack.c.l.b16 %v561
    %v642 = vunpack.c.h.b16 %v561
    %v643 = vunpack.c.l.b16 %v562
    %v644 = vunpack.c.h.b16 %v562
    %v645 = vunpack.c.l.b16 %v563
    %v646 = vunpack.c.h.b16 %v563
    %v647 = vunpack.c.l.b16 %v564
    %v648 = vunpack.c.h.b16 %v564
    %v649 = vunpack.c.l.b16 %v565
    %v650 = vunpack.c.h.b16 %v565
    %v651 = vunpack.c.l.b16 %v566
    %v652 = vunpack.c.h.b16 %v566
    %v653 = vunpack.c.l.b16 %v567
    %v654 = vunpack.c.h.b16 %v567
    %v655 = vunpack.c.l.b16 %v568
    %v656 = vunpack.c.h.b16 %v568
    %v657 = vunpack.c.l.b16 %v569
    %v658 = vunpack.c.h.b16 %v569
    %v659 = vunpack.c.l.b16 %v570
    %v660 = vunpack.c.h.b16 %v570
    %v661 = vunpack.c.l.b16 %v571
    %v662 = vunpack.c.h.b16 %v571
    %v663 = vunpack.c.l.b16 %v572
    %v664 = vunpack.c.h.b16 %v572
    %v665 = vunpack.c.l.b16 %v573
    %v666 = vunpack.c.h.b16 %v573
    %v667 = vunpack.c.l.b16 %v574
    %v668 = vunpack.c.h.b16 %v574
    %v669 = vunpack.c.l.b16 %v575
    %v670 = vunpack.c.h.b16 %v575
    %v671 = vunpack.c.l.b16 %v576
    %v672 = vunpack.c.h.b16 %v576
    %v673 = vunpack.c.l.b16 %v577
    %v674 = vunpack.c.h.b16 %v577
    %v675 = vunpack.c.l.b16 %v578
    %v676 = vunpack.c.h.b16 %v578
    %v677 = vunpack.c.l.b16 %v579
    %v678 = vunpack.c.h.b16 %v579
    %v679 = vunpack.c.l.b16 %v580
    %v680 = vunpack.c.h.b16 %v580
    %v681 = vunpack.c.l.b16 %v581
    %v682 = vunpack.c.h.b16 %v581
    %v683 = vunpack.c.l.b16 %v582
    %v684 = vunpack.c.h.b16 %v582
    %v685 = vunpack.c.l.b16 %v583
    %v686 = vunpack.c.h.b16 %v583
    %v687 = vunpack.c.l.b16 %v584
    %v688 = vunpack.c.h.b16 %v584
    %v689 = vunpack.c.l.b16 %v585
    %v690 = vunpack.c.h.b16 %v585
    %v691 = vunpack.c.l.b16 %v586
    %v692 = vunpack.c.h.b16 %v586
    %v693 = vunpack.c.l.b16 %v587
    %v694 = vunpack.c.h.b16 %v587
    %v695 = vpack.c.b16 %v633, %v631
    %v696 = vpack.c.b16 %v634, %v632
    %v697 = vpack.c.b16 %v637, %v635
    %v698 = vpack.c.b16 %v638, %v636
    %v699 = vpack.c.b16 %v641, %v639
    %v700 = vpack.c.b16 %v642, %v640
    %v701 = vpack.c.b16 %v645, %v643
    %v702 = vpack.c.b16 %v646, %v644
    %v703 = vpack.c.b16 %v649, %v647
    %v704 = vpack.c.b16 %v650, %v648
    %v705 = vpack.c.b16 %v653, %v651
    %v706 = vpack.c.b16 %v654, %v652
    %v707 = vpack.c.b16 %v657, %v655
    %v708 = vpack.c.b16 %v658, %v656
    %v709 = vpack.c.b16 %v661, %v659
    %v710 = vpack.c.b16 %v662, %v660
    %v711 = vpack.c.b16 %v665, %v663
    %v712 = vpack.c.b16 %v666, %v664
    %v713 = vpack.c.b16 %v669, %v667
    %v714 = vpack.c.b16 %v670, %v668
    %v715 = vpack.c.b16 %v673, %v671
    %v716 = vpack.c.b16 %v674, %v672
    %v717 = vpack.c.b16 %v677, %v675
    %v718 = vpack.c.b16 %v678, %v676
    %v719 = vpack.c.b16 %v681, %v679
    %v720 = vpack.c.b16 %v682, %v680
    %v721 = vpack.c.b16 %v685, %v683
    %v722 = vpack.c.b16 %v686, %v684
    %v723 = vpack.c.b16 %v689, %v687
    %v724 = vpack.c.b16 %v690, %v688
    %v725 = vpack.c.b16 %v693, %v691
    %v726 = vpack.c.b16 %v694, %v692
    %759 = vmatprep.subr.bf16.mxu0 %v696
    %760 = vmatpush1.bf16.msra.mxu0 %v695
    %761 = vmatprep.subr.bf16.mxu0 %v698
    %762 = vmatpush1.bf16.msra.mxu0 %v697
    %763 = vmatprep.subr.bf16.mxu0 %v700
    %764 = vmatpush1.bf16.msra.mxu0 %v699
    %765 = vmatprep.subr.bf16.mxu0 %v702
    %766 = vmatpush1.bf16.msra.mxu0 %v701
    %767 = vmatprep.subr.bf16.mxu0 %v704
    %768 = vmatpush1.bf16.msra.mxu0 %v703
    %769 = vmatprep.subr.bf16.mxu0 %v706
    %770 = vmatpush1.bf16.msra.mxu0 %v705
    %771 = vmatprep.subr.bf16.mxu0 %v708
    %772 = vmatpush1.bf16.msra.mxu0 %v707
    %773 = vmatprep.subr.bf16.mxu0 %v710
    %774 = vmatpush1.bf16.msra.mxu0 %v709
    %775 = vmatprep.subr.bf16.mxu0 %v712
    %776 = vmatpush1.bf16.msra.mxu0 %v711
    %777 = vmatprep.subr.bf16.mxu0 %v714
    %778 = vmatpush1.bf16.msra.mxu0 %v713
    %779 = vmatprep.subr.bf16.mxu0 %v716
    %780 = vmatpush1.bf16.msra.mxu0 %v715
    %781 = vmatprep.subr.bf16.mxu0 %v718
    %782 = vmatpush1.bf16.msra.mxu0 %v717
    %783 = vmatprep.subr.bf16.mxu0 %v720
    %784 = vmatpush1.bf16.msra.mxu0 %v719
    %785 = vmatprep.subr.bf16.mxu0 %v722
    %786 = vmatpush1.bf16.msra.mxu0 %v721
    %787 = vmatprep.subr.bf16.mxu0 %v724
    %788 = vmatpush1.bf16.msra.mxu0 %v723
    %789 = vmatprep.subr.bf16.mxu0 %v726
    %790 = vmatpush1.bf16.msra.mxu0 %v725
    %791 = vmatprep.mubr.bf16.mxu0 %v525
    %792 = vmatmul.mubr.bf16.gmra.mrb[0].mxu0 %v524
    %v793 = vpop.f32.mrb[0].mxu0
    %v794 = vadd.f32 %v592, %v793
    %v795 = vpop.f32.mrb[0].mxu0
    %v796 = vadd.f32 %v596, %v795
    %v797 = vpop.f32.mrb[0].mxu0
    %v798 = vadd.f32 %v592, %v797
    %v799 = vpop.f32.mrb[0].mxu0
    %v800 = vadd.f32 %v596, %v799
    %801 = vmatprep.mubr.bf16.mxu0 %v527
    %802 = vmatmul.mubr.bf16.gmra.mrb[0].mxu0 %v526
    %v803 = vpop.f32.mrb[0].mxu0
    %v804 = vadd.f32 %v592, %v803
    %v805 = vpop.f32.mrb[0].mxu0
    %v806 = vadd.f32 %v596, %v805
    %v807 = vpop.f32.mrb[0].mxu0
    %v808 = vadd.f32 %v592, %v807
    %v809 = vpop.f32.mrb[0].mxu0
    %v810 = vadd.f32 %v596, %v809
    %811 = vmatprep.mubr.bf16.mxu0 %v529
    %812 = vmatmul.mubr.bf16.gmra.mrb[0].mxu0 %v528
    %v813 = vpop.f32.mrb[0].mxu0
    %v814 = vadd.f32 %v592, %v813
    %v815 = vpop.f32.mrb[0].mxu0
    %v816 = vadd.f32 %v596, %v815
    %v817 = vpop.f32.mrb[0].mxu0
    %v818 = vadd.f32 %v592, %v817
    %v819 = vpop.f32.mrb[0].mxu0
    %v820 = vadd.f32 %v596, %v819
    %821 = vmatprep.mubr.bf16.mxu0 %v531
    %822 = vmatmul.mubr.bf16.gmra.mrb[0].mxu0 %v530
    %v823 = vpop.f32.mrb[0].mxu0
    %v824 = vadd.f32 %v592, %v823
    %v825 = vpop.f32.mrb[0].mxu0
    %v826 = vadd.f32 %v596, %v825
    %v827 = vpop.f32.mrb[0].mxu0
    %v828 = vadd.f32 %v592, %v827
    %v829 = vpop.f32.mrb[0].mxu0
    %v830 = vadd.f32 %v596, %v829
    %831 = vmatprep.mubr.bf16.mxu0 %v533
    %832 = vmatmul.mubr.bf16.gmra.mrb[0].mxu0 %v532
    %v833 = vpop.f32.mrb[0].mxu0
    %v834 = vadd.f32 %v592, %v833
    %v835 = vpop.f32.mrb[0].mxu0
    %v836 = vadd.f32 %v596, %v835
    %v837 = vpop.f32.mrb[0].mxu0
    %v838 = vadd.f32 %v592, %v837
    %v839 = vpop.f32.mrb[0].mxu0
    %v840 = vadd.f32 %v596, %v839
    %841 = vmatprep.mubr.bf16.mxu0 %v535
    %842 = vmatmul.mubr.bf16.gmra.mrb[0].mxu0 %v534
    %v843 = vpop.f32.mrb[0].mxu0
    %v844 = vadd.f32 %v592, %v843
    %v845 = vpop.f32.mrb[0].mxu0
    %v846 = vadd.f32 %v596, %v845
    %v847 = vpop.f32.mrb[0].mxu0
    %v848 = vadd.f32 %v592, %v847
    %v849 = vpop.f32.mrb[0].mxu0
    %v850 = vadd.f32 %v596, %v849
    %851 = vmatprep.mubr.bf16.mxu0 %v537
    %852 = vmatmul.mubr.bf16.gmra.mrb[0].mxu0 %v536
    %v853 = vpop.f32.mrb[0].mxu0
    %v854 = vadd.f32 %v592, %v853
    %v855 = vpop.f32.mrb[0].mxu0
    %v856 = vadd.f32 %v596, %v855
    %v857 = vpop.f32.mrb[0].mxu0
    %v858 = vadd.f32 %v592, %v857
    %v859 = vpop.f32.mrb[0].mxu0
    %v860 = vadd.f32 %v596, %v859
    %861 = vmatprep.mubr.bf16.mxu0 %v539
    %862 = vmatmul.mubr.bf16.gmra.mrb[0].mxu0 %v538
    %v863 = vpop.f32.mrb[0].mxu0
    %v864 = vadd.f32 %v592, %v863
    %v865 = vpop.f32.mrb[0].mxu0
    %v866 = vadd.f32 %v596, %v865
    %v867 = vpop.f32.mrb[0].mxu0
    %v868 = vadd.f32 %v592, %v867
    %v869 = vpop.f32.mrb[0].mxu0
    %v870 = vadd.f32 %v596, %v869
    %871 = vmatprep.mubr.bf16.mxu0 %v541
    %872 = vmatmul.mubr.bf16.gmra.mrb[0].mxu0 %v540
    %v873 = vpop.f32.mrb[0].mxu0
    %v874 = vadd.f32 %v592, %v873
    %v875 = vpop.f32.mrb[0].mxu0
    %v876 = vadd.f32 %v596, %v875
    %v877 = vpop.f32.mrb[0].mxu0
    %v878 = vadd.f32 %v592, %v877
    %v879 = vpop.f32.mrb[0].mxu0
    %v880 = vadd.f32 %v596, %v879
    %881 = vmatprep.mubr.bf16.mxu0 %v543
    %882 = vmatmul.mubr.bf16.gmra.mrb[0].mxu0 %v542
    %v883 = vpop.f32.mrb[0].mxu0
    %v884 = vadd.f32 %v592, %v883
    %v885 = vpop.f32.mrb[0].mxu0
    %v886 = vadd.f32 %v596, %v885
    %v887 = vpop.f32.mrb[0].mxu0
    %v888 = vadd.f32 %v592, %v887
    %v889 = vpop.f32.mrb[0].mxu0
    %v890 = vadd.f32 %v596, %v889
    %891 = vmatprep.mubr.bf16.mxu0 %v545
    %892 = vmatmul.mubr.bf16.gmra.mrb[0].mxu0 %v544
    %v893 = vpop.f32.mrb[0].mxu0
    %v894 = vadd.f32 %v592, %v893
    %v895 = vpop.f32.mrb[0].mxu0
    %v896 = vadd.f32 %v596, %v895
    %v897 = vpop.f32.mrb[0].mxu0
    %v898 = vadd.f32 %v592, %v897
    %v899 = vpop.f32.mrb[0].mxu0
    %v900 = vadd.f32 %v596, %v899
    %901 = vmatprep.mubr.bf16.mxu0 %v547
    %902 = vmatmul.mubr.bf16.gmra.mrb[0].mxu0 %v546
    %v903 = vpop.f32.mrb[0].mxu0
    %v904 = vadd.f32 %v592, %v903
    %v905 = vpop.f32.mrb[0].mxu0
    %v906 = vadd.f32 %v596, %v905
    %v907 = vpop.f32.mrb[0].mxu0
    %v908 = vadd.f32 %v592, %v907
    %v909 = vpop.f32.mrb[0].mxu0
    %v910 = vadd.f32 %v596, %v909
    %911 = vmatprep.mubr.bf16.mxu0 %v549
    %912 = vmatmul.mubr.bf16.gmra.mrb[0].mxu0 %v548
    %v913 = vpop.f32.mrb[0].mxu0
    %v914 = vadd.f32 %v592, %v913
    %v915 = vpop.f32.mrb[0].mxu0
    %v916 = vadd.f32 %v596, %v915
    %v917 = vpop.f32.mrb[0].mxu0
    %v918 = vadd.f32 %v592, %v917
    %v919 = vpop.f32.mrb[0].mxu0
    %v920 = vadd.f32 %v596, %v919
    %921 = vmatprep.mubr.bf16.mxu0 %v551
    %922 = vmatmul.mubr.bf16.gmra.mrb[0].mxu0 %v550
    %v923 = vpop.f32.mrb[0].mxu0
    %v924 = vadd.f32 %v592, %v923
    %v925 = vpop.f32.mrb[0].mxu0
    %v926 = vadd.f32 %v596, %v925
    %v927 = vpop.f32.mrb[0].mxu0
    %v928 = vadd.f32 %v592, %v927
    %v929 = vpop.f32.mrb[0].mxu0
    %v930 = vadd.f32 %v596, %v929
    %931 = vmatprep.mubr.bf16.mxu0 %v553
    %932 = vmatmul.mubr.bf16.gmra.mrb[0].mxu0 %v552
    %v933 = vpop.f32.mrb[0].mxu0
    %v934 = vadd.f32 %v592, %v933
    %v935 = vpop.f32.mrb[0].mxu0
    %v936 = vadd.f32 %v596, %v935
    %v937 = vpop.f32.mrb[0].mxu0
    %v938 = vadd.f32 %v592, %v937
    %v939 = vpop.f32.mrb[0].mxu0
    %v940 = vadd.f32 %v596, %v939
    %941 = vmatprep.mubr.bf16.mxu0 %v555
    %942 = vmatmul.mubr.bf16.gmra.mrb[0].mxu0 %v554
    %v943 = vpop.f32.mrb[0].mxu0
    %v944 = vadd.f32 %v592, %v943
    %v945 = vpop.f32.mrb[0].mxu0
    %v946 = vadd.f32 %v596, %v945
    %v947 = vpop.f32.mrb[0].mxu0
    %v948 = vadd.f32 %v592, %v947
    %v949 = vpop.f32.mrb[0].mxu0
    %v950 = vadd.f32 %v596, %v949
    %951 = vdwg.mxu0
    %v952 = vtanh.pop %v794
    %v953 = vtanh.pop %v798
    %v954 = vtanh.pop %v804
    %v955 = vtanh.pop %v808
    %v956 = vtanh.pop %v814
    %v957 = vtanh.pop %v818
    %v958 = vtanh.pop %v824
    %v959 = vtanh.pop %v828
    %v960 = vtanh.pop %v834
    %v961 = vtanh.pop %v838
    %v962 = vtanh.pop %v844
    %v963 = vtanh.pop %v848
    %v964 = vtanh.pop %v854
    %v965 = vtanh.pop %v858
    %v966 = vtanh.pop %v864
    %v967 = vtanh.pop %v868
    %v968 = vtanh.pop %v874
    %v969 = vtanh.pop %v878
    %v970 = vtanh.pop %v884
    %v971 = vtanh.pop %v888
    %v972 = vtanh.pop %v894
    %v973 = vtanh.pop %v898
    %v974 = vtanh.pop %v904
    %v975 = vtanh.pop %v908
    %v976 = vtanh.pop %v914
    %v977 = vtanh.pop %v918
    %v978 = vtanh.pop %v924
    %v979 = vtanh.pop %v928
    %v980 = vtanh.pop %v934
    %v981 = vtanh.pop %v938
    %v982 = vtanh.pop %v944
    %v983 = vtanh.pop %v948
    %v984 = vmul.f32 %v952, 1.442695
    %v985 = vpow.pop %v984
    %v986 = vmul.f32 %v953, 1.442695
    %v987 = vpow.pop %v986
    %v988 = vmul.f32 %v954, 1.442695
    %v989 = vpow.pop %v988
    %v990 = vmul.f32 %v955, 1.442695
    %v991 = vpow.pop %v990
    %v992 = vmul.f32 %v956, 1.442695
    %v993 = vpow.pop %v992
    %v994 = vmul.f32 %v957, 1.442695
    %v995 = vpow.pop %v994
    %v996 = vmul.f32 %v958, 1.442695
    %v997 = vpow.pop %v996
    %v998 = vmul.f32 %v959, 1.442695
    %v999 = vpow.pop %v998
    %v1000 = vmul.f32 %v960, 1.442695
    %v1001 = vpow.pop %v1000
    %v1002 = vmul.f32 %v961, 1.442695
    %v1003 = vpow.pop %v1002
    %v1004 = vmul.f32 %v962, 1.442695
    %v1005 = vpow.pop %v1004
    %v1006 = vmul.f32 %v963, 1.442695
    %v1007 = vpow.pop %v1006
    %v1008 = vmul.f32 %v964, 1.442695
    %v1009 = vpow.pop %v1008
    %v1010 = vmul.f32 %v965, 1.442695
    %v1011 = vpow.pop %v1010
    %v1012 = vmul.f32 %v966, 1.442695
    %v1013 = vpow.pop %v1012
    %v1014 = vmul.f32 %v967, 1.442695
    %v1015 = vpow.pop %v1014
    %v1016 = vmul.f32 %v968, 1.442695
    %v1017 = vpow.pop %v1016
    %v1018 = vmul.f32 %v969, 1.442695
    %v1019 = vpow.pop %v1018
    %v1020 = vmul.f32 %v970, 1.442695
    %v1021 = vpow.pop %v1020
    %v1022 = vmul.f32 %v971, 1.442695
    %v1023 = vpow.pop %v1022
    %v1024 = vmul.f32 %v972, 1.442695
    %v1025 = vpow.pop %v1024
    %v1026 = vmul.f32 %v973, 1.442695
    %v1027 = vpow.pop %v1026
    %v1028 = vmul.f32 %v974, 1.442695
    %v1029 = vpow.pop %v1028
    %v1030 = vmul.f32 %v975, 1.442695
    %v1031 = vpow.pop %v1030
    %v1032 = vmul.f32 %v976, 1.442695
    %v1033 = vpow.pop %v1032
    %v1034 = vmul.f32 %v977, 1.442695
    %v1035 = vpow.pop %v1034
    %v1036 = vmul.f32 %v978, 1.442695
    %v1037 = vpow.pop %v1036
    %v1038 = vmul.f32 %v979, 1.442695
    %v1039 = vpow.pop %v1038
    %v1040 = vmul.f32 %v980, 1.442695
    %v1041 = vpow.pop %v1040
    %v1042 = vmul.f32 %v981, 1.442695
    %v1043 = vpow.pop %v1042
    %v1044 = vmul.f32 %v982, 1.442695
    %v1045 = vpow.pop %v1044
    %v1046 = vmul.f32 %v983, 1.442695
    %v1047 = vpow.pop %v1046
    %v1048 = vmul.f32 %v110, %v985
    %v1049 = vmul.f32 %v111, %v987
    %v1050 = vmul.f32 %v112, %v989
    %v1051 = vmul.f32 %v113, %v991
    %v1052 = vmul.f32 %v114, %v993
    %v1053 = vmul.f32 %v115, %v995
    %v1054 = vmul.f32 %v116, %v997
    %v1055 = vmul.f32 %v117, %v999
    %v1056 = vmul.f32 %v118, %v1001
    %v1057 = vmul.f32 %v119, %v1003
    %v1058 = vmul.f32 %v120, %v1005
    %v1059 = vmul.f32 %v121, %v1007
    %v1060 = vmul.f32 %v122, %v1009
    %v1061 = vmul.f32 %v123, %v1011
    %v1062 = vmul.f32 %v124, %v1013
    %v1063 = vmul.f32 %v125, %v1015
    %v1064 = vmul.f32 %v126, %v1017
    %v1065 = vmul.f32 %v127, %v1019
    %v1066 = vmul.f32 %v128, %v1021
    %v1067 = vmul.f32 %v129, %v1023
    %v1068 = vmul.f32 %v130, %v1025
    %v1069 = vmul.f32 %v131, %v1027
    %v1070 = vmul.f32 %v132, %v1029
    %v1071 = vmul.f32 %v133, %v1031
    %v1072 = vmul.f32 %v134, %v1033
    %v1073 = vmul.f32 %v135, %v1035
    %v1074 = vmul.f32 %v136, %v1037
    %v1075 = vmul.f32 %v137, %v1039
    %v1076 = vmul.f32 %v138, %v1041
    %v1077 = vmul.f32 %v139, %v1043
    %v1078 = vmul.f32 %v140, %v1045
    %v1079 = vmul.f32 %v141, %v1047
    %v1080 = vadd.f32 %v1048, %v796
    %v1081 = vadd.f32 %v1049, %v800
    %v1082 = vadd.f32 %v1050, %v806
    %v1083 = vadd.f32 %v1051, %v810
    %v1084 = vadd.f32 %v1052, %v816
    %v1085 = vadd.f32 %v1053, %v820
    %v1086 = vadd.f32 %v1054, %v826
    %v1087 = vadd.f32 %v1055, %v830
    %v1088 = vadd.f32 %v1056, %v836
    %v1089 = vadd.f32 %v1057, %v840
    %v1090 = vadd.f32 %v1058, %v846
    %v1091 = vadd.f32 %v1059, %v850
    %v1092 = vadd.f32 %v1060, %v856
    %v1093 = vadd.f32 %v1061, %v860
    %v1094 = vadd.f32 %v1062, %v866
    %v1095 = vadd.f32 %v1063, %v870
    %v1096 = vadd.f32 %v1064, %v876
    %v1097 = vadd.f32 %v1065, %v880
    %v1098 = vadd.f32 %v1066, %v886
    %v1099 = vadd.f32 %v1067, %v890
    %v1100 = vadd.f32 %v1068, %v896
    %v1101 = vadd.f32 %v1069, %v900
    %v1102 = vadd.f32 %v1070, %v906
    %v1103 = vadd.f32 %v1071, %v910
    %v1104 = vadd.f32 %v1072, %v916
    %v1105 = vadd.f32 %v1073, %v920
    %v1106 = vadd.f32 %v1074, %v926
    %v1107 = vadd.f32 %v1075, %v930
    %v1108 = vadd.f32 %v1076, %v936
    %v1109 = vadd.f32 %v1077, %v940
    %v1110 = vadd.f32 %v1078, %v946
    %v1111 = vadd.f32 %v1079, %v950
    %1112 = vadd.xlane.f32.xlu0 %v952
    %v1113 = vpop.xlane.xlu0 %1112
    %1114 = vadd.xlane.f32.xlu0 %v953
    %v1115 = vpop.xlane.xlu0 %1114
    %1116 = vadd.xlane.f32.xlu0 %v954
    %v1117 = vpop.xlane.xlu0 %1116
    %1118 = vadd.xlane.f32.xlu0 %v955
    %v1119 = vpop.xlane.xlu0 %1118
    %1120 = vadd.xlane.f32.xlu0 %v956
    %v1121 = vpop.xlane.xlu0 %1120
    %1122 = vadd.xlane.f32.xlu0 %v957
    %v1123 = vpop.xlane.xlu0 %1122
    %1124 = vadd.xlane.f32.xlu0 %v958
    %v1125 = vpop.xlane.xlu0 %1124
    %1126 = vadd.xlane.f32.xlu0 %v959
    %v1127 = vpop.xlane.xlu0 %1126
    %1128 = vadd.xlane.f32.xlu0 %v960
    %v1129 = vpop.xlane.xlu0 %1128
    %1130 = vadd.xlane.f32.xlu0 %v961
    %v1131 = vpop.xlane.xlu0 %1130
    %1132 = vadd.xlane.f32.xlu0 %v962
    %v1133 = vpop.xlane.xlu0 %1132
    %1134 = vadd.xlane.f32.xlu0 %v963
    %v1135 = vpop.xlane.xlu0 %1134
    %1136 = vadd.xlane.f32.xlu0 %v964
    %v1137 = vpop.xlane.xlu0 %1136
    %1138 = vadd.xlane.f32.xlu0 %v965
    %v1139 = vpop.xlane.xlu0 %1138
    %1140 = vadd.xlane.f32.xlu0 %v966
    %v1141 = vpop.xlane.xlu0 %1140
    %1142 = vadd.xlane.f32.xlu0 %v967
    %v1143 = vpop.xlane.xlu0 %1142
    %1144 = vadd.xlane.f32.xlu0 %v968
    %v1145 = vpop.xlane.xlu0 %1144
    %1146 = vadd.xlane.f32.xlu0 %v969
    %v1147 = vpop.xlane.xlu0 %1146
    %1148 = vadd.xlane.f32.xlu0 %v970
    %v1149 = vpop.xlane.xlu0 %1148
    %1150 = vadd.xlane.f32.xlu0 %v971
    %v1151 = vpop.xlane.xlu0 %1150
    %1152 = vadd.xlane.f32.xlu0 %v972
    %v1153 = vpop.xlane.xlu0 %1152
    %1154 = vadd.xlane.f32.xlu0 %v973
    %v1155 = vpop.xlane.xlu0 %1154
    %1156 = vadd.xlane.f32.xlu0 %v974
    %v1157 = vpop.xlane.xlu0 %1156
    %1158 = vadd.xlane.f32.xlu0 %v975
    %v1159 = vpop.xlane.xlu0 %1158
    %1160 = vadd.xlane.f32.xlu0 %v976
    %v1161 = vpop.xlane.xlu0 %1160
    %1162 = vadd.xlane.f32.xlu0 %v977
    %v1163 = vpop.xlane.xlu0 %1162
    %1164 = vadd.xlane.f32.xlu0 %v978
    %v1165 = vpop.xlane.xlu0 %1164
    %1166 = vadd.xlane.f32.xlu0 %v979
    %v1167 = vpop.xlane.xlu0 %1166
    %1168 = vadd.xlane.f32.xlu0 %v980
    %v1169 = vpop.xlane.xlu0 %1168
    %1170 = vadd.xlane.f32.xlu0 %v981
    %v1171 = vpop.xlane.xlu0 %1170
    %1172 = vadd.xlane.f32.xlu0 %v982
    %v1173 = vpop.xlane.xlu0 %1172
    %1174 = vadd.xlane.f32.xlu0 %v983
    %v1175 = vpop.xlane.xlu0 %1174
    %v1176 = vadd.f32 %v1113, 0.0
    %v1177 = vadd.f32 %v1115, 0.0
    %v1178 = vadd.f32 %v1117, 0.0
    %v1179 = vadd.f32 %v1119, 0.0
    %v1180 = vadd.f32 %v1121, 0.0
    %v1181 = vadd.f32 %v1123, 0.0
    %v1182 = vadd.f32 %v1125, 0.0
    %v1183 = vadd.f32 %v1127, 0.0
    %v1184 = vadd.f32 %v1129, 0.0
    %v1185 = vadd.f32 %v1131, 0.0
    %v1186 = vadd.f32 %v1133, 0.0
    %v1187 = vadd.f32 %v1135, 0.0
    %v1188 = vadd.f32 %v1137, 0.0
    %v1189 = vadd.f32 %v1139, 0.0
    %v1190 = vadd.f32 %v1141, 0.0
    %v1191 = vadd.f32 %v1143, 0.0
    %v1192 = vadd.f32 %v1145, 0.0
    %v1193 = vadd.f32 %v1147, 0.0
    %v1194 = vadd.f32 %v1149, 0.0
    %v1195 = vadd.f32 %v1151, 0.0
    %v1196 = vadd.f32 %v1153, 0.0
    %v1197 = vadd.f32 %v1155, 0.0
    %v1198 = vadd.f32 %v1157, 0.0
    %v1199 = vadd.f32 %v1159, 0.0
    %v1200 = vadd.f32 %v1161, 0.0
    %v1201 = vadd.f32 %v1163, 0.0
    %v1202 = vadd.f32 %v1165, 0.0
    %v1203 = vadd.f32 %v1167, 0.0
    %v1204 = vadd.f32 %v1169, 0.0
    %v1205 = vadd.f32 %v1171, 0.0
    %v1206 = vadd.f32 %v1173, 0.0
    %v1207 = vadd.f32 %v1175, 0.0
    %s1208 = scalar_lea.vmem [#allocation7], 1
    %v1209 = vld [vmem:[%s1208] ss:$4 sm:$0x3]
    %s1210 = scalar_lea.vmem %s4, 1
    %v1211 = vld [vmem:[%s1210] ss:$4 sm:$0x3]
    %v1212 = vpack.c.bf16 %v1081, %v1080
    %v1213 = vpack.c.bf16 %v1083, %v1082
    %v1214 = vpack.c.bf16 %v1085, %v1084
    %v1215 = vpack.c.bf16 %v1087, %v1086
    %v1216 = vpack.c.bf16 %v1089, %v1088
    %v1217 = vpack.c.bf16 %v1091, %v1090
    %v1218 = vpack.c.bf16 %v1093, %v1092
    %v1219 = vpack.c.bf16 %v1095, %v1094
    %v1220 = vpack.c.bf16 %v1097, %v1096
    %v1221 = vpack.c.bf16 %v1099, %v1098
    %v1222 = vpack.c.bf16 %v1101, %v1100
    %v1223 = vpack.c.bf16 %v1103, %v1102
    %v1224 = vpack.c.bf16 %v1105, %v1104
    %v1225 = vpack.c.bf16 %v1107, %v1106
    %v1226 = vpack.c.bf16 %v1109, %v1108
    %v1227 = vpack.c.bf16 %v1111, %v1110
    %s1228 = scalar_lea.vmem [#allocation5], 128
    %v1229 = vld [vmem:[%s1228] sm:$0xff]
    %v1230 = vld [vmem:[%s1228 + $0x8] sm:$0xff]
    %v1231 = vld [vmem:[%s1228 + $0x10] sm:$0xff]
    %v1232 = vld [vmem:[%s1228 + $0x18] sm:$0xff]
    %v1233 = vld [vmem:[%s1228 + $0x20] sm:$0xff]
    %v1234 = vld [vmem:[%s1228 + $0x28] sm:$0xff]
    %v1235 = vld [vmem:[%s1228 + $0x30] sm:$0xff]
    %v1236 = vld [vmem:[%s1228 + $0x38] sm:$0xff]
    %v1237 = vld [vmem:[%s1228 + $0x40] sm:$0xff]
    %v1238 = vld [vmem:[%s1228 + $0x48] sm:$0xff]
    %v1239 = vld [vmem:[%s1228 + $0x50] sm:$0xff]
    %v1240 = vld [vmem:[%s1228 + $0x58] sm:$0xff]
    %v1241 = vld [vmem:[%s1228 + $0x60] sm:$0xff]
    %v1242 = vld [vmem:[%s1228 + $0x68] sm:$0xff]
    %v1243 = vld [vmem:[%s1228 + $0x70] sm:$0xff]
    %v1244 = vld [vmem:[%s1228 + $0x78] sm:$0xff]
    %v1246 = vlaneseq
    %v1247 = vshrl.u32 %v1246, 7
    %v1248 = vsub.s32 0, %v1247
    %v1249 = vrot.slane %v1209, %v1248
    %v1250 = vlaneseq
    %v1251 = vshrl.u32 %v1250, 7
    %v1252 = vsub.s32 1, %v1251
    %v1253 = vrot.slane %v1209, %v1252
    %v1272 = vunpack.c.l.b16 %v1229
    %v1273 = vunpack.c.h.b16 %v1229
    %v1274 = vunpack.c.l.b16 %v1230
    %v1275 = vunpack.c.h.b16 %v1230
    %v1276 = vunpack.c.l.b16 %v1231
    %v1277 = vunpack.c.h.b16 %v1231
    %v1278 = vunpack.c.l.b16 %v1232
    %v1279 = vunpack.c.h.b16 %v1232
    %v1280 = vunpack.c.l.b16 %v1233
    %v1281 = vunpack.c.h.b16 %v1233
    %v1282 = vunpack.c.l.b16 %v1234
    %v1283 = vunpack.c.h.b16 %v1234
    %v1284 = vunpack.c.l.b16 %v1235
    %v1285 = vunpack.c.h.b16 %v1235
    %v1286 = vunpack.c.l.b16 %v1236
    %v1287 = vunpack.c.h.b16 %v1236
    %v1288 = vunpack.c.l.b16 %v1237
    %v1289 = vunpack.c.h.b16 %v1237
    %v1290 = vunpack.c.l.b16 %v1238
    %v1291 = vunpack.c.h.b16 %v1238
    %v1292 = vunpack.c.l.b16 %v1239
    %v1293 = vunpack.c.h.b16 %v1239
    %v1294 = vunpack.c.l.b16 %v1240
    %v1295 = vunpack.c.h.b16 %v1240
    %v1296 = vunpack.c.l.b16 %v1241
    %v1297 = vunpack.c.h.b16 %v1241
    %v1298 = vunpack.c.l.b16 %v1242
    %v1299 = vunpack.c.h.b16 %v1242
    %v1300 = vunpack.c.l.b16 %v1243
    %v1301 = vunpack.c.h.b16 %v1243
    %v1302 = vunpack.c.l.b16 %v1244
    %v1303 = vunpack.c.h.b16 %v1244
    %v1304 = vpack.c.b16 %v1274, %v1272
    %v1305 = vpack.c.b16 %v1275, %v1273
    %v1306 = vpack.c.b16 %v1278, %v1276
    %v1307 = vpack.c.b16 %v1279, %v1277
    %v1308 = vpack.c.b16 %v1282, %v1280
    %v1309 = vpack.c.b16 %v1283, %v1281
    %v1310 = vpack.c.b16 %v1286, %v1284
    %v1311 = vpack.c.b16 %v1287, %v1285
    %v1312 = vpack.c.b16 %v1290, %v1288
    %v1313 = vpack.c.b16 %v1291, %v1289
    %v1314 = vpack.c.b16 %v1294, %v1292
    %v1315 = vpack.c.b16 %v1295, %v1293
    %v1316 = vpack.c.b16 %v1298, %v1296
    %v1317 = vpack.c.b16 %v1299, %v1297
    %v1318 = vpack.c.b16 %v1302, %v1300
    %v1319 = vpack.c.b16 %v1303, %v1301
    %1336 = vmatprep.subr.bf16.mxu0 %v1305
    %1337 = vmatpush1.bf16.msra.mxu0 %v1304
    %1338 = vmatprep.subr.bf16.mxu0 %v1307
    %1339 = vmatpush1.bf16.msra.mxu0 %v1306
    %1340 = vmatprep.subr.bf16.mxu0 %v1309
    %1341 = vmatpush1.bf16.msra.mxu0 %v1308
    %1342 = vmatprep.subr.bf16.mxu0 %v1311
    %1343 = vmatpush1.bf16.msra.mxu0 %v1310
    %1344 = vmatprep.subr.bf16.mxu0 %v1313
    %1345 = vmatpush1.bf16.msra.mxu0 %v1312
    %1346 = vmatprep.subr.bf16.mxu0 %v1315
    %1347 = vmatpush1.bf16.msra.mxu0 %v1314
    %1348 = vmatprep.subr.bf16.mxu0 %v1317
    %1349 = vmatpush1.bf16.msra.mxu0 %v1316
    %1350 = vmatprep.subr.bf16.mxu0 %v1319
    %1351 = vmatpush1.bf16.msra.mxu0 %v1318
    %1352 = vmatprep.subr.bf16.mxu0 0
    %1353 = vmatpush1.bf16.msra.mxu0 0
    %1354 = vmatprep.subr.bf16.mxu0 0
    %1355 = vmatpush1.bf16.msra.mxu0 0
    %1356 = vmatprep.subr.bf16.mxu0 0
    %1357 = vmatpush1.bf16.msra.mxu0 0
    %1358 = vmatprep.subr.bf16.mxu0 0
    %1359 = vmatpush1.bf16.msra.mxu0 0
    %1360 = vmatprep.subr.bf16.mxu0 0
    %1361 = vmatpush1.bf16.msra.mxu0 0
    %1362 = vmatprep.subr.bf16.mxu0 0
    %1363 = vmatpush1.bf16.msra.mxu0 0
    %1364 = vmatprep.subr.bf16.mxu0 0
    %1365 = vmatpush1.bf16.msra.mxu0 0
    %1366 = vmatprep.subr.bf16.mxu0 0
    %1367 = vmatpush1.bf16.msra.mxu0 0
    %1368 = vmatprep.mubr.bf16.mxu0 0
    %1369 = vmatmul.mubr.bf16.gmra.mrb[0].mxu0 %v1212
    %v1370 = vpop.f32.mrb[0].mxu0
    %v1371 = vadd.f32 %v1249, %v1370
    %v1372 = vpop.f32.mrb[0].mxu0
    %v1373 = vadd.f32 %v1253, %v1372
    %v1374 = vpop.f32.mrb[0].mxu0
    %v1375 = vadd.f32 %v1249, %v1374
    %v1376 = vpop.f32.mrb[0].mxu0
    %v1377 = vadd.f32 %v1253, %v1376
    %1378 = vmatprep.mubr.bf16.mxu0 0
    %1379 = vmatmul.mubr.bf16.gmra.mrb[0].mxu0 %v1213
    %v1380 = vpop.f32.mrb[0].mxu0
    %v1381 = vadd.f32 %v1249, %v1380
    %v1382 = vpop.f32.mrb[0].mxu0
    %v1383 = vadd.f32 %v1253, %v1382
    %v1384 = vpop.f32.mrb[0].mxu0
    %v1385 = vadd.f32 %v1249, %v1384
    %v1386 = vpop.f32.mrb[0].mxu0
    %v1387 = vadd.f32 %v1253, %v1386
    %1388 = vmatprep.mubr.bf16.mxu0 0
    %1389 = vmatmul.mubr.bf16.gmra.mrb[0].mxu0 %v1214
    %v1390 = vpop.f32.mrb[0].mxu0
    %v1391 = vadd.f32 %v1249, %v1390
    %v1392 = vpop.f32.mrb[0].mxu0
    %v1393 = vadd.f32 %v1253, %v1392
    %v1394 = vpop.f32.mrb[0].mxu0
    %v1395 = vadd.f32 %v1249, %v1394
    %v1396 = vpop.f32.mrb[0].mxu0
    %v1397 = vadd.f32 %v1253, %v1396
    %1398 = vmatprep.mubr.bf16.mxu0 0
    %1399 = vmatmul.mubr.bf16.gmra.mrb[0].mxu0 %v1215
    %v1400 = vpop.f32.mrb[0].mxu0
    %v1401 = vadd.f32 %v1249, %v1400
    %v1402 = vpop.f32.mrb[0].mxu0
    %v1403 = vadd.f32 %v1253, %v1402
    %v1404 = vpop.f32.mrb[0].mxu0
    %v1405 = vadd.f32 %v1249, %v1404
    %v1406 = vpop.f32.mrb[0].mxu0
    %v1407 = vadd.f32 %v1253, %v1406
    %1408 = vmatprep.mubr.bf16.mxu0 0
    %1409 = vmatmul.mubr.bf16.gmra.mrb[0].mxu0 %v1216
    %v1410 = vpop.f32.mrb[0].mxu0
    %v1411 = vadd.f32 %v1249, %v1410
    %v1412 = vpop.f32.mrb[0].mxu0
    %v1413 = vadd.f32 %v1253, %v1412
    %v1414 = vpop.f32.mrb[0].mxu0
    %v1415 = vadd.f32 %v1249, %v1414
    %v1416 = vpop.f32.mrb[0].mxu0
    %v1417 = vadd.f32 %v1253, %v1416
    %1418 = vmatprep.mubr.bf16.mxu0 0
    %1419 = vmatmul.mubr.bf16.gmra.mrb[0].mxu0 %v1217
    %v1420 = vpop.f32.mrb[0].mxu0
    %v1421 = vadd.f32 %v1249, %v1420
    %v1422 = vpop.f32.mrb[0].mxu0
    %v1423 = vadd.f32 %v1253, %v1422
    %v1424 = vpop.f32.mrb[0].mxu0
    %v1425 = vadd.f32 %v1249, %v1424
    %v1426 = vpop.f32.mrb[0].mxu0
    %v1427 = vadd.f32 %v1253, %v1426
    %1428 = vmatprep.mubr.bf16.mxu0 0
    %1429 = vmatmul.mubr.bf16.gmra.mrb[0].mxu0 %v1218
    %v1430 = vpop.f32.mrb[0].mxu0
    %v1431 = vadd.f32 %v1249, %v1430
    %v1432 = vpop.f32.mrb[0].mxu0
    %v1433 = vadd.f32 %v1253, %v1432
    %v1434 = vpop.f32.mrb[0].mxu0
    %v1435 = vadd.f32 %v1249, %v1434
    %v1436 = vpop.f32.mrb[0].mxu0
    %v1437 = vadd.f32 %v1253, %v1436
    %1438 = vmatprep.mubr.bf16.mxu0 0
    %1439 = vmatmul.mubr.bf16.gmra.mrb[0].mxu0 %v1219
    %v1440 = vpop.f32.mrb[0].mxu0
    %v1441 = vadd.f32 %v1249, %v1440
    %v1442 = vpop.f32.mrb[0].mxu0
    %v1443 = vadd.f32 %v1253, %v1442
    %v1444 = vpop.f32.mrb[0].mxu0
    %v1445 = vadd.f32 %v1249, %v1444
    %v1446 = vpop.f32.mrb[0].mxu0
    %v1447 = vadd.f32 %v1253, %v1446
    %1448 = vmatprep.mubr.bf16.mxu0 0
    %1449 = vmatmul.mubr.bf16.gmra.mrb[0].mxu0 %v1220
    %v1450 = vpop.f32.mrb[0].mxu0
    %v1451 = vadd.f32 %v1249, %v1450
    %v1452 = vpop.f32.mrb[0].mxu0
    %v1453 = vadd.f32 %v1253, %v1452
    %v1454 = vpop.f32.mrb[0].mxu0
    %v1455 = vadd.f32 %v1249, %v1454
    %v1456 = vpop.f32.mrb[0].mxu0
    %v1457 = vadd.f32 %v1253, %v1456
    %1458 = vmatprep.mubr.bf16.mxu0 0
    %1459 = vmatmul.mubr.bf16.gmra.mrb[0].mxu0 %v1221
    %v1460 = vpop.f32.mrb[0].mxu0
    %v1461 = vadd.f32 %v1249, %v1460
    %v1462 = vpop.f32.mrb[0].mxu0
    %v1463 = vadd.f32 %v1253, %v1462
    %v1464 = vpop.f32.mrb[0].mxu0
    %v1465 = vadd.f32 %v1249, %v1464
    %v1466 = vpop.f32.mrb[0].mxu0
    %v1467 = vadd.f32 %v1253, %v1466
    %1468 = vmatprep.mubr.bf16.mxu0 0
    %1469 = vmatmul.mubr.bf16.gmra.mrb[0].mxu0 %v1222
    %v1470 = vpop.f32.mrb[0].mxu0
    %v1471 = vadd.f32 %v1249, %v1470
    %v1472 = vpop.f32.mrb[0].mxu0
    %v1473 = vadd.f32 %v1253, %v1472
    %v1474 = vpop.f32.mrb[0].mxu0
    %v1475 = vadd.f32 %v1249, %v1474
    %v1476 = vpop.f32.mrb[0].mxu0
    %v1477 = vadd.f32 %v1253, %v1476
    %1478 = vmatprep.mubr.bf16.mxu0 0
    %1479 = vmatmul.mubr.bf16.gmra.mrb[0].mxu0 %v1223
    %v1480 = vpop.f32.mrb[0].mxu0
    %v1481 = vadd.f32 %v1249, %v1480
    %v1482 = vpop.f32.mrb[0].mxu0
    %v1483 = vadd.f32 %v1253, %v1482
    %v1484 = vpop.f32.mrb[0].mxu0
    %v1485 = vadd.f32 %v1249, %v1484
    %v1486 = vpop.f32.mrb[0].mxu0
    %v1487 = vadd.f32 %v1253, %v1486
    %1488 = vmatprep.mubr.bf16.mxu0 0
    %1489 = vmatmul.mubr.bf16.gmra.mrb[0].mxu0 %v1224
    %v1490 = vpop.f32.mrb[0].mxu0
    %v1491 = vadd.f32 %v1249, %v1490
    %v1492 = vpop.f32.mrb[0].mxu0
    %v1493 = vadd.f32 %v1253, %v1492
    %v1494 = vpop.f32.mrb[0].mxu0
    %v1495 = vadd.f32 %v1249, %v1494
    %v1496 = vpop.f32.mrb[0].mxu0
    %v1497 = vadd.f32 %v1253, %v1496
    %1498 = vmatprep.mubr.bf16.mxu0 0
    %1499 = vmatmul.mubr.bf16.gmra.mrb[0].mxu0 %v1225
    %v1500 = vpop.f32.mrb[0].mxu0
    %v1501 = vadd.f32 %v1249, %v1500
    %v1502 = vpop.f32.mrb[0].mxu0
    %v1503 = vadd.f32 %v1253, %v1502
    %v1504 = vpop.f32.mrb[0].mxu0
    %v1505 = vadd.f32 %v1249, %v1504
    %v1506 = vpop.f32.mrb[0].mxu0
    %v1507 = vadd.f32 %v1253, %v1506
    %1508 = vmatprep.mubr.bf16.mxu0 0
    %1509 = vmatmul.mubr.bf16.gmra.mrb[0].mxu0 %v1226
    %v1510 = vpop.f32.mrb[0].mxu0
    %v1511 = vadd.f32 %v1249, %v1510
    %v1512 = vpop.f32.mrb[0].mxu0
    %v1513 = vadd.f32 %v1253, %v1512
    %v1514 = vpop.f32.mrb[0].mxu0
    %v1515 = vadd.f32 %v1249, %v1514
    %v1516 = vpop.f32.mrb[0].mxu0
    %v1517 = vadd.f32 %v1253, %v1516
    %1518 = vmatprep.mubr.bf16.mxu0 0
    %1519 = vmatmul.mubr.bf16.gmra.mrb[0].mxu0 %v1227
    %v1520 = vpop.f32.mrb[0].mxu0
    %v1521 = vadd.f32 %v1249, %v1520
    %v1522 = vpop.f32.mrb[0].mxu0
    %v1523 = vadd.f32 %v1253, %v1522
    %v1524 = vpop.f32.mrb[0].mxu0
    %v1525 = vadd.f32 %v1249, %v1524
    %v1526 = vpop.f32.mrb[0].mxu0
    %v1527 = vadd.f32 %v1253, %v1526
    %1528 = vdwg.mxu0
    %v1529 = vmax.f32 %v1371, 0.0
    %v1530 = vmax.f32 %v1373, 0.0
    %v1531 = vmax.f32 %v1375, 0.0
    %v1532 = vmax.f32 %v1377, 0.0
    %v1533 = vmax.f32 %v1381, 0.0
    %v1534 = vmax.f32 %v1383, 0.0
    %v1535 = vmax.f32 %v1385, 0.0
    %v1536 = vmax.f32 %v1387, 0.0
    %v1537 = vmax.f32 %v1391, 0.0
    %v1538 = vmax.f32 %v1393, 0.0
    %v1539 = vmax.f32 %v1395, 0.0
    %v1540 = vmax.f32 %v1397, 0.0
    %v1541 = vmax.f32 %v1401, 0.0
    %v1542 = vmax.f32 %v1403, 0.0
    %v1543 = vmax.f32 %v1405, 0.0
    %v1544 = vmax.f32 %v1407, 0.0
    %v1545 = vmax.f32 %v1411, 0.0
    %v1546 = vmax.f32 %v1413, 0.0
    %v1547 = vmax.f32 %v1415, 0.0
    %v1548 = vmax.f32 %v1417, 0.0
    %v1549 = vmax.f32 %v1421, 0.0
    %v1550 = vmax.f32 %v1423, 0.0
    %v1551 = vmax.f32 %v1425, 0.0
    %v1552 = vmax.f32 %v1427, 0.0
    %v1553 = vmax.f32 %v1431, 0.0
    %v1554 = vmax.f32 %v1433, 0.0
    %v1555 = vmax.f32 %v1435, 0.0
    %v1556 = vmax.f32 %v1437, 0.0
    %v1557 = vmax.f32 %v1441, 0.0
    %v1558 = vmax.f32 %v1443, 0.0
    %v1559 = vmax.f32 %v1445, 0.0
    %v1560 = vmax.f32 %v1447, 0.0
    %v1561 = vmax.f32 %v1451, 0.0
    %v1562 = vmax.f32 %v1453, 0.0
    %v1563 = vmax.f32 %v1455, 0.0
    %v1564 = vmax.f32 %v1457, 0.0
    %v1565 = vmax.f32 %v1461, 0.0
    %v1566 = vmax.f32 %v1463, 0.0
    %v1567 = vmax.f32 %v1465, 0.0
    %v1568 = vmax.f32 %v1467, 0.0
    %v1569 = vmax.f32 %v1471, 0.0
    %v1570 = vmax.f32 %v1473, 0.0
    %v1571 = vmax.f32 %v1475, 0.0
    %v1572 = vmax.f32 %v1477, 0.0
    %v1573 = vmax.f32 %v1481, 0.0
    %v1574 = vmax.f32 %v1483, 0.0
    %v1575 = vmax.f32 %v1485, 0.0
    %v1576 = vmax.f32 %v1487, 0.0
    %v1577 = vmax.f32 %v1491, 0.0
    %v1578 = vmax.f32 %v1493, 0.0
    %v1579 = vmax.f32 %v1495, 0.0
    %v1580 = vmax.f32 %v1497, 0.0
    %v1581 = vmax.f32 %v1501, 0.0
    %v1582 = vmax.f32 %v1503, 0.0
    %v1583 = vmax.f32 %v1505, 0.0
    %v1584 = vmax.f32 %v1507, 0.0
    %v1585 = vmax.f32 %v1511, 0.0
    %v1586 = vmax.f32 %v1513, 0.0
    %v1587 = vmax.f32 %v1515, 0.0
    %v1588 = vmax.f32 %v1517, 0.0
    %v1589 = vmax.f32 %v1521, 0.0
    %v1590 = vmax.f32 %v1523, 0.0
    %v1591 = vmax.f32 %v1525, 0.0
    %v1592 = vmax.f32 %v1527, 0.0
    %v1593 = vpack.c.bf16 %v1531, %v1529
    %v1594 = vpack.c.bf16 %v1532, %v1530
    %v1595 = vpack.c.bf16 %v1535, %v1533
    %v1596 = vpack.c.bf16 %v1536, %v1534
    %v1597 = vpack.c.bf16 %v1539, %v1537
    %v1598 = vpack.c.bf16 %v1540, %v1538
    %v1599 = vpack.c.bf16 %v1543, %v1541
    %v1600 = vpack.c.bf16 %v1544, %v1542
    %v1601 = vpack.c.bf16 %v1547, %v1545
    %v1602 = vpack.c.bf16 %v1548, %v1546
    %v1603 = vpack.c.bf16 %v1551, %v1549
    %v1604 = vpack.c.bf16 %v1552, %v1550
    %v1605 = vpack.c.bf16 %v1555, %v1553
    %v1606 = vpack.c.bf16 %v1556, %v1554
    %v1607 = vpack.c.bf16 %v1559, %v1557
    %v1608 = vpack.c.bf16 %v1560, %v1558
    %v1609 = vpack.c.bf16 %v1563, %v1561
    %v1610 = vpack.c.bf16 %v1564, %v1562
    %v1611 = vpack.c.bf16 %v1567, %v1565
    %v1612 = vpack.c.bf16 %v1568, %v1566
    %v1613 = vpack.c.bf16 %v1571, %v1569
    %v1614 = vpack.c.bf16 %v1572, %v1570
    %v1615 = vpack.c.bf16 %v1575, %v1573
    %v1616 = vpack.c.bf16 %v1576, %v1574
    %v1617 = vpack.c.bf16 %v1579, %v1577
    %v1618 = vpack.c.bf16 %v1580, %v1578
    %v1619 = vpack.c.bf16 %v1583, %v1581
    %v1620 = vpack.c.bf16 %v1584, %v1582
    %v1621 = vpack.c.bf16 %v1587, %v1585
    %v1622 = vpack.c.bf16 %v1588, %v1586
    %v1623 = vpack.c.bf16 %v1591, %v1589
    %v1624 = vpack.c.bf16 %v1592, %v1590
    %s1625 = scalar_lea.vmem [#allocation8], 256
    %v1626 = vld [vmem:[%s1625] sm:$0xff]
    %v1627 = vld [vmem:[%s1625 + $0x8] sm:$0xff]
    %v1628 = vld [vmem:[%s1625 + $0x10] sm:$0xff]
    %v1629 = vld [vmem:[%s1625 + $0x18] sm:$0xff]
    %v1630 = vld [vmem:[%s1625 + $0x20] sm:$0xff]
    %v1631 = vld [vmem:[%s1625 + $0x28] sm:$0xff]
    %v1632 = vld [vmem:[%s1625 + $0x30] sm:$0xff]
    %v1633 = vld [vmem:[%s1625 + $0x38] sm:$0xff]
    %v1634 = vld [vmem:[%s1625 + $0x40] sm:$0xff]
    %v1635 = vld [vmem:[%s1625 + $0x48] sm:$0xff]
    %v1636 = vld [vmem:[%s1625 + $0x50] sm:$0xff]
    %v1637 = vld [vmem:[%s1625 + $0x58] sm:$0xff]
    %v1638 = vld [vmem:[%s1625 + $0x60] sm:$0xff]
    %v1639 = vld [vmem:[%s1625 + $0x68] sm:$0xff]
    %v1640 = vld [vmem:[%s1625 + $0x70] sm:$0xff]
    %v1641 = vld [vmem:[%s1625 + $0x78] sm:$0xff]
    %v1642 = vld [vmem:[%s1625 + $0x80] sm:$0xff]
    %v1643 = vld [vmem:[%s1625 + $0x88] sm:$0xff]
    %v1644 = vld [vmem:[%s1625 + $0x90] sm:$0xff]
    %v1645 = vld [vmem:[%s1625 + $0x98] sm:$0xff]
    %v1646 = vld [vmem:[%s1625 + $0xa0] sm:$0xff]
    %v1647 = vld [vmem:[%s1625 + $0xa8] sm:$0xff]
    %v1648 = vld [vmem:[%s1625 + $0xb0] sm:$0xff]
    %v1649 = vld [vmem:[%s1625 + $0xb8] sm:$0xff]
    %v1650 = vld [vmem:[%s1625 + $0xc0] sm:$0xff]
    %v1651 = vld [vmem:[%s1625 + $0xc8] sm:$0xff]
    %v1652 = vld [vmem:[%s1625 + $0xd0] sm:$0xff]
    %v1653 = vld [vmem:[%s1625 + $0xd8] sm:$0xff]
    %v1654 = vld [vmem:[%s1625 + $0xe0] sm:$0xff]
    %v1655 = vld [vmem:[%s1625 + $0xe8] sm:$0xff]
    %v1656 = vld [vmem:[%s1625 + $0xf0] sm:$0xff]
    %v1657 = vld [vmem:[%s1625 + $0xf8] sm:$0xff]
    %v1659 = vlaneseq
    %v1660 = vshrl.u32 %v1659, 7
    %v1661 = vsub.s32 0, %v1660
    %v1662 = vrot.slane %v1211, %v1661
    %v1663 = vlaneseq
    %v1664 = vshrl.u32 %v1663, 7
    %v1665 = vsub.s32 1, %v1664
    %v1666 = vrot.slane %v1211, %v1665
    %v1701 = vunpack.c.l.b16 %v1626
    %v1702 = vunpack.c.h.b16 %v1626
    %v1703 = vunpack.c.l.b16 %v1627
    %v1704 = vunpack.c.h.b16 %v1627
    %v1705 = vunpack.c.l.b16 %v1628
    %v1706 = vunpack.c.h.b16 %v1628
    %v1707 = vunpack.c.l.b16 %v1629
    %v1708 = vunpack.c.h.b16 %v1629
    %v1709 = vunpack.c.l.b16 %v1630
    %v1710 = vunpack.c.h.b16 %v1630
    %v1711 = vunpack.c.l.b16 %v1631
    %v1712 = vunpack.c.h.b16 %v1631
    %v1713 = vunpack.c.l.b16 %v1632
    %v1714 = vunpack.c.h.b16 %v1632
    %v1715 = vunpack.c.l.b16 %v1633
    %v1716 = vunpack.c.h.b16 %v1633
    %v1717 = vunpack.c.l.b16 %v1634
    %v1718 = vunpack.c.h.b16 %v1634
    %v1719 = vunpack.c.l.b16 %v1635
    %v1720 = vunpack.c.h.b16 %v1635
    %v1721 = vunpack.c.l.b16 %v1636
    %v1722 = vunpack.c.h.b16 %v1636
    %v1723 = vunpack.c.l.b16 %v1637
    %v1724 = vunpack.c.h.b16 %v1637
    %v1725 = vunpack.c.l.b16 %v1638
    %v1726 = vunpack.c.h.b16 %v1638
    %v1727 = vunpack.c.l.b16 %v1639
    %v1728 = vunpack.c.h.b16 %v1639
    %v1729 = vunpack.c.l.b16 %v1640
    %v1730 = vunpack.c.h.b16 %v1640
    %v1731 = vunpack.c.l.b16 %v1641
    %v1732 = vunpack.c.h.b16 %v1641
    %v1733 = vunpack.c.l.b16 %v1642
    %v1734 = vunpack.c.h.b16 %v1642
    %v1735 = vunpack.c.l.b16 %v1643
    %v1736 = vunpack.c.h.b16 %v1643
    %v1737 = vunpack.c.l.b16 %v1644
    %v1738 = vunpack.c.h.b16 %v1644
    %v1739 = vunpack.c.l.b16 %v1645
    %v1740 = vunpack.c.h.b16 %v1645
    %v1741 = vunpack.c.l.b16 %v1646
    %v1742 = vunpack.c.h.b16 %v1646
    %v1743 = vunpack.c.l.b16 %v1647
    %v1744 = vunpack.c.h.b16 %v1647
    %v1745 = vunpack.c.l.b16 %v1648
    %v1746 = vunpack.c.h.b16 %v1648
    %v1747 = vunpack.c.l.b16 %v1649
    %v1748 = vunpack.c.h.b16 %v1649
    %v1749 = vunpack.c.l.b16 %v1650
    %v1750 = vunpack.c.h.b16 %v1650
    %v1751 = vunpack.c.l.b16 %v1651
    %v1752 = vunpack.c.h.b16 %v1651
    %v1753 = vunpack.c.l.b16 %v1652
    %v1754 = vunpack.c.h.b16 %v1652
    %v1755 = vunpack.c.l.b16 %v1653
    %v1756 = vunpack.c.h.b16 %v1653
    %v1757 = vunpack.c.l.b16 %v1654
    %v1758 = vunpack.c.h.b16 %v1654
    %v1759 = vunpack.c.l.b16 %v1655
    %v1760 = vunpack.c.h.b16 %v1655
    %v1761 = vunpack.c.l.b16 %v1656
    %v1762 = vunpack.c.h.b16 %v1656
    %v1763 = vunpack.c.l.b16 %v1657
    %v1764 = vunpack.c.h.b16 %v1657
    %v1765 = vpack.c.b16 %v1703, %v1701
    %v1766 = vpack.c.b16 %v1704, %v1702
    %v1767 = vpack.c.b16 %v1707, %v1705
    %v1768 = vpack.c.b16 %v1708, %v1706
    %v1769 = vpack.c.b16 %v1711, %v1709
    %v1770 = vpack.c.b16 %v1712, %v1710
    %v1771 = vpack.c.b16 %v1715, %v1713
    %v1772 = vpack.c.b16 %v1716, %v1714
    %v1773 = vpack.c.b16 %v1719, %v1717
    %v1774 = vpack.c.b16 %v1720, %v1718
    %v1775 = vpack.c.b16 %v1723, %v1721
    %v1776 = vpack.c.b16 %v1724, %v1722
    %v1777 = vpack.c.b16 %v1727, %v1725
    %v1778 = vpack.c.b16 %v1728, %v1726
    %v1779 = vpack.c.b16 %v1731, %v1729
    %v1780 = vpack.c.b16 %v1732, %v1730
    %v1781 = vpack.c.b16 %v1735, %v1733
    %v1782 = vpack.c.b16 %v1736, %v1734
    %v1783 = vpack.c.b16 %v1739, %v1737
    %v1784 = vpack.c.b16 %v1740, %v1738
    %v1785 = vpack.c.b16 %v1743, %v1741
    %v1786 = vpack.c.b16 %v1744, %v1742
    %v1787 = vpack.c.b16 %v1747, %v1745
    %v1788 = vpack.c.b16 %v1748, %v1746
    %v1789 = vpack.c.b16 %v1751, %v1749
    %v1790 = vpack.c.b16 %v1752, %v1750
    %v1791 = vpack.c.b16 %v1755, %v1753
    %v1792 = vpack.c.b16 %v1756, %v1754
    %v1793 = vpack.c.b16 %v1759, %v1757
    %v1794 = vpack.c.b16 %v1760, %v1758
    %v1795 = vpack.c.b16 %v1763, %v1761
    %v1796 = vpack.c.b16 %v1764, %v1762
    %1829 = vmatprep.subr.bf16.mxu0 %v1766
    %1830 = vmatpush1.bf16.msra.mxu0 %v1765
    %1831 = vmatprep.subr.bf16.mxu0 %v1768
    %1832 = vmatpush1.bf16.msra.mxu0 %v1767
    %1833 = vmatprep.subr.bf16.mxu0 %v1770
    %1834 = vmatpush1.bf16.msra.mxu0 %v1769
    %1835 = vmatprep.subr.bf16.mxu0 %v1772
    %1836 = vmatpush1.bf16.msra.mxu0 %v1771
    %1837 = vmatprep.subr.bf16.mxu0 %v1774
    %1838 = vmatpush1.bf16.msra.mxu0 %v1773
    %1839 = vmatprep.subr.bf16.mxu0 %v1776
    %1840 = vmatpush1.bf16.msra.mxu0 %v1775
    %1841 = vmatprep.subr.bf16.mxu0 %v1778
    %1842 = vmatpush1.bf16.msra.mxu0 %v1777
    %1843 = vmatprep.subr.bf16.mxu0 %v1780
    %1844 = vmatpush1.bf16.msra.mxu0 %v1779
    %1845 = vmatprep.subr.bf16.mxu0 %v1782
    %1846 = vmatpush1.bf16.msra.mxu0 %v1781
    %1847 = vmatprep.subr.bf16.mxu0 %v1784
    %1848 = vmatpush1.bf16.msra.mxu0 %v1783
    %1849 = vmatprep.subr.bf16.mxu0 %v1786
    %1850 = vmatpush1.bf16.msra.mxu0 %v1785
    %1851 = vmatprep.subr.bf16.mxu0 %v1788
    %1852 = vmatpush1.bf16.msra.mxu0 %v1787
    %1853 = vmatprep.subr.bf16.mxu0 %v1790
    %1854 = vmatpush1.bf16.msra.mxu0 %v1789
    %1855 = vmatprep.subr.bf16.mxu0 %v1792
    %1856 = vmatpush1.bf16.msra.mxu0 %v1791
    %1857 = vmatprep.subr.bf16.mxu0 %v1794
    %1858 = vmatpush1.bf16.msra.mxu0 %v1793
    %1859 = vmatprep.subr.bf16.mxu0 %v1796
    %1860 = vmatpush1.bf16.msra.mxu0 %v1795
    %1861 = vmatprep.mubr.bf16.mxu0 %v1594
    %1862 = vmatmul.mubr.bf16.gmra.mrb[0].mxu0 %v1593
    %v1863 = vpop.f32.mrb[0].mxu0
    %v1864 = vadd.f32 %v1662, %v1863
    %v1865 = vpop.f32.mrb[0].mxu0
    %v1866 = vadd.f32 %v1666, %v1865
    %v1867 = vpop.f32.mrb[0].mxu0
    %v1868 = vadd.f32 %v1662, %v1867
    %v1869 = vpop.f32.mrb[0].mxu0
    %v1870 = vadd.f32 %v1666, %v1869
    %1871 = vmatprep.mubr.bf16.mxu0 %v1596
    %1872 = vmatmul.mubr.bf16.gmra.mrb[0].mxu0 %v1595
    %v1873 = vpop.f32.mrb[0].mxu0
    %v1874 = vadd.f32 %v1662, %v1873
    %v1875 = vpop.f32.mrb[0].mxu0
    %v1876 = vadd.f32 %v1666, %v1875
    %v1877 = vpop.f32.mrb[0].mxu0
    %v1878 = vadd.f32 %v1662, %v1877
    %v1879 = vpop.f32.mrb[0].mxu0
    %v1880 = vadd.f32 %v1666, %v1879
    %1881 = vmatprep.mubr.bf16.mxu0 %v1598
    %1882 = vmatmul.mubr.bf16.gmra.mrb[0].mxu0 %v1597
    %v1883 = vpop.f32.mrb[0].mxu0
    %v1884 = vadd.f32 %v1662, %v1883
    %v1885 = vpop.f32.mrb[0].mxu0
    %v1886 = vadd.f32 %v1666, %v1885
    %v1887 = vpop.f32.mrb[0].mxu0
    %v1888 = vadd.f32 %v1662, %v1887
    %v1889 = vpop.f32.mrb[0].mxu0
    %v1890 = vadd.f32 %v1666, %v1889
    %1891 = vmatprep.mubr.bf16.mxu0 %v1600
    %1892 = vmatmul.mubr.bf16.gmra.mrb[0].mxu0 %v1599
    %v1893 = vpop.f32.mrb[0].mxu0
    %v1894 = vadd.f32 %v1662, %v1893
    %v1895 = vpop.f32.mrb[0].mxu0
    %v1896 = vadd.f32 %v1666, %v1895
    %v1897 = vpop.f32.mrb[0].mxu0
    %v1898 = vadd.f32 %v1662, %v1897
    %v1899 = vpop.f32.mrb[0].mxu0
    %v1900 = vadd.f32 %v1666, %v1899
    %1901 = vmatprep.mubr.bf16.mxu0 %v1602
    %1902 = vmatmul.mubr.bf16.gmra.mrb[0].mxu0 %v1601
    %v1903 = vpop.f32.mrb[0].mxu0
    %v1904 = vadd.f32 %v1662, %v1903
    %v1905 = vpop.f32.mrb[0].mxu0
    %v1906 = vadd.f32 %v1666, %v1905
    %v1907 = vpop.f32.mrb[0].mxu0
    %v1908 = vadd.f32 %v1662, %v1907
    %v1909 = vpop.f32.mrb[0].mxu0
    %v1910 = vadd.f32 %v1666, %v1909
    %1911 = vmatprep.mubr.bf16.mxu0 %v1604
    %1912 = vmatmul.mubr.bf16.gmra.mrb[0].mxu0 %v1603
    %v1913 = vpop.f32.mrb[0].mxu0
    %v1914 = vadd.f32 %v1662, %v1913
    %v1915 = vpop.f32.mrb[0].mxu0
    %v1916 = vadd.f32 %v1666, %v1915
    %v1917 = vpop.f32.mrb[0].mxu0
    %v1918 = vadd.f32 %v1662, %v1917
    %v1919 = vpop.f32.mrb[0].mxu0
    %v1920 = vadd.f32 %v1666, %v1919
    %1921 = vmatprep.mubr.bf16.mxu0 %v1606
    %1922 = vmatmul.mubr.bf16.gmra.mrb[0].mxu0 %v1605
    %v1923 = vpop.f32.mrb[0].mxu0
    %v1924 = vadd.f32 %v1662, %v1923
    %v1925 = vpop.f32.mrb[0].mxu0
    %v1926 = vadd.f32 %v1666, %v1925
    %v1927 = vpop.f32.mrb[0].mxu0
    %v1928 = vadd.f32 %v1662, %v1927
    %v1929 = vpop.f32.mrb[0].mxu0
    %v1930 = vadd.f32 %v1666, %v1929
    %1931 = vmatprep.mubr.bf16.mxu0 %v1608
    %1932 = vmatmul.mubr.bf16.gmra.mrb[0].mxu0 %v1607
    %v1933 = vpop.f32.mrb[0].mxu0
    %v1934 = vadd.f32 %v1662, %v1933
    %v1935 = vpop.f32.mrb[0].mxu0
    %v1936 = vadd.f32 %v1666, %v1935
    %v1937 = vpop.f32.mrb[0].mxu0
    %v1938 = vadd.f32 %v1662, %v1937
    %v1939 = vpop.f32.mrb[0].mxu0
    %v1940 = vadd.f32 %v1666, %v1939
    %1941 = vmatprep.mubr.bf16.mxu0 %v1610
    %1942 = vmatmul.mubr.bf16.gmra.mrb[0].mxu0 %v1609
    %v1943 = vpop.f32.mrb[0].mxu0
    %v1944 = vadd.f32 %v1662, %v1943
    %v1945 = vpop.f32.mrb[0].mxu0
    %v1946 = vadd.f32 %v1666, %v1945
    %v1947 = vpop.f32.mrb[0].mxu0
    %v1948 = vadd.f32 %v1662, %v1947
    %v1949 = vpop.f32.mrb[0].mxu0
    %v1950 = vadd.f32 %v1666, %v1949
    %1951 = vmatprep.mubr.bf16.mxu0 %v1612
    %1952 = vmatmul.mubr.bf16.gmra.mrb[0].mxu0 %v1611
    %v1953 = vpop.f32.mrb[0].mxu0
    %v1954 = vadd.f32 %v1662, %v1953
    %v1955 = vpop.f32.mrb[0].mxu0
    %v1956 = vadd.f32 %v1666, %v1955
    %v1957 = vpop.f32.mrb[0].mxu0
    %v1958 = vadd.f32 %v1662, %v1957
    %v1959 = vpop.f32.mrb[0].mxu0
    %v1960 = vadd.f32 %v1666, %v1959
    %1961 = vmatprep.mubr.bf16.mxu0 %v1614
    %1962 = vmatmul.mubr.bf16.gmra.mrb[0].mxu0 %v1613
    %v1963 = vpop.f32.mrb[0].mxu0
    %v1964 = vadd.f32 %v1662, %v1963
    %v1965 = vpop.f32.mrb[0].mxu0
    %v1966 = vadd.f32 %v1666, %v1965
    %v1967 = vpop.f32.mrb[0].mxu0
    %v1968 = vadd.f32 %v1662, %v1967
    %v1969 = vpop.f32.mrb[0].mxu0
    %v1970 = vadd.f32 %v1666, %v1969
    %1971 = vmatprep.mubr.bf16.mxu0 %v1616
    %1972 = vmatmul.mubr.bf16.gmra.mrb[0].mxu0 %v1615
    %v1973 = vpop.f32.mrb[0].mxu0
    %v1974 = vadd.f32 %v1662, %v1973
    %v1975 = vpop.f32.mrb[0].mxu0
    %v1976 = vadd.f32 %v1666, %v1975
    %v1977 = vpop.f32.mrb[0].mxu0
    %v1978 = vadd.f32 %v1662, %v1977
    %v1979 = vpop.f32.mrb[0].mxu0
    %v1980 = vadd.f32 %v1666, %v1979
    %1981 = vmatprep.mubr.bf16.mxu0 %v1618
    %1982 = vmatmul.mubr.bf16.gmra.mrb[0].mxu0 %v1617
    %v1983 = vpop.f32.mrb[0].mxu0
    %v1984 = vadd.f32 %v1662, %v1983
    %v1985 = vpop.f32.mrb[0].mxu0
    %v1986 = vadd.f32 %v1666, %v1985
    %v1987 = vpop.f32.mrb[0].mxu0
    %v1988 = vadd.f32 %v1662, %v1987
    %v1989 = vpop.f32.mrb[0].mxu0
    %v1990 = vadd.f32 %v1666, %v1989
    %1991 = vmatprep.mubr.bf16.mxu0 %v1620
    %1992 = vmatmul.mubr.bf16.gmra.mrb[0].mxu0 %v1619
    %v1993 = vpop.f32.mrb[0].mxu0
    %v1994 = vadd.f32 %v1662, %v1993
    %v1995 = vpop.f32.mrb[0].mxu0
    %v1996 = vadd.f32 %v1666, %v1995
    %v1997 = vpop.f32.mrb[0].mxu0
    %v1998 = vadd.f32 %v1662, %v1997
    %v1999 = vpop.f32.mrb[0].mxu0
    %v2000 = vadd.f32 %v1666, %v1999
    %2001 = vmatprep.mubr.bf16.mxu0 %v1622
    %2002 = vmatmul.mubr.bf16.gmra.mrb[0].mxu0 %v1621
    %v2003 = vpop.f32.mrb[0].mxu0
    %v2004 = vadd.f32 %v1662, %v2003
    %v2005 = vpop.f32.mrb[0].mxu0
    %v2006 = vadd.f32 %v1666, %v2005
    %v2007 = vpop.f32.mrb[0].mxu0
    %v2008 = vadd.f32 %v1662, %v2007
    %v2009 = vpop.f32.mrb[0].mxu0
    %v2010 = vadd.f32 %v1666, %v2009
    %2011 = vmatprep.mubr.bf16.mxu0 %v1624
    %2012 = vmatmul.mubr.bf16.gmra.mrb[0].mxu0 %v1623
    %v2013 = vpop.f32.mrb[0].mxu0
    %v2014 = vadd.f32 %v1662, %v2013
    %v2015 = vpop.f32.mrb[0].mxu0
    %v2016 = vadd.f32 %v1666, %v2015
    %v2017 = vpop.f32.mrb[0].mxu0
    %v2018 = vadd.f32 %v1662, %v2017
    %v2019 = vpop.f32.mrb[0].mxu0
    %v2020 = vadd.f32 %v1666, %v2019
    %2021 = vdwg.mxu0
    %v2022 = vtanh.pop %v1864
    %v2023 = vtanh.pop %v1868
    %v2024 = vtanh.pop %v1874
    %v2025 = vtanh.pop %v1878
    %v2026 = vtanh.pop %v1884
    %v2027 = vtanh.pop %v1888
    %v2028 = vtanh.pop %v1894
    %v2029 = vtanh.pop %v1898
    %v2030 = vtanh.pop %v1904
    %v2031 = vtanh.pop %v1908
    %v2032 = vtanh.pop %v1914
    %v2033 = vtanh.pop %v1918
    %v2034 = vtanh.pop %v1924
    %v2035 = vtanh.pop %v1928
    %v2036 = vtanh.pop %v1934
    %v2037 = vtanh.pop %v1938
    %v2038 = vtanh.pop %v1944
    %v2039 = vtanh.pop %v1948
    %v2040 = vtanh.pop %v1954
    %v2041 = vtanh.pop %v1958
    %v2042 = vtanh.pop %v1964
    %v2043 = vtanh.pop %v1968
    %v2044 = vtanh.pop %v1974
    %v2045 = vtanh.pop %v1978
    %v2046 = vtanh.pop %v1984
    %v2047 = vtanh.pop %v1988
    %v2048 = vtanh.pop %v1994
    %v2049 = vtanh.pop %v1998
    %v2050 = vtanh.pop %v2004
    %v2051 = vtanh.pop %v2008
    %v2052 = vtanh.pop %v2014
    %v2053 = vtanh.pop %v2018
    %v2054 = vmul.f32 %v2022, 1.442695
    %v2055 = vpow.pop %v2054
    %v2056 = vmul.f32 %v2023, 1.442695
    %v2057 = vpow.pop %v2056
    %v2058 = vmul.f32 %v2024, 1.442695
    %v2059 = vpow.pop %v2058
    %v2060 = vmul.f32 %v2025, 1.442695
    %v2061 = vpow.pop %v2060
    %v2062 = vmul.f32 %v2026, 1.442695
    %v2063 = vpow.pop %v2062
    %v2064 = vmul.f32 %v2027, 1.442695
    %v2065 = vpow.pop %v2064
    %v2066 = vmul.f32 %v2028, 1.442695
    %v2067 = vpow.pop %v2066
    %v2068 = vmul.f32 %v2029, 1.442695
    %v2069 = vpow.pop %v2068
    %v2070 = vmul.f32 %v2030, 1.442695
    %v2071 = vpow.pop %v2070
    %v2072 = vmul.f32 %v2031, 1.442695
    %v2073 = vpow.pop %v2072
    %v2074 = vmul.f32 %v2032, 1.442695
    %v2075 = vpow.pop %v2074
    %v2076 = vmul.f32 %v2033, 1.442695
    %v2077 = vpow.pop %v2076
    %v2078 = vmul.f32 %v2034, 1.442695
    %v2079 = vpow.pop %v2078
    %v2080 = vmul.f32 %v2035, 1.442695
    %v2081 = vpow.pop %v2080
    %v2082 = vmul.f32 %v2036, 1.442695
    %v2083 = vpow.pop %v2082
    %v2084 = vmul.f32 %v2037, 1.442695
    %v2085 = vpow.pop %v2084
    %v2086 = vmul.f32 %v2038, 1.442695
    %v2087 = vpow.pop %v2086
    %v2088 = vmul.f32 %v2039, 1.442695
    %v2089 = vpow.pop %v2088
    %v2090 = vmul.f32 %v2040, 1.442695
    %v2091 = vpow.pop %v2090
    %v2092 = vmul.f32 %v2041, 1.442695
    %v2093 = vpow.pop %v2092
    %v2094 = vmul.f32 %v2042, 1.442695
    %v2095 = vpow.pop %v2094
    %v2096 = vmul.f32 %v2043, 1.442695
    %v2097 = vpow.pop %v2096
    %v2098 = vmul.f32 %v2044, 1.442695
    %v2099 = vpow.pop %v2098
    %v2100 = vmul.f32 %v2045, 1.442695
    %v2101 = vpow.pop %v2100
    %v2102 = vmul.f32 %v2046, 1.442695
    %v2103 = vpow.pop %v2102
    %v2104 = vmul.f32 %v2047, 1.442695
    %v2105 = vpow.pop %v2104
    %v2106 = vmul.f32 %v2048, 1.442695
    %v2107 = vpow.pop %v2106
    %v2108 = vmul.f32 %v2049, 1.442695
    %v2109 = vpow.pop %v2108
    %v2110 = vmul.f32 %v2050, 1.442695
    %v2111 = vpow.pop %v2110
    %v2112 = vmul.f32 %v2051, 1.442695
    %v2113 = vpow.pop %v2112
    %v2114 = vmul.f32 %v2052, 1.442695
    %v2115 = vpow.pop %v2114
    %v2116 = vmul.f32 %v2053, 1.442695
    %v2117 = vpow.pop %v2116
    %v2118 = vmul.f32 %v78, %v2055
    %v2119 = vmul.f32 %v79, %v2057
    %v2120 = vmul.f32 %v80, %v2059
    %v2121 = vmul.f32 %v81, %v2061
    %v2122 = vmul.f32 %v82, %v2063
    %v2123 = vmul.f32 %v83, %v2065
    %v2124 = vmul.f32 %v84, %v2067
    %v2125 = vmul.f32 %v85, %v2069
    %v2126 = vmul.f32 %v86, %v2071
    %v2127 = vmul.f32 %v87, %v2073
    %v2128 = vmul.f32 %v88, %v2075
    %v2129 = vmul.f32 %v89, %v2077
    %v2130 = vmul.f32 %v90, %v2079
    %v2131 = vmul.f32 %v91, %v2081
    %v2132 = vmul.f32 %v92, %v2083
    %v2133 = vmul.f32 %v93, %v2085
    %v2134 = vmul.f32 %v94, %v2087
    %v2135 = vmul.f32 %v95, %v2089
    %v2136 = vmul.f32 %v96, %v2091
    %v2137 = vmul.f32 %v97, %v2093
    %v2138 = vmul.f32 %v98, %v2095
    %v2139 = vmul.f32 %v99, %v2097
    %v2140 = vmul.f32 %v100, %v2099
    %v2141 = vmul.f32 %v101, %v2101
    %v2142 = vmul.f32 %v102, %v2103
    %v2143 = vmul.f32 %v103, %v2105
    %v2144 = vmul.f32 %v104, %v2107
    %v2145 = vmul.f32 %v105, %v2109
    %v2146 = vmul.f32 %v106, %v2111
    %v2147 = vmul.f32 %v107, %v2113
    %v2148 = vmul.f32 %v108, %v2115
    %v2149 = vmul.f32 %v109, %v2117
    %v2150 = vadd.f32 %v2118, %v1866
    %v2151 = vadd.f32 %v2119, %v1870
    %v2152 = vadd.f32 %v2120, %v1876
    %v2153 = vadd.f32 %v2121, %v1880
    %v2154 = vadd.f32 %v2122, %v1886
    %v2155 = vadd.f32 %v2123, %v1890
    %v2156 = vadd.f32 %v2124, %v1896
    %v2157 = vadd.f32 %v2125, %v1900
    %v2158 = vadd.f32 %v2126, %v1906
    %v2159 = vadd.f32 %v2127, %v1910
    %v2160 = vadd.f32 %v2128, %v1916
    %v2161 = vadd.f32 %v2129, %v1920
    %v2162 = vadd.f32 %v2130, %v1926
    %v2163 = vadd.f32 %v2131, %v1930
    %v2164 = vadd.f32 %v2132, %v1936
    %v2165 = vadd.f32 %v2133, %v1940
    %v2166 = vadd.f32 %v2134, %v1946
    %v2167 = vadd.f32 %v2135, %v1950
    %v2168 = vadd.f32 %v2136, %v1956
    %v2169 = vadd.f32 %v2137, %v1960
    %v2170 = vadd.f32 %v2138, %v1966
    %v2171 = vadd.f32 %v2139, %v1970
    %v2172 = vadd.f32 %v2140, %v1976
    %v2173 = vadd.f32 %v2141, %v1980
    %v2174 = vadd.f32 %v2142, %v1986
    %v2175 = vadd.f32 %v2143, %v1990
    %v2176 = vadd.f32 %v2144, %v1996
    %v2177 = vadd.f32 %v2145, %v2000
    %v2178 = vadd.f32 %v2146, %v2006
    %v2179 = vadd.f32 %v2147, %v2010
    %v2180 = vadd.f32 %v2148, %v2016
    %v2181 = vadd.f32 %v2149, %v2020
    %2182 = vadd.xlane.f32.xlu0 %v2022
    %v2183 = vpop.xlane.xlu0 %2182
    %2184 = vadd.xlane.f32.xlu0 %v2023
    %v2185 = vpop.xlane.xlu0 %2184
    %2186 = vadd.xlane.f32.xlu0 %v2024
    %v2187 = vpop.xlane.xlu0 %2186
    %2188 = vadd.xlane.f32.xlu0 %v2025
    %v2189 = vpop.xlane.xlu0 %2188
    %2190 = vadd.xlane.f32.xlu0 %v2026
    %v2191 = vpop.xlane.xlu0 %2190
    %2192 = vadd.xlane.f32.xlu0 %v2027
    %v2193 = vpop.xlane.xlu0 %2192
    %2194 = vadd.xlane.f32.xlu0 %v2028
    %v2195 = vpop.xlane.xlu0 %2194
    %2196 = vadd.xlane.f32.xlu0 %v2029
    %v2197 = vpop.xlane.xlu0 %2196
    %2198 = vadd.xlane.f32.xlu0 %v2030
    %v2199 = vpop.xlane.xlu0 %2198
    %2200 = vadd.xlane.f32.xlu0 %v2031
    %v2201 = vpop.xlane.xlu0 %2200
    %2202 = vadd.xlane.f32.xlu0 %v2032
    %v2203 = vpop.xlane.xlu0 %2202
    %2204 = vadd.xlane.f32.xlu0 %v2033
    %v2205 = vpop.xlane.xlu0 %2204
    %2206 = vadd.xlane.f32.xlu0 %v2034
    %v2207 = vpop.xlane.xlu0 %2206
    %2208 = vadd.xlane.f32.xlu0 %v2035
    %v2209 = vpop.xlane.xlu0 %2208
    %2210 = vadd.xlane.f32.xlu0 %v2036
    %v2211 = vpop.xlane.xlu0 %2210
    %2212 = vadd.xlane.f32.xlu0 %v2037
    %v2213 = vpop.xlane.xlu0 %2212
    %2214 = vadd.xlane.f32.xlu0 %v2038
    %v2215 = vpop.xlane.xlu0 %2214
    %2216 = vadd.xlane.f32.xlu0 %v2039
    %v2217 = vpop.xlane.xlu0 %2216
    %2218 = vadd.xlane.f32.xlu0 %v2040
    %v2219 = vpop.xlane.xlu0 %2218
    %2220 = vadd.xlane.f32.xlu0 %v2041
    %v2221 = vpop.xlane.xlu0 %2220
    %2222 = vadd.xlane.f32.xlu0 %v2042
    %v2223 = vpop.xlane.xlu0 %2222
    %2224 = vadd.xlane.f32.xlu0 %v2043
    %v2225 = vpop.xlane.xlu0 %2224
    %2226 = vadd.xlane.f32.xlu0 %v2044
    %v2227 = vpop.xlane.xlu0 %2226
    %2228 = vadd.xlane.f32.xlu0 %v2045
    %v2229 = vpop.xlane.xlu0 %2228
    %2230 = vadd.xlane.f32.xlu0 %v2046
    %v2231 = vpop.xlane.xlu0 %2230
    %2232 = vadd.xlane.f32.xlu0 %v2047
    %v2233 = vpop.xlane.xlu0 %2232
    %2234 = vadd.xlane.f32.xlu0 %v2048
    %v2235 = vpop.xlane.xlu0 %2234
    %2236 = vadd.xlane.f32.xlu0 %v2049
    %v2237 = vpop.xlane.xlu0 %2236
    %2238 = vadd.xlane.f32.xlu0 %v2050
    %v2239 = vpop.xlane.xlu0 %2238
    %2240 = vadd.xlane.f32.xlu0 %v2051
    %v2241 = vpop.xlane.xlu0 %2240
    %2242 = vadd.xlane.f32.xlu0 %v2052
    %v2243 = vpop.xlane.xlu0 %2242
    %2244 = vadd.xlane.f32.xlu0 %v2053
    %v2245 = vpop.xlane.xlu0 %2244
    %v2246 = vadd.f32 %v1176, %v2183
    %v2247 = vadd.f32 %v1177, %v2185
    %v2248 = vadd.f32 %v1178, %v2187
    %v2249 = vadd.f32 %v1179, %v2189
    %v2250 = vadd.f32 %v1180, %v2191
    %v2251 = vadd.f32 %v1181, %v2193
    %v2252 = vadd.f32 %v1182, %v2195
    %v2253 = vadd.f32 %v1183, %v2197
    %v2254 = vadd.f32 %v1184, %v2199
    %v2255 = vadd.f32 %v1185, %v2201
    %v2256 = vadd.f32 %v1186, %v2203
    %v2257 = vadd.f32 %v1187, %v2205
    %v2258 = vadd.f32 %v1188, %v2207
    %v2259 = vadd.f32 %v1189, %v2209
    %v2260 = vadd.f32 %v1190, %v2211
    %v2261 = vadd.f32 %v1191, %v2213
    %v2262 = vadd.f32 %v1192, %v2215
    %v2263 = vadd.f32 %v1193, %v2217
    %v2264 = vadd.f32 %v1194, %v2219
    %v2265 = vadd.f32 %v1195, %v2221
    %v2266 = vadd.f32 %v1196, %v2223
    %v2267 = vadd.f32 %v1197, %v2225
    %v2268 = vadd.f32 %v1198, %v2227
    %v2269 = vadd.f32 %v1199, %v2229
    %v2270 = vadd.f32 %v1200, %v2231
    %v2271 = vadd.f32 %v1201, %v2233
    %v2272 = vadd.f32 %v1202, %v2235
    %v2273 = vadd.f32 %v1203, %v2237
    %v2274 = vadd.f32 %v1204, %v2239
    %v2275 = vadd.f32 %v1205, %v2241
    %v2276 = vadd.f32 %v1206, %v2243
    %v2277 = vadd.f32 %v1207, %v2245
    %s2278 = scalar_lea.vmem [#allocation7], 2
    %v2279 = vld [vmem:[%s2278] ss:$4 sm:$0x3]
    %s2280 = scalar_lea.vmem %s4, 2
    %v2281 = vld [vmem:[%s2280] ss:$4 sm:$0x3]
    %v2282 = vpack.c.bf16 %v2151, %v2150
    %v2283 = vpack.c.bf16 %v2153, %v2152
    %v2284 = vpack.c.bf16 %v2155, %v2154
    %v2285 = vpack.c.bf16 %v2157, %v2156
    %v2286 = vpack.c.bf16 %v2159, %v2158
    %v2287 = vpack.c.bf16 %v2161, %v2160
    %v2288 = vpack.c.bf16 %v2163, %v2162
    %v2289 = vpack.c.bf16 %v2165, %v2164
    %v2290 = vpack.c.bf16 %v2167, %v2166
    %v2291 = vpack.c.bf16 %v2169, %v2168
    %v2292 = vpack.c.bf16 %v2171, %v2170
    %v2293 = vpack.c.bf16 %v2173, %v2172
    %v2294 = vpack.c.bf16 %v2175, %v2174
    %v2295 = vpack.c.bf16 %v2177, %v2176
    %v2296 = vpack.c.bf16 %v2179, %v2178
    %v2297 = vpack.c.bf16 %v2181, %v2180
    %s2298 = scalar_lea.vmem [#allocation5], 256
    %v2299 = vld [vmem:[%s2298] sm:$0xff]
    %v2300 = vld [vmem:[%s2298 + $0x8] sm:$0xff]
    %v2301 = vld [vmem:[%s2298 + $0x10] sm:$0xff]
    %v2302 = vld [vmem:[%s2298 + $0x18] sm:$0xff]
    %v2303 = vld [vmem:[%s2298 + $0x20] sm:$0xff]
    %v2304 = vld [vmem:[%s2298 + $0x28] sm:$0xff]
    %v2305 = vld [vmem:[%s2298 + $0x30] sm:$0xff]
    %v2306 = vld [vmem:[%s2298 + $0x38] sm:$0xff]
    %v2307 = vld [vmem:[%s2298 + $0x40] sm:$0xff]
    %v2308 = vld [vmem:[%s2298 + $0x48] sm:$0xff]
    %v2309 = vld [vmem:[%s2298 + $0x50] sm:$0xff]
    %v2310 = vld [vmem:[%s2298 + $0x58] sm:$0xff]
    %v2311 = vld [vmem:[%s2298 + $0x60] sm:$0xff]
    %v2312 = vld [vmem:[%s2298 + $0x68] sm:$0xff]
    %v2313 = vld [vmem:[%s2298 + $0x70] sm:$0xff]
    %v2314 = vld [vmem:[%s2298 + $0x78] sm:$0xff]
    %v2316 = vlaneseq
    %v2317 = vshrl.u32 %v2316, 7
    %v2318 = vsub.s32 0, %v2317
    %v2319 = vrot.slane %v2279, %v2318
    %v2320 = vlaneseq
    %v2321 = vshrl.u32 %v2320, 7
    %v2322 = vsub.s32 1, %v2321
    %v2323 = vrot.slane %v2279, %v2322
    %v2342 = vunpack.c.l.b16 %v2299
    %v2343 = vunpack.c.h.b16 %v2299
    %v2344 = vunpack.c.l.b16 %v2300
    %v2345 = vunpack.c.h.b16 %v2300
    %v2346 = vunpack.c.l.b16 %v2301
    %v2347 = vunpack.c.h.b16 %v2301
    %v2348 = vunpack.c.l.b16 %v2302
    %v2349 = vunpack.c.h.b16 %v2302
    %v2350 = vunpack.c.l.b16 %v2303
    %v2351 = vunpack.c.h.b16 %v2303
    %v2352 = vunpack.c.l.b16 %v2304
    %v2353 = vunpack.c.h.b16 %v2304
    %v2354 = vunpack.c.l.b16 %v2305
    %v2355 = vunpack.c.h.b16 %v2305
    %v2356 = vunpack.c.l.b16 %v2306
    %v2357 = vunpack.c.h.b16 %v2306
    %v2358 = vunpack.c.l.b16 %v2307
    %v2359 = vunpack.c.h.b16 %v2307
    %v2360 = vunpack.c.l.b16 %v2308
    %v2361 = vunpack.c.h.b16 %v2308
    %v2362 = vunpack.c.l.b16 %v2309
    %v2363 = vunpack.c.h.b16 %v2309
    %v2364 = vunpack.c.l.b16 %v2310
    %v2365 = vunpack.c.h.b16 %v2310
    %v2366 = vunpack.c.l.b16 %v2311
    %v2367 = vunpack.c.h.b16 %v2311
    %v2368 = vunpack.c.l.b16 %v2312
    %v2369 = vunpack.c.h.b16 %v2312
    %v2370 = vunpack.c.l.b16 %v2313
    %v2371 = vunpack.c.h.b16 %v2313
    %v2372 = vunpack.c.l.b16 %v2314
    %v2373 = vunpack.c.h.b16 %v2314
    %v2374 = vpack.c.b16 %v2344, %v2342
    %v2375 = vpack.c.b16 %v2345, %v2343
    %v2376 = vpack.c.b16 %v2348, %v2346
    %v2377 = vpack.c.b16 %v2349, %v2347
    %v2378 = vpack.c.b16 %v2352, %v2350
    %v2379 = vpack.c.b16 %v2353, %v2351
    %v2380 = vpack.c.b16 %v2356, %v2354
    %v2381 = vpack.c.b16 %v2357, %v2355
    %v2382 = vpack.c.b16 %v2360, %v2358
    %v2383 = vpack.c.b16 %v2361, %v2359
    %v2384 = vpack.c.b16 %v2364, %v2362
    %v2385 = vpack.c.b16 %v2365, %v2363
    %v2386 = vpack.c.b16 %v2368, %v2366
    %v2387 = vpack.c.b16 %v2369, %v2367
    %v2388 = vpack.c.b16 %v2372, %v2370
    %v2389 = vpack.c.b16 %v2373, %v2371
    %2406 = vmatprep.subr.bf16.mxu0 %v2375
    %2407 = vmatpush1.bf16.msra.mxu0 %v2374
    %2408 = vmatprep.subr.bf16.mxu0 %v2377
    %2409 = vmatpush1.bf16.msra.mxu0 %v2376
    %2410 = vmatprep.subr.bf16.mxu0 %v2379
    %2411 = vmatpush1.bf16.msra.mxu0 %v2378
    %2412 = vmatprep.subr.bf16.mxu0 %v2381
    %2413 = vmatpush1.bf16.msra.mxu0 %v2380
    %2414 = vmatprep.subr.bf16.mxu0 %v2383
    %2415 = vmatpush1.bf16.msra.mxu0 %v2382
    %2416 = vmatprep.subr.bf16.mxu0 %v2385
    %2417 = vmatpush1.bf16.msra.mxu0 %v2384
    %2418 = vmatprep.subr.bf16.mxu0 %v2387
    %2419 = vmatpush1.bf16.msra.mxu0 %v2386
    %2420 = vmatprep.subr.bf16.mxu0 %v2389
    %2421 = vmatpush1.bf16.msra.mxu0 %v2388
    %2422 = vmatprep.subr.bf16.mxu0 0
    %2423 = vmatpush1.bf16.msra.mxu0 0
    %2424 = vmatprep.subr.bf16.mxu0 0
    %2425 = vmatpush1.bf16.msra.mxu0 0
    %2426 = vmatprep.subr.bf16.mxu0 0
    %2427 = vmatpush1.bf16.msra.mxu0 0
    %2428 = vmatprep.subr.bf16.mxu0 0
    %2429 = vmatpush1.bf16.msra.mxu0 0
    %2430 = vmatprep.subr.bf16.mxu0 0
    %2431 = vmatpush1.bf16.msra.mxu0 0
    %2432 = vmatprep.subr.bf16.mxu0 0
    %2433 = vmatpush1.bf16.msra.mxu0 0
    %2434 = vmatprep.subr.bf16.mxu0 0
    %2435 = vmatpush1.bf16.msra.mxu0 0
    %2436 = vmatprep.subr.bf16.mxu0 0
    %2437 = vmatpush1.bf16.msra.mxu0 0
    %2438 = vmatprep.mubr.bf16.mxu0 0
    %2439 = vmatmul.mubr.bf16.gmra.mrb[0].mxu0 %v2282
    %v2440 = vpop.f32.mrb[0].mxu0
    %v2441 = vadd.f32 %v2319, %v2440
    %v2442 = vpop.f32.mrb[0].mxu0
    %v2443 = vadd.f32 %v2323, %v2442
    %v2444 = vpop.f32.mrb[0].mxu0
    %v2445 = vadd.f32 %v2319, %v2444
    %v2446 = vpop.f32.mrb[0].mxu0
    %v2447 = vadd.f32 %v2323, %v2446
    %2448 = vmatprep.mubr.bf16.mxu0 0
    %2449 = vmatmul.mubr.bf16.gmra.mrb[0].mxu0 %v2283
    %v2450 = vpop.f32.mrb[0].mxu0
    %v2451 = vadd.f32 %v2319, %v2450
    %v2452 = vpop.f32.mrb[0].mxu0
    %v2453 = vadd.f32 %v2323, %v2452
    %v2454 = vpop.f32.mrb[0].mxu0
    %v2455 = vadd.f32 %v2319, %v2454
    %v2456 = vpop.f32.mrb[0].mxu0
    %v2457 = vadd.f32 %v2323, %v2456
    %2458 = vmatprep.mubr.bf16.mxu0 0
    %2459 = vmatmul.mubr.bf16.gmra.mrb[0].mxu0 %v2284
    %v2460 = vpop.f32.mrb[0].mxu0
    %v2461 = vadd.f32 %v2319, %v2460
    %v2462 = vpop.f32.mrb[0].mxu0
    %v2463 = vadd.f32 %v2323, %v2462
    %v2464 = vpop.f32.mrb[0].mxu0
    %v2465 = vadd.f32 %v2319, %v2464
    %v2466 = vpop.f32.mrb[0].mxu0
    %v2467 = vadd.f32 %v2323, %v2466
    %2468 = vmatprep.mubr.bf16.mxu0 0
    %2469 = vmatmul.mubr.bf16.gmra.mrb[0].mxu0 %v2285
    %v2470 = vpop.f32.mrb[0].mxu0
    %v2471 = vadd.f32 %v2319, %v2470
    %v2472 = vpop.f32.mrb[0].mxu0
    %v2473 = vadd.f32 %v2323, %v2472
    %v2474 = vpop.f32.mrb[0].mxu0
    %v2475 = vadd.f32 %v2319, %v2474
    %v2476 = vpop.f32.mrb[0].mxu0
    %v2477 = vadd.f32 %v2323, %v2476
    %2478 = vmatprep.mubr.bf16.mxu0 0
    %2479 = vmatmul.mubr.bf16.gmra.mrb[0].mxu0 %v2286
    %v2480 = vpop.f32.mrb[0].mxu0
    %v2481 = vadd.f32 %v2319, %v2480
    %v2482 = vpop.f32.mrb[0].mxu0
    %v2483 = vadd.f32 %v2323, %v2482
    %v2484 = vpop.f32.mrb[0].mxu0
    %v2485 = vadd.f32 %v2319, %v2484
    %v2486 = vpop.f32.mrb[0].mxu0
    %v2487 = vadd.f32 %v2323, %v2486
    %2488 = vmatprep.mubr.bf16.mxu0 0
    %2489 = vmatmul.mubr.bf16.gmra.mrb[0].mxu0 %v2287
    %v2490 = vpop.f32.mrb[0].mxu0
    %v2491 = vadd.f32 %v2319, %v2490
    %v2492 = vpop.f32.mrb[0].mxu0
    %v2493 = vadd.f32 %v2323, %v2492
    %v2494 = vpop.f32.mrb[0].mxu0
    %v2495 = vadd.f32 %v2319, %v2494
    %v2496 = vpop.f32.mrb[0].mxu0
    %v2497 = vadd.f32 %v2323, %v2496
    %2498 = vmatprep.mubr.bf16.mxu0 0
    %2499 = vmatmul.mubr.bf16.gmra.mrb[0].mxu0 %v2288
    %v2500 = vpop.f32.mrb[0].mxu0
    %v2501 = vadd.f32 %v2319, %v2500
    %v2502 = vpop.f32.mrb[0].mxu0
    %v2503 = vadd.f32 %v2323, %v2502
    %v2504 = vpop.f32.mrb[0].mxu0
    %v2505 = vadd.f32 %v2319, %v2504
    %v2506 = vpop.f32.mrb[0].mxu0
    %v2507 = vadd.f32 %v2323, %v2506
    %2508 = vmatprep.mubr.bf16.mxu0 0
    %2509 = vmatmul.mubr.bf16.gmra.mrb[0].mxu0 %v2289
    %v2510 = vpop.f32.mrb[0].mxu0
    %v2511 = vadd.f32 %v2319, %v2510
    %v2512 = vpop.f32.mrb[0].mxu0
    %v2513 = vadd.f32 %v2323, %v2512
    %v2514 = vpop.f32.mrb[0].mxu0
    %v2515 = vadd.f32 %v2319, %v2514
    %v2516 = vpop.f32.mrb[0].mxu0
    %v2517 = vadd.f32 %v2323, %v2516
    %2518 = vmatprep.mubr.bf16.mxu0 0
    %2519 = vmatmul.mubr.bf16.gmra.mrb[0].mxu0 %v2290
    %v2520 = vpop.f32.mrb[0].mxu0
    %v2521 = vadd.f32 %v2319, %v2520
    %v2522 = vpop.f32.mrb[0].mxu0
    %v2523 = vadd.f32 %v2323, %v2522
    %v2524 = vpop.f32.mrb[0].mxu0
    %v2525 = vadd.f32 %v2319, %v2524
    %v2526 = vpop.f32.mrb[0].mxu0
    %v2527 = vadd.f32 %v2323, %v2526
    %2528 = vmatprep.mubr.bf16.mxu0 0
    %2529 = vmatmul.mubr.bf16.gmra.mrb[0].mxu0 %v2291
    %v2530 = vpop.f32.mrb[0].mxu0
    %v2531 = vadd.f32 %v2319, %v2530
    %v2532 = vpop.f32.mrb[0].mxu0
    %v2533 = vadd.f32 %v2323, %v2532
    %v2534 = vpop.f32.mrb[0].mxu0
    %v2535 = vadd.f32 %v2319, %v2534
    %v2536 = vpop.f32.mrb[0].mxu0
    %v2537 = vadd.f32 %v2323, %v2536
    %2538 = vmatprep.mubr.bf16.mxu0 0
    %2539 = vmatmul.mubr.bf16.gmra.mrb[0].mxu0 %v2292
    %v2540 = vpop.f32.mrb[0].mxu0
    %v2541 = vadd.f32 %v2319, %v2540
    %v2542 = vpop.f32.mrb[0].mxu0
    %v2543 = vadd.f32 %v2323, %v2542
    %v2544 = vpop.f32.mrb[0].mxu0
    %v2545 = vadd.f32 %v2319, %v2544
    %v2546 = vpop.f32.mrb[0].mxu0
    %v2547 = vadd.f32 %v2323, %v2546
    %2548 = vmatprep.mubr.bf16.mxu0 0
    %2549 = vmatmul.mubr.bf16.gmra.mrb[0].mxu0 %v2293
    %v2550 = vpop.f32.mrb[0].mxu0
    %v2551 = vadd.f32 %v2319, %v2550
    %v2552 = vpop.f32.mrb[0].mxu0
    %v2553 = vadd.f32 %v2323, %v2552
    %v2554 = vpop.f32.mrb[0].mxu0
    %v2555 = vadd.f32 %v2319, %v2554
    %v2556 = vpop.f32.mrb[0].mxu0
    %v2557 = vadd.f32 %v2323, %v2556
    %2558 = vmatprep.mubr.bf16.mxu0 0
    %2559 = vmatmul.mubr.bf16.gmra.mrb[0].mxu0 %v2294
    %v2560 = vpop.f32.mrb[0].mxu0
    %v2561 = vadd.f32 %v2319, %v2560
    %v2562 = vpop.f32.mrb[0].mxu0
    %v2563 = vadd.f32 %v2323, %v2562
    %v2564 = vpop.f32.mrb[0].mxu0
    %v2565 = vadd.f32 %v2319, %v2564
    %v2566 = vpop.f32.mrb[0].mxu0
    %v2567 = vadd.f32 %v2323, %v2566
    %2568 = vmatprep.mubr.bf16.mxu0 0
    %2569 = vmatmul.mubr.bf16.gmra.mrb[0].mxu0 %v2295
    %v2570 = vpop.f32.mrb[0].mxu0
    %v2571 = vadd.f32 %v2319, %v2570
    %v2572 = vpop.f32.mrb[0].mxu0
    %v2573 = vadd.f32 %v2323, %v2572
    %v2574 = vpop.f32.mrb[0].mxu0
    %v2575 = vadd.f32 %v2319, %v2574
    %v2576 = vpop.f32.mrb[0].mxu0
    %v2577 = vadd.f32 %v2323, %v2576
    %2578 = vmatprep.mubr.bf16.mxu0 0
    %2579 = vmatmul.mubr.bf16.gmra.mrb[0].mxu0 %v2296
    %v2580 = vpop.f32.mrb[0].mxu0
    %v2581 = vadd.f32 %v2319, %v2580
    %v2582 = vpop.f32.mrb[0].mxu0
    %v2583 = vadd.f32 %v2323, %v2582
    %v2584 = vpop.f32.mrb[0].mxu0
    %v2585 = vadd.f32 %v2319, %v2584
    %v2586 = vpop.f32.mrb[0].mxu0
    %v2587 = vadd.f32 %v2323, %v2586
    %2588 = vmatprep.mubr.bf16.mxu0 0
    %2589 = vmatmul.mubr.bf16.gmra.mrb[0].mxu0 %v2297
    %v2590 = vpop.f32.mrb[0].mxu0
    %v2591 = vadd.f32 %v2319, %v2590
    %v2592 = vpop.f32.mrb[0].mxu0
    %v2593 = vadd.f32 %v2323, %v2592
    %v2594 = vpop.f32.mrb[0].mxu0
    %v2595 = vadd.f32 %v2319, %v2594
    %v2596 = vpop.f32.mrb[0].mxu0
    %v2597 = vadd.f32 %v2323, %v2596
    %2598 = vdwg.mxu0
    %v2599 = vmax.f32 %v2441, 0.0
    %v2600 = vmax.f32 %v2443, 0.0
    %v2601 = vmax.f32 %v2445, 0.0
    %v2602 = vmax.f32 %v2447, 0.0
    %v2603 = vmax.f32 %v2451, 0.0
    %v2604 = vmax.f32 %v2453, 0.0
    %v2605 = vmax.f32 %v2455, 0.0
    %v2606 = vmax.f32 %v2457, 0.0
    %v2607 = vmax.f32 %v2461, 0.0
    %v2608 = vmax.f32 %v2463, 0.0
    %v2609 = vmax.f32 %v2465, 0.0
    %v2610 = vmax.f32 %v2467, 0.0
    %v2611 = vmax.f32 %v2471, 0.0
    %v2612 = vmax.f32 %v2473, 0.0
    %v2613 = vmax.f32 %v2475, 0.0
    %v2614 = vmax.f32 %v2477, 0.0
    %v2615 = vmax.f32 %v2481, 0.0
    %v2616 = vmax.f32 %v2483, 0.0
    %v2617 = vmax.f32 %v2485, 0.0
    %v2618 = vmax.f32 %v2487, 0.0
    %v2619 = vmax.f32 %v2491, 0.0
    %v2620 = vmax.f32 %v2493, 0.0
    %v2621 = vmax.f32 %v2495, 0.0
    %v2622 = vmax.f32 %v2497, 0.0
    %v2623 = vmax.f32 %v2501, 0.0
    %v2624 = vmax.f32 %v2503, 0.0
    %v2625 = vmax.f32 %v2505, 0.0
    %v2626 = vmax.f32 %v2507, 0.0
    %v2627 = vmax.f32 %v2511, 0.0
    %v2628 = vmax.f32 %v2513, 0.0
    %v2629 = vmax.f32 %v2515, 0.0
    %v2630 = vmax.f32 %v2517, 0.0
    %v2631 = vmax.f32 %v2521, 0.0
    %v2632 = vmax.f32 %v2523, 0.0
    %v2633 = vmax.f32 %v2525, 0.0
    %v2634 = vmax.f32 %v2527, 0.0
    %v2635 = vmax.f32 %v2531, 0.0
    %v2636 = vmax.f32 %v2533, 0.0
    %v2637 = vmax.f32 %v2535, 0.0
    %v2638 = vmax.f32 %v2537, 0.0
    %v2639 = vmax.f32 %v2541, 0.0
    %v2640 = vmax.f32 %v2543, 0.0
    %v2641 = vmax.f32 %v2545, 0.0
    %v2642 = vmax.f32 %v2547, 0.0
    %v2643 = vmax.f32 %v2551, 0.0
    %v2644 = vmax.f32 %v2553, 0.0
    %v2645 = vmax.f32 %v2555, 0.0
    %v2646 = vmax.f32 %v2557, 0.0
    %v2647 = vmax.f32 %v2561, 0.0
    %v2648 = vmax.f32 %v2563, 0.0
    %v2649 = vmax.f32 %v2565, 0.0
    %v2650 = vmax.f32 %v2567, 0.0
    %v2651 = vmax.f32 %v2571, 0.0
    %v2652 = vmax.f32 %v2573, 0.0
    %v2653 = vmax.f32 %v2575, 0.0
    %v2654 = vmax.f32 %v2577, 0.0
    %v2655 = vmax.f32 %v2581, 0.0
    %v2656 = vmax.f32 %v2583, 0.0
    %v2657 = vmax.f32 %v2585, 0.0
    %v2658 = vmax.f32 %v2587, 0.0
    %v2659 = vmax.f32 %v2591, 0.0
    %v2660 = vmax.f32 %v2593, 0.0
    %v2661 = vmax.f32 %v2595, 0.0
    %v2662 = vmax.f32 %v2597, 0.0
    %v2663 = vpack.c.bf16 %v2601, %v2599
    %v2664 = vpack.c.bf16 %v2602, %v2600
    %v2665 = vpack.c.bf16 %v2605, %v2603
    %v2666 = vpack.c.bf16 %v2606, %v2604
    %v2667 = vpack.c.bf16 %v2609, %v2607
    %v2668 = vpack.c.bf16 %v2610, %v2608
    %v2669 = vpack.c.bf16 %v2613, %v2611
    %v2670 = vpack.c.bf16 %v2614, %v2612
    %v2671 = vpack.c.bf16 %v2617, %v2615
    %v2672 = vpack.c.bf16 %v2618, %v2616
    %v2673 = vpack.c.bf16 %v2621, %v2619
    %v2674 = vpack.c.bf16 %v2622, %v2620
    %v2675 = vpack.c.bf16 %v2625, %v2623
    %v2676 = vpack.c.bf16 %v2626, %v2624
    %v2677 = vpack.c.bf16 %v2629, %v2627
    %v2678 = vpack.c.bf16 %v2630, %v2628
    %v2679 = vpack.c.bf16 %v2633, %v2631
    %v2680 = vpack.c.bf16 %v2634, %v2632
    %v2681 = vpack.c.bf16 %v2637, %v2635
    %v2682 = vpack.c.bf16 %v2638, %v2636
    %v2683 = vpack.c.bf16 %v2641, %v2639
    %v2684 = vpack.c.bf16 %v2642, %v2640
    %v2685 = vpack.c.bf16 %v2645, %v2643
    %v2686 = vpack.c.bf16 %v2646, %v2644
    %v2687 = vpack.c.bf16 %v2649, %v2647
    %v2688 = vpack.c.bf16 %v2650, %v2648
    %v2689 = vpack.c.bf16 %v2653, %v2651
    %v2690 = vpack.c.bf16 %v2654, %v2652
    %v2691 = vpack.c.bf16 %v2657, %v2655
    %v2692 = vpack.c.bf16 %v2658, %v2656
    %v2693 = vpack.c.bf16 %v2661, %v2659
    %v2694 = vpack.c.bf16 %v2662, %v2660
    %s2695 = scalar_lea.vmem [#allocation8], 512
    %v2696 = vld [vmem:[%s2695] sm:$0xff]
    %v2697 = vld [vmem:[%s2695 + $0x8] sm:$0xff]
    %v2698 = vld [vmem:[%s2695 + $0x10] sm:$0xff]
    %v2699 = vld [vmem:[%s2695 + $0x18] sm:$0xff]
    %v2700 = vld [vmem:[%s2695 + $0x20] sm:$0xff]
    %v2701 = vld [vmem:[%s2695 + $0x28] sm:$0xff]
    %v2702 = vld [vmem:[%s2695 + $0x30] sm:$0xff]
    %v2703 = vld [vmem:[%s2695 + $0x38] sm:$0xff]
    %v2704 = vld [vmem:[%s2695 + $0x40] sm:$0xff]
    %v2705 = vld [vmem:[%s2695 + $0x48] sm:$0xff]
    %v2706 = vld [vmem:[%s2695 + $0x50] sm:$0xff]
    %v2707 = vld [vmem:[%s2695 + $0x58] sm:$0xff]
    %v2708 = vld [vmem:[%s2695 + $0x60] sm:$0xff]
    %v2709 = vld [vmem:[%s2695 + $0x68] sm:$0xff]
    %v2710 = vld [vmem:[%s2695 + $0x70] sm:$0xff]
    %v2711 = vld [vmem:[%s2695 + $0x78] sm:$0xff]
    %v2712 = vld [vmem:[%s2695 + $0x80] sm:$0xff]
    %v2713 = vld [vmem:[%s2695 + $0x88] sm:$0xff]
    %v2714 = vld [vmem:[%s2695 + $0x90] sm:$0xff]
    %v2715 = vld [vmem:[%s2695 + $0x98] sm:$0xff]
    %v2716 = vld [vmem:[%s2695 + $0xa0] sm:$0xff]
    %v2717 = vld [vmem:[%s2695 + $0xa8] sm:$0xff]
    %v2718 = vld [vmem:[%s2695 + $0xb0] sm:$0xff]
    %v2719 = vld [vmem:[%s2695 + $0xb8] sm:$0xff]
    %v2720 = vld [vmem:[%s2695 + $0xc0] sm:$0xff]
    %v2721 = vld [vmem:[%s2695 + $0xc8] sm:$0xff]
    %v2722 = vld [vmem:[%s2695 + $0xd0] sm:$0xff]
    %v2723 = vld [vmem:[%s2695 + $0xd8] sm:$0xff]
    %v2724 = vld [vmem:[%s2695 + $0xe0] sm:$0xff]
    %v2725 = vld [vmem:[%s2695 + $0xe8] sm:$0xff]
    %v2726 = vld [vmem:[%s2695 + $0xf0] sm:$0xff]
    %v2727 = vld [vmem:[%s2695 + $0xf8] sm:$0xff]
    %v2729 = vlaneseq
    %v2730 = vshrl.u32 %v2729, 7
    %v2731 = vsub.s32 0, %v2730
    %v2732 = vrot.slane %v2281, %v2731
    %v2733 = vlaneseq
    %v2734 = vshrl.u32 %v2733, 7
    %v2735 = vsub.s32 1, %v2734
    %v2736 = vrot.slane %v2281, %v2735
    %v2771 = vunpack.c.l.b16 %v2696
    %v2772 = vunpack.c.h.b16 %v2696
    %v2773 = vunpack.c.l.b16 %v2697
    %v2774 = vunpack.c.h.b16 %v2697
    %v2775 = vunpack.c.l.b16 %v2698
    %v2776 = vunpack.c.h.b16 %v2698
    %v2777 = vunpack.c.l.b16 %v2699
    %v2778 = vunpack.c.h.b16 %v2699
    %v2779 = vunpack.c.l.b16 %v2700
    %v2780 = vunpack.c.h.b16 %v2700
    %v2781 = vunpack.c.l.b16 %v2701
    %v2782 = vunpack.c.h.b16 %v2701
    %v2783 = vunpack.c.l.b16 %v2702
    %v2784 = vunpack.c.h.b16 %v2702
    %v2785 = vunpack.c.l.b16 %v2703
    %v2786 = vunpack.c.h.b16 %v2703
    %v2787 = vunpack.c.l.b16 %v2704
    %v2788 = vunpack.c.h.b16 %v2704
    %v2789 = vunpack.c.l.b16 %v2705
    %v2790 = vunpack.c.h.b16 %v2705
    %v2791 = vunpack.c.l.b16 %v2706
    %v2792 = vunpack.c.h.b16 %v2706
    %v2793 = vunpack.c.l.b16 %v2707
    %v2794 = vunpack.c.h.b16 %v2707
    %v2795 = vunpack.c.l.b16 %v2708
    %v2796 = vunpack.c.h.b16 %v2708
    %v2797 = vunpack.c.l.b16 %v2709
    %v2798 = vunpack.c.h.b16 %v2709
    %v2799 = vunpack.c.l.b16 %v2710
    %v2800 = vunpack.c.h.b16 %v2710
    %v2801 = vunpack.c.l.b16 %v2711
    %v2802 = vunpack.c.h.b16 %v2711
    %v2803 = vunpack.c.l.b16 %v2712
    %v2804 = vunpack.c.h.b16 %v2712
    %v2805 = vunpack.c.l.b16 %v2713
    %v2806 = vunpack.c.h.b16 %v2713
    %v2807 = vunpack.c.l.b16 %v2714
    %v2808 = vunpack.c.h.b16 %v2714
    %v2809 = vunpack.c.l.b16 %v2715
    %v2810 = vunpack.c.h.b16 %v2715
    %v2811 = vunpack.c.l.b16 %v2716
    %v2812 = vunpack.c.h.b16 %v2716
    %v2813 = vunpack.c.l.b16 %v2717
    %v2814 = vunpack.c.h.b16 %v2717
    %v2815 = vunpack.c.l.b16 %v2718
    %v2816 = vunpack.c.h.b16 %v2718
    %v2817 = vunpack.c.l.b16 %v2719
    %v2818 = vunpack.c.h.b16 %v2719
    %v2819 = vunpack.c.l.b16 %v2720
    %v2820 = vunpack.c.h.b16 %v2720
    %v2821 = vunpack.c.l.b16 %v2721
    %v2822 = vunpack.c.h.b16 %v2721
    %v2823 = vunpack.c.l.b16 %v2722
    %v2824 = vunpack.c.h.b16 %v2722
    %v2825 = vunpack.c.l.b16 %v2723
    %v2826 = vunpack.c.h.b16 %v2723
    %v2827 = vunpack.c.l.b16 %v2724
    %v2828 = vunpack.c.h.b16 %v2724
    %v2829 = vunpack.c.l.b16 %v2725
    %v2830 = vunpack.c.h.b16 %v2725
    %v2831 = vunpack.c.l.b16 %v2726
    %v2832 = vunpack.c.h.b16 %v2726
    %v2833 = vunpack.c.l.b16 %v2727
    %v2834 = vunpack.c.h.b16 %v2727
    %v2835 = vpack.c.b16 %v2773, %v2771
    %v2836 = vpack.c.b16 %v2774, %v2772
    %v2837 = vpack.c.b16 %v2777, %v2775
    %v2838 = vpack.c.b16 %v2778, %v2776
    %v2839 = vpack.c.b16 %v2781, %v2779
    %v2840 = vpack.c.b16 %v2782, %v2780
    %v2841 = vpack.c.b16 %v2785, %v2783
    %v2842 = vpack.c.b16 %v2786, %v2784
    %v2843 = vpack.c.b16 %v2789, %v2787
    %v2844 = vpack.c.b16 %v2790, %v2788
    %v2845 = vpack.c.b16 %v2793, %v2791
    %v2846 = vpack.c.b16 %v2794, %v2792
    %v2847 = vpack.c.b16 %v2797, %v2795
    %v2848 = vpack.c.b16 %v2798, %v2796
    %v2849 = vpack.c.b16 %v2801, %v2799
    %v2850 = vpack.c.b16 %v2802, %v2800
    %v2851 = vpack.c.b16 %v2805, %v2803
    %v2852 = vpack.c.b16 %v2806, %v2804
    %v2853 = vpack.c.b16 %v2809, %v2807
    %v2854 = vpack.c.b16 %v2810, %v2808
    %v2855 = vpack.c.b16 %v2813, %v2811
    %v2856 = vpack.c.b16 %v2814, %v2812
    %v2857 = vpack.c.b16 %v2817, %v2815
    %v2858 = vpack.c.b16 %v2818, %v2816
    %v2859 = vpack.c.b16 %v2821, %v2819
    %v2860 = vpack.c.b16 %v2822, %v2820
    %v2861 = vpack.c.b16 %v2825, %v2823
    %v2862 = vpack.c.b16 %v2826, %v2824
    %v2863 = vpack.c.b16 %v2829, %v2827
    %v2864 = vpack.c.b16 %v2830, %v2828
    %v2865 = vpack.c.b16 %v2833, %v2831
    %v2866 = vpack.c.b16 %v2834, %v2832
    %2899 = vmatprep.subr.bf16.mxu0 %v2836
    %2900 = vmatpush1.bf16.msra.mxu0 %v2835
    %2901 = vmatprep.subr.bf16.mxu0 %v2838
    %2902 = vmatpush1.bf16.msra.mxu0 %v2837
    %2903 = vmatprep.subr.bf16.mxu0 %v2840
    %2904 = vmatpush1.bf16.msra.mxu0 %v2839
    %2905 = vmatprep.subr.bf16.mxu0 %v2842
    %2906 = vmatpush1.bf16.msra.mxu0 %v2841
    %2907 = vmatprep.subr.bf16.mxu0 %v2844
    %2908 = vmatpush1.bf16.msra.mxu0 %v2843
    %2909 = vmatprep.subr.bf16.mxu0 %v2846
    %2910 = vmatpush1.bf16.msra.mxu0 %v2845
    %2911 = vmatprep.subr.bf16.mxu0 %v2848
    %2912 = vmatpush1.bf16.msra.mxu0 %v2847
    %2913 = vmatprep.subr.bf16.mxu0 %v2850
    %2914 = vmatpush1.bf16.msra.mxu0 %v2849
    %2915 = vmatprep.subr.bf16.mxu0 %v2852
    %2916 = vmatpush1.bf16.msra.mxu0 %v2851
    %2917 = vmatprep.subr.bf16.mxu0 %v2854
    %2918 = vmatpush1.bf16.msra.mxu0 %v2853
    %2919 = vmatprep.subr.bf16.mxu0 %v2856
    %2920 = vmatpush1.bf16.msra.mxu0 %v2855
    %2921 = vmatprep.subr.bf16.mxu0 %v2858
    %2922 = vmatpush1.bf16.msra.mxu0 %v2857
    %2923 = vmatprep.subr.bf16.mxu0 %v2860
    %2924 = vmatpush1.bf16.msra.mxu0 %v2859
    %2925 = vmatprep.subr.bf16.mxu0 %v2862
    %2926 = vmatpush1.bf16.msra.mxu0 %v2861
    %2927 = vmatprep.subr.bf16.mxu0 %v2864
    %2928 = vmatpush1.bf16.msra.mxu0 %v2863
    %2929 = vmatprep.subr.bf16.mxu0 %v2866
    %2930 = vmatpush1.bf16.msra.mxu0 %v2865
    %2931 = vmatprep.mubr.bf16.mxu0 %v2664
    %2932 = vmatmul.mubr.bf16.gmra.mrb[0].mxu0 %v2663
    %v2933 = vpop.f32.mrb[0].mxu0
    %v2934 = vadd.f32 %v2732, %v2933
    %v2935 = vpop.f32.mrb[0].mxu0
    %v2936 = vadd.f32 %v2736, %v2935
    %v2937 = vpop.f32.mrb[0].mxu0
    %v2938 = vadd.f32 %v2732, %v2937
    %v2939 = vpop.f32.mrb[0].mxu0
    %v2940 = vadd.f32 %v2736, %v2939
    %2941 = vmatprep.mubr.bf16.mxu0 %v2666
    %2942 = vmatmul.mubr.bf16.gmra.mrb[0].mxu0 %v2665
    %v2943 = vpop.f32.mrb[0].mxu0
    %v2944 = vadd.f32 %v2732, %v2943
    %v2945 = vpop.f32.mrb[0].mxu0
    %v2946 = vadd.f32 %v2736, %v2945
    %v2947 = vpop.f32.mrb[0].mxu0
    %v2948 = vadd.f32 %v2732, %v2947
    %v2949 = vpop.f32.mrb[0].mxu0
    %v2950 = vadd.f32 %v2736, %v2949
    %2951 = vmatprep.mubr.bf16.mxu0 %v2668
    %2952 = vmatmul.mubr.bf16.gmra.mrb[0].mxu0 %v2667
    %v2953 = vpop.f32.mrb[0].mxu0
    %v2954 = vadd.f32 %v2732, %v2953
    %v2955 = vpop.f32.mrb[0].mxu0
    %v2956 = vadd.f32 %v2736, %v2955
    %v2957 = vpop.f32.mrb[0].mxu0
    %v2958 = vadd.f32 %v2732, %v2957
    %v2959 = vpop.f32.mrb[0].mxu0
    %v2960 = vadd.f32 %v2736, %v2959
    %2961 = vmatprep.mubr.bf16.mxu0 %v2670
    %2962 = vmatmul.mubr.bf16.gmra.mrb[0].mxu0 %v2669
    %v2963 = vpop.f32.mrb[0].mxu0
    %v2964 = vadd.f32 %v2732, %v2963
    %v2965 = vpop.f32.mrb[0].mxu0
    %v2966 = vadd.f32 %v2736, %v2965
    %v2967 = vpop.f32.mrb[0].mxu0
    %v2968 = vadd.f32 %v2732, %v2967
    %v2969 = vpop.f32.mrb[0].mxu0
    %v2970 = vadd.f32 %v2736, %v2969
    %2971 = vmatprep.mubr.bf16.mxu0 %v2672
    %2972 = vmatmul.mubr.bf16.gmra.mrb[0].mxu0 %v2671
    %v2973 = vpop.f32.mrb[0].mxu0
    %v2974 = vadd.f32 %v2732, %v2973
    %v2975 = vpop.f32.mrb[0].mxu0
    %v2976 = vadd.f32 %v2736, %v2975
    %v2977 = vpop.f32.mrb[0].mxu0
    %v2978 = vadd.f32 %v2732, %v2977
    %v2979 = vpop.f32.mrb[0].mxu0
    %v2980 = vadd.f32 %v2736, %v2979
    %2981 = vmatprep.mubr.bf16.mxu0 %v2674
    %2982 = vmatmul.mubr.bf16.gmra.mrb[0].mxu0 %v2673
    %v2983 = vpop.f32.mrb[0].mxu0
    %v2984 = vadd.f32 %v2732, %v2983
    %v2985 = vpop.f32.mrb[0].mxu0
    %v2986 = vadd.f32 %v2736, %v2985
    %v2987 = vpop.f32.mrb[0].mxu0
    %v2988 = vadd.f32 %v2732, %v2987
    %v2989 = vpop.f32.mrb[0].mxu0
    %v2990 = vadd.f32 %v2736, %v2989
    %2991 = vmatprep.mubr.bf16.mxu0 %v2676
    %2992 = vmatmul.mubr.bf16.gmra.mrb[0].mxu0 %v2675
    %v2993 = vpop.f32.mrb[0].mxu0
    %v2994 = vadd.f32 %v2732, %v2993
    %v2995 = vpop.f32.mrb[0].mxu0
    %v2996 = vadd.f32 %v2736, %v2995
    %v2997 = vpop.f32.mrb[0].mxu0
    %v2998 = vadd.f32 %v2732, %v2997
    %v2999 = vpop.f32.mrb[0].mxu0
    %v3000 = vadd.f32 %v2736, %v2999
    %3001 = vmatprep.mubr.bf16.mxu0 %v2678
    %3002 = vmatmul.mubr.bf16.gmra.mrb[0].mxu0 %v2677
    %v3003 = vpop.f32.mrb[0].mxu0
    %v3004 = vadd.f32 %v2732, %v3003
    %v3005 = vpop.f32.mrb[0].mxu0
    %v3006 = vadd.f32 %v2736, %v3005
    %v3007 = vpop.f32.mrb[0].mxu0
    %v3008 = vadd.f32 %v2732, %v3007
    %v3009 = vpop.f32.mrb[0].mxu0
    %v3010 = vadd.f32 %v2736, %v3009
    %3011 = vmatprep.mubr.bf16.mxu0 %v2680
    %3012 = vmatmul.mubr.bf16.gmra.mrb[0].mxu0 %v2679
    %v3013 = vpop.f32.mrb[0].mxu0
    %v3014 = vadd.f32 %v2732, %v3013
    %v3015 = vpop.f32.mrb[0].mxu0
    %v3016 = vadd.f32 %v2736, %v3015
    %v3017 = vpop.f32.mrb[0].mxu0
    %v3018 = vadd.f32 %v2732, %v3017
    %v3019 = vpop.f32.mrb[0].mxu0
    %v3020 = vadd.f32 %v2736, %v3019
    %3021 = vmatprep.mubr.bf16.mxu0 %v2682
    %3022 = vmatmul.mubr.bf16.gmra.mrb[0].mxu0 %v2681
    %v3023 = vpop.f32.mrb[0].mxu0
    %v3024 = vadd.f32 %v2732, %v3023
    %v3025 = vpop.f32.mrb[0].mxu0
    %v3026 = vadd.f32 %v2736, %v3025
    %v3027 = vpop.f32.mrb[0].mxu0
    %v3028 = vadd.f32 %v2732, %v3027
    %v3029 = vpop.f32.mrb[0].mxu0
    %v3030 = vadd.f32 %v2736, %v3029
    %3031 = vmatprep.mubr.bf16.mxu0 %v2684
    %3032 = vmatmul.mubr.bf16.gmra.mrb[0].mxu0 %v2683
    %v3033 = vpop.f32.mrb[0].mxu0
    %v3034 = vadd.f32 %v2732, %v3033
    %v3035 = vpop.f32.mrb[0].mxu0
    %v3036 = vadd.f32 %v2736, %v3035
    %v3037 = vpop.f32.mrb[0].mxu0
    %v3038 = vadd.f32 %v2732, %v3037
    %v3039 = vpop.f32.mrb[0].mxu0
    %v3040 = vadd.f32 %v2736, %v3039
    %3041 = vmatprep.mubr.bf16.mxu0 %v2686
    %3042 = vmatmul.mubr.bf16.gmra.mrb[0].mxu0 %v2685
    %v3043 = vpop.f32.mrb[0].mxu0
    %v3044 = vadd.f32 %v2732, %v3043
    %v3045 = vpop.f32.mrb[0].mxu0
    %v3046 = vadd.f32 %v2736, %v3045
    %v3047 = vpop.f32.mrb[0].mxu0
    %v3048 = vadd.f32 %v2732, %v3047
    %v3049 = vpop.f32.mrb[0].mxu0
    %v3050 = vadd.f32 %v2736, %v3049
    %3051 = vmatprep.mubr.bf16.mxu0 %v2688
    %3052 = vmatmul.mubr.bf16.gmra.mrb[0].mxu0 %v2687
    %v3053 = vpop.f32.mrb[0].mxu0
    %v3054 = vadd.f32 %v2732, %v3053
    %v3055 = vpop.f32.mrb[0].mxu0
    %v3056 = vadd.f32 %v2736, %v3055
    %v3057 = vpop.f32.mrb[0].mxu0
    %v3058 = vadd.f32 %v2732, %v3057
    %v3059 = vpop.f32.mrb[0].mxu0
    %v3060 = vadd.f32 %v2736, %v3059
    %3061 = vmatprep.mubr.bf16.mxu0 %v2690
    %3062 = vmatmul.mubr.bf16.gmra.mrb[0].mxu0 %v2689
    %v3063 = vpop.f32.mrb[0].mxu0
    %v3064 = vadd.f32 %v2732, %v3063
    %v3065 = vpop.f32.mrb[0].mxu0
    %v3066 = vadd.f32 %v2736, %v3065
    %v3067 = vpop.f32.mrb[0].mxu0
    %v3068 = vadd.f32 %v2732, %v3067
    %v3069 = vpop.f32.mrb[0].mxu0
    %v3070 = vadd.f32 %v2736, %v3069
    %3071 = vmatprep.mubr.bf16.mxu0 %v2692
    %3072 = vmatmul.mubr.bf16.gmra.mrb[0].mxu0 %v2691
    %v3073 = vpop.f32.mrb[0].mxu0
    %v3074 = vadd.f32 %v2732, %v3073
    %v3075 = vpop.f32.mrb[0].mxu0
    %v3076 = vadd.f32 %v2736, %v3075
    %v3077 = vpop.f32.mrb[0].mxu0
    %v3078 = vadd.f32 %v2732, %v3077
    %v3079 = vpop.f32.mrb[0].mxu0
    %v3080 = vadd.f32 %v2736, %v3079
    %3081 = vmatprep.mubr.bf16.mxu0 %v2694
    %3082 = vmatmul.mubr.bf16.gmra.mrb[0].mxu0 %v2693
    %v3083 = vpop.f32.mrb[0].mxu0
    %v3084 = vadd.f32 %v2732, %v3083
    %v3085 = vpop.f32.mrb[0].mxu0
    %v3086 = vadd.f32 %v2736, %v3085
    %v3087 = vpop.f32.mrb[0].mxu0
    %v3088 = vadd.f32 %v2732, %v3087
    %v3089 = vpop.f32.mrb[0].mxu0
    %v3090 = vadd.f32 %v2736, %v3089
    %3091 = vdwg.mxu0
    %v3092 = vtanh.pop %v2934
    %v3093 = vtanh.pop %v2938
    %v3094 = vtanh.pop %v2944
    %v3095 = vtanh.pop %v2948
    %v3096 = vtanh.pop %v2954
    %v3097 = vtanh.pop %v2958
    %v3098 = vtanh.pop %v2964
    %v3099 = vtanh.pop %v2968
    %v3100 = vtanh.pop %v2974
    %v3101 = vtanh.pop %v2978
    %v3102 = vtanh.pop %v2984
    %v3103 = vtanh.pop %v2988
    %v3104 = vtanh.pop %v2994
    %v3105 = vtanh.pop %v2998
    %v3106 = vtanh.pop %v3004
    %v3107 = vtanh.pop %v3008
    %v3108 = vtanh.pop %v3014
    %v3109 = vtanh.pop %v3018
    %v3110 = vtanh.pop %v3024
    %v3111 = vtanh.pop %v3028
    %v3112 = vtanh.pop %v3034
    %v3113 = vtanh.pop %v3038
    %v3114 = vtanh.pop %v3044
    %v3115 = vtanh.pop %v3048
    %v3116 = vtanh.pop %v3054
    %v3117 = vtanh.pop %v3058
    %v3118 = vtanh.pop %v3064
    %v3119 = vtanh.pop %v3068
    %v3120 = vtanh.pop %v3074
    %v3121 = vtanh.pop %v3078
    %v3122 = vtanh.pop %v3084
    %v3123 = vtanh.pop %v3088
    %v3124 = vmul.f32 %v3092, 1.442695
    %v3125 = vpow.pop %v3124
    %v3126 = vmul.f32 %v3093, 1.442695
    %v3127 = vpow.pop %v3126
    %v3128 = vmul.f32 %v3094, 1.442695
    %v3129 = vpow.pop %v3128
    %v3130 = vmul.f32 %v3095, 1.442695
    %v3131 = vpow.pop %v3130
    %v3132 = vmul.f32 %v3096, 1.442695
    %v3133 = vpow.pop %v3132
    %v3134 = vmul.f32 %v3097, 1.442695
    %v3135 = vpow.pop %v3134
    %v3136 = vmul.f32 %v3098, 1.442695
    %v3137 = vpow.pop %v3136
    %v3138 = vmul.f32 %v3099, 1.442695
    %v3139 = vpow.pop %v3138
    %v3140 = vmul.f32 %v3100, 1.442695
    %v3141 = vpow.pop %v3140
    %v3142 = vmul.f32 %v3101, 1.442695
    %v3143 = vpow.pop %v3142
    %v3144 = vmul.f32 %v3102, 1.442695
    %v3145 = vpow.pop %v3144
    %v3146 = vmul.f32 %v3103, 1.442695
    %v3147 = vpow.pop %v3146
    %v3148 = vmul.f32 %v3104, 1.442695
    %v3149 = vpow.pop %v3148
    %v3150 = vmul.f32 %v3105, 1.442695
    %v3151 = vpow.pop %v3150
    %v3152 = vmul.f32 %v3106, 1.442695
    %v3153 = vpow.pop %v3152
    %v3154 = vmul.f32 %v3107, 1.442695
    %v3155 = vpow.pop %v3154
    %v3156 = vmul.f32 %v3108, 1.442695
    %v3157 = vpow.pop %v3156
    %v3158 = vmul.f32 %v3109, 1.442695
    %v3159 = vpow.pop %v3158
    %v3160 = vmul.f32 %v3110, 1.442695
    %v3161 = vpow.pop %v3160
    %v3162 = vmul.f32 %v3111, 1.442695
    %v3163 = vpow.pop %v3162
    %v3164 = vmul.f32 %v3112, 1.442695
    %v3165 = vpow.pop %v3164
    %v3166 = vmul.f32 %v3113, 1.442695
    %v3167 = vpow.pop %v3166
    %v3168 = vmul.f32 %v3114, 1.442695
    %v3169 = vpow.pop %v3168
    %v3170 = vmul.f32 %v3115, 1.442695
    %v3171 = vpow.pop %v3170
    %v3172 = vmul.f32 %v3116, 1.442695
    %v3173 = vpow.pop %v3172
    %v3174 = vmul.f32 %v3117, 1.442695
    %v3175 = vpow.pop %v3174
    %v3176 = vmul.f32 %v3118, 1.442695
    %v3177 = vpow.pop %v3176
    %v3178 = vmul.f32 %v3119, 1.442695
    %v3179 = vpow.pop %v3178
    %v3180 = vmul.f32 %v3120, 1.442695
    %v3181 = vpow.pop %v3180
    %v3182 = vmul.f32 %v3121, 1.442695
    %v3183 = vpow.pop %v3182
    %v3184 = vmul.f32 %v3122, 1.442695
    %v3185 = vpow.pop %v3184
    %v3186 = vmul.f32 %v3123, 1.442695
    %v3187 = vpow.pop %v3186
    %v3188 = vmul.f32 %v1080, %v3125
    %v3189 = vmul.f32 %v1081, %v3127
    %v3190 = vmul.f32 %v1082, %v3129
    %v3191 = vmul.f32 %v1083, %v3131
    %v3192 = vmul.f32 %v1084, %v3133
    %v3193 = vmul.f32 %v1085, %v3135
    %v3194 = vmul.f32 %v1086, %v3137
    %v3195 = vmul.f32 %v1087, %v3139
    %v3196 = vmul.f32 %v1088, %v3141
    %v3197 = vmul.f32 %v1089, %v3143
    %v3198 = vmul.f32 %v1090, %v3145
    %v3199 = vmul.f32 %v1091, %v3147
    %v3200 = vmul.f32 %v1092, %v3149
    %v3201 = vmul.f32 %v1093, %v3151
    %v3202 = vmul.f32 %v1094, %v3153
    %v3203 = vmul.f32 %v1095, %v3155
    %v3204 = vmul.f32 %v1096, %v3157
    %v3205 = vmul.f32 %v1097, %v3159
    %v3206 = vmul.f32 %v1098, %v3161
    %v3207 = vmul.f32 %v1099, %v3163
    %v3208 = vmul.f32 %v1100, %v3165
    %v3209 = vmul.f32 %v1101, %v3167
    %v3210 = vmul.f32 %v1102, %v3169
    %v3211 = vmul.f32 %v1103, %v3171
    %v3212 = vmul.f32 %v1104, %v3173
    %v3213 = vmul.f32 %v1105, %v3175
    %v3214 = vmul.f32 %v1106, %v3177
    %v3215 = vmul.f32 %v1107, %v3179
    %v3216 = vmul.f32 %v1108, %v3181
    %v3217 = vmul.f32 %v1109, %v3183
    %v3218 = vmul.f32 %v1110, %v3185
    %v3219 = vmul.f32 %v1111, %v3187
    %v3220 = vadd.f32 %v3188, %v2936
    %v3221 = vadd.f32 %v3189, %v2940
    %v3222 = vadd.f32 %v3190, %v2946
    %v3223 = vadd.f32 %v3191, %v2950
    %v3224 = vadd.f32 %v3192, %v2956
    %v3225 = vadd.f32 %v3193, %v2960
    %v3226 = vadd.f32 %v3194, %v2966
    %v3227 = vadd.f32 %v3195, %v2970
    %v3228 = vadd.f32 %v3196, %v2976
    %v3229 = vadd.f32 %v3197, %v2980
    %v3230 = vadd.f32 %v3198, %v2986
    %v3231 = vadd.f32 %v3199, %v2990
    %v3232 = vadd.f32 %v3200, %v2996
    %v3233 = vadd.f32 %v3201, %v3000
    %v3234 = vadd.f32 %v3202, %v3006
    %v3235 = vadd.f32 %v3203, %v3010
    %v3236 = vadd.f32 %v3204, %v3016
    %v3237 = vadd.f32 %v3205, %v3020
    %v3238 = vadd.f32 %v3206, %v3026
    %v3239 = vadd.f32 %v3207, %v3030
    %v3240 = vadd.f32 %v3208, %v3036
    %v3241 = vadd.f32 %v3209, %v3040
    %v3242 = vadd.f32 %v3210, %v3046
    %v3243 = vadd.f32 %v3211, %v3050
    %v3244 = vadd.f32 %v3212, %v3056
    %v3245 = vadd.f32 %v3213, %v3060
    %v3246 = vadd.f32 %v3214, %v3066
    %v3247 = vadd.f32 %v3215, %v3070
    %v3248 = vadd.f32 %v3216, %v3076
    %v3249 = vadd.f32 %v3217, %v3080
    %v3250 = vadd.f32 %v3218, %v3086
    %v3251 = vadd.f32 %v3219, %v3090
    %3252 = vadd.xlane.f32.xlu0 %v3092
    %v3253 = vpop.xlane.xlu0 %3252
    %3254 = vadd.xlane.f32.xlu0 %v3093
    %v3255 = vpop.xlane.xlu0 %3254
    %3256 = vadd.xlane.f32.xlu0 %v3094
    %v3257 = vpop.xlane.xlu0 %3256
    %3258 = vadd.xlane.f32.xlu0 %v3095
    %v3259 = vpop.xlane.xlu0 %3258
    %3260 = vadd.xlane.f32.xlu0 %v3096
    %v3261 = vpop.xlane.xlu0 %3260
    %3262 = vadd.xlane.f32.xlu0 %v3097
    %v3263 = vpop.xlane.xlu0 %3262
    %3264 = vadd.xlane.f32.xlu0 %v3098
    %v3265 = vpop.xlane.xlu0 %3264
    %3266 = vadd.xlane.f32.xlu0 %v3099
    %v3267 = vpop.xlane.xlu0 %3266
    %3268 = vadd.xlane.f32.xlu0 %v3100
    %v3269 = vpop.xlane.xlu0 %3268
    %3270 = vadd.xlane.f32.xlu0 %v3101
    %v3271 = vpop.xlane.xlu0 %3270
    %3272 = vadd.xlane.f32.xlu0 %v3102
    %v3273 = vpop.xlane.xlu0 %3272
    %3274 = vadd.xlane.f32.xlu0 %v3103
    %v3275 = vpop.xlane.xlu0 %3274
    %3276 = vadd.xlane.f32.xlu0 %v3104
    %v3277 = vpop.xlane.xlu0 %3276
    %3278 = vadd.xlane.f32.xlu0 %v3105
    %v3279 = vpop.xlane.xlu0 %3278
    %3280 = vadd.xlane.f32.xlu0 %v3106
    %v3281 = vpop.xlane.xlu0 %3280
    %3282 = vadd.xlane.f32.xlu0 %v3107
    %v3283 = vpop.xlane.xlu0 %3282
    %3284 = vadd.xlane.f32.xlu0 %v3108
    %v3285 = vpop.xlane.xlu0 %3284
    %3286 = vadd.xlane.f32.xlu0 %v3109
    %v3287 = vpop.xlane.xlu0 %3286
    %3288 = vadd.xlane.f32.xlu0 %v3110
    %v3289 = vpop.xlane.xlu0 %3288
    %3290 = vadd.xlane.f32.xlu0 %v3111
    %v3291 = vpop.xlane.xlu0 %3290
    %3292 = vadd.xlane.f32.xlu0 %v3112
    %v3293 = vpop.xlane.xlu0 %3292
    %3294 = vadd.xlane.f32.xlu0 %v3113
    %v3295 = vpop.xlane.xlu0 %3294
    %3296 = vadd.xlane.f32.xlu0 %v3114
    %v3297 = vpop.xlane.xlu0 %3296
    %3298 = vadd.xlane.f32.xlu0 %v3115
    %v3299 = vpop.xlane.xlu0 %3298
    %3300 = vadd.xlane.f32.xlu0 %v3116
    %v3301 = vpop.xlane.xlu0 %3300
    %3302 = vadd.xlane.f32.xlu0 %v3117
    %v3303 = vpop.xlane.xlu0 %3302
    %3304 = vadd.xlane.f32.xlu0 %v3118
    %v3305 = vpop.xlane.xlu0 %3304
    %3306 = vadd.xlane.f32.xlu0 %v3119
    %v3307 = vpop.xlane.xlu0 %3306
    %3308 = vadd.xlane.f32.xlu0 %v3120
    %v3309 = vpop.xlane.xlu0 %3308
    %3310 = vadd.xlane.f32.xlu0 %v3121
    %v3311 = vpop.xlane.xlu0 %3310
    %3312 = vadd.xlane.f32.xlu0 %v3122
    %v3313 = vpop.xlane.xlu0 %3312
    %3314 = vadd.xlane.f32.xlu0 %v3123
    %v3315 = vpop.xlane.xlu0 %3314
    %v3316 = vadd.f32 %v2246, %v3253
    %v3317 = vadd.f32 %v2247, %v3255
    %v3318 = vadd.f32 %v2248, %v3257
    %v3319 = vadd.f32 %v2249, %v3259
    %v3320 = vadd.f32 %v2250, %v3261
    %v3321 = vadd.f32 %v2251, %v3263
    %v3322 = vadd.f32 %v2252, %v3265
    %v3323 = vadd.f32 %v2253, %v3267
    %v3324 = vadd.f32 %v2254, %v3269
    %v3325 = vadd.f32 %v2255, %v3271
    %v3326 = vadd.f32 %v2256, %v3273
    %v3327 = vadd.f32 %v2257, %v3275
    %v3328 = vadd.f32 %v2258, %v3277
    %v3329 = vadd.f32 %v2259, %v3279
    %v3330 = vadd.f32 %v2260, %v3281
    %v3331 = vadd.f32 %v2261, %v3283
    %v3332 = vadd.f32 %v2262, %v3285
    %v3333 = vadd.f32 %v2263, %v3287
    %v3334 = vadd.f32 %v2264, %v3289
    %v3335 = vadd.f32 %v2265, %v3291
    %v3336 = vadd.f32 %v2266, %v3293
    %v3337 = vadd.f32 %v2267, %v3295
    %v3338 = vadd.f32 %v2268, %v3297
    %v3339 = vadd.f32 %v2269, %v3299
    %v3340 = vadd.f32 %v2270, %v3301
    %v3341 = vadd.f32 %v2271, %v3303
    %v3342 = vadd.f32 %v2272, %v3305
    %v3343 = vadd.f32 %v2273, %v3307
    %v3344 = vadd.f32 %v2274, %v3309
    %v3345 = vadd.f32 %v2275, %v3311
    %v3346 = vadd.f32 %v2276, %v3313
    %v3347 = vadd.f32 %v2277, %v3315
    %3348 = vst [vmem:[#allocation10] sm:$0xff] %v3220
    %3349 = vst [vmem:[#allocation10 + $0x10] sm:$0xff] %v3221
    %3350 = vst [vmem:[#allocation10 + $0x20] sm:$0xff] %v3222
    %3351 = vst [vmem:[#allocation10 + $0x30] sm:$0xff] %v3223
    %3352 = vst [vmem:[#allocation10 + $0x40] sm:$0xff] %v3224
    %3353 = vst [vmem:[#allocation10 + $0x50] sm:$0xff] %v3225
    %3354 = vst [vmem:[#allocation10 + $0x60] sm:$0xff] %v3226
    %3355 = vst [vmem:[#allocation10 + $0x70] sm:$0xff] %v3227
    %3356 = vst [vmem:[#allocation10 + $0x80] sm:$0xff] %v3228
    %3357 = vst [vmem:[#allocation10 + $0x90] sm:$0xff] %v3229
    %3358 = vst [vmem:[#allocation10 + $0xa0] sm:$0xff] %v3230
    %3359 = vst [vmem:[#allocation10 + $0xb0] sm:$0xff] %v3231
    %3360 = vst [vmem:[#allocation10 + $0xc0] sm:$0xff] %v3232
    %3361 = vst [vmem:[#allocation10 + $0xd0] sm:$0xff] %v3233
    %3362 = vst [vmem:[#allocation10 + $0xe0] sm:$0xff] %v3234
    %3363 = vst [vmem:[#allocation10 + $0xf0] sm:$0xff] %v3235
    %3364 = vst [vmem:[#allocation10 + $0x100] sm:$0xff] %v3236
    %3365 = vst [vmem:[#allocation10 + $0x110] sm:$0xff] %v3237
    %3366 = vst [vmem:[#allocation10 + $0x120] sm:$0xff] %v3238
    %3367 = vst [vmem:[#allocation10 + $0x130] sm:$0xff] %v3239
    %3368 = vst [vmem:[#allocation10 + $0x140] sm:$0xff] %v3240
    %3369 = vst [vmem:[#allocation10 + $0x150] sm:$0xff] %v3241
    %3370 = vst [vmem:[#allocation10 + $0x160] sm:$0xff] %v3242
    %3371 = vst [vmem:[#allocation10 + $0x170] sm:$0xff] %v3243
    %3372 = vst [vmem:[#allocation10 + $0x180] sm:$0xff] %v3244
    %3373 = vst [vmem:[#allocation10 + $0x190] sm:$0xff] %v3245
    %3374 = vst [vmem:[#allocation10 + $0x1a0] sm:$0xff] %v3246
    %3375 = vst [vmem:[#allocation10 + $0x1b0] sm:$0xff] %v3247
    %3376 = vst [vmem:[#allocation10 + $0x1c0] sm:$0xff] %v3248
    %3377 = vst [vmem:[#allocation10 + $0x1d0] sm:$0xff] %v3249
    %3378 = vst [vmem:[#allocation10 + $0x1e0] sm:$0xff] %v3250
    %3379 = vst [vmem:[#allocation10 + $0x1f0] sm:$0xff] %v3251
    %3380 = vst [vmem:[#allocation10 + $0x8] sm:$0xff] %v2150
    %3381 = vst [vmem:[#allocation10 + $0x18] sm:$0xff] %v2151
    %3382 = vst [vmem:[#allocation10 + $0x28] sm:$0xff] %v2152
    %3383 = vst [vmem:[#allocation10 + $0x38] sm:$0xff] %v2153
    %3384 = vst [vmem:[#allocation10 + $0x48] sm:$0xff] %v2154
    %3385 = vst [vmem:[#allocation10 + $0x58] sm:$0xff] %v2155
    %3386 = vst [vmem:[#allocation10 + $0x68] sm:$0xff] %v2156
    %3387 = vst [vmem:[#allocation10 + $0x78] sm:$0xff] %v2157
    %3388 = vst [vmem:[#allocation10 + $0x88] sm:$0xff] %v2158
    %3389 = vst [vmem:[#allocation10 + $0x98] sm:$0xff] %v2159
    %3390 = vst [vmem:[#allocation10 + $0xa8] sm:$0xff] %v2160
    %3391 = vst [vmem:[#allocation10 + $0xb8] sm:$0xff] %v2161
    %3392 = vst [vmem:[#allocation10 + $0xc8] sm:$0xff] %v2162
    %3393 = vst [vmem:[#allocation10 + $0xd8] sm:$0xff] %v2163
    %3394 = vst [vmem:[#allocation10 + $0xe8] sm:$0xff] %v2164
    %3395 = vst [vmem:[#allocation10 + $0xf8] sm:$0xff] %v2165
    %3396 = vst [vmem:[#allocation10 + $0x108] sm:$0xff] %v2166
    %3397 = vst [vmem:[#allocation10 + $0x118] sm:$0xff] %v2167
    %3398 = vst [vmem:[#allocation10 + $0x128] sm:$0xff] %v2168
    %3399 = vst [vmem:[#allocation10 + $0x138] sm:$0xff] %v2169
    %3400 = vst [vmem:[#allocation10 + $0x148] sm:$0xff] %v2170
    %3401 = vst [vmem:[#allocation10 + $0x158] sm:$0xff] %v2171
    %3402 = vst [vmem:[#allocation10 + $0x168] sm:$0xff] %v2172
    %3403 = vst [vmem:[#allocation10 + $0x178] sm:$0xff] %v2173
    %3404 = vst [vmem:[#allocation10 + $0x188] sm:$0xff] %v2174
    %3405 = vst [vmem:[#allocation10 + $0x198] sm:$0xff] %v2175
    %3406 = vst [vmem:[#allocation10 + $0x1a8] sm:$0xff] %v2176
    %3407 = vst [vmem:[#allocation10 + $0x1b8] sm:$0xff] %v2177
    %3408 = vst [vmem:[#allocation10 + $0x1c8] sm:$0xff] %v2178
    %3409 = vst [vmem:[#allocation10 + $0x1d8] sm:$0xff] %v2179
    %3410 = vst [vmem:[#allocation10 + $0x1e8] sm:$0xff] %v2180
    %3411 = vst [vmem:[#allocation10 + $0x1f8] sm:$0xff] %v2181
    %v3444 = vlaneseq
    %v3445 = vshrl.u32 %v3444, 7
    %v3446 = vsub.s32 0, %v3445
    %v3447 = vrot.slane %v3316, %v3446
    %v3448 = vlaneseq
    %v3449 = vshrl.u32 %v3448, 7
    %v3450 = vsub.s32 1, %v3449
    %v3451 = vrot.slane %v3316, %v3450
    %v3452 = vlaneseq
    %v3453 = vshrl.u32 %v3452, 7
    %v3454 = vsub.s32 2, %v3453
    %v3455 = vrot.slane %v3316, %v3454
    %v3456 = vlaneseq
    %v3457 = vshrl.u32 %v3456, 7
    %v3458 = vsub.s32 3, %v3457
    %v3459 = vrot.slane %v3316, %v3458
    %v3460 = vlaneseq
    %v3461 = vshrl.u32 %v3460, 7
    %v3462 = vsub.s32 4, %v3461
    %v3463 = vrot.slane %v3316, %v3462
    %v3464 = vlaneseq
    %v3465 = vshrl.u32 %v3464, 7
    %v3466 = vsub.s32 5, %v3465
    %v3467 = vrot.slane %v3316, %v3466
    %v3468 = vlaneseq
    %v3469 = vshrl.u32 %v3468, 7
    %v3470 = vsub.s32 6, %v3469
    %v3471 = vrot.slane %v3316, %v3470
    %v3472 = vlaneseq
    %v3473 = vshrl.u32 %v3472, 7
    %v3474 = vsub.s32 7, %v3473
    %v3475 = vrot.slane %v3316, %v3474
    %v3476 = vlaneseq
    %v3477 = vshrl.u32 %v3476, 7
    %v3478 = vsub.s32 0, %v3477
    %v3479 = vrot.slane %v3317, %v3478
    %v3480 = vlaneseq
    %v3481 = vshrl.u32 %v3480, 7
    %v3482 = vsub.s32 1, %v3481
    %v3483 = vrot.slane %v3317, %v3482
    %v3484 = vlaneseq
    %v3485 = vshrl.u32 %v3484, 7
    %v3486 = vsub.s32 2, %v3485
    %v3487 = vrot.slane %v3317, %v3486
    %v3488 = vlaneseq
    %v3489 = vshrl.u32 %v3488, 7
    %v3490 = vsub.s32 3, %v3489
    %v3491 = vrot.slane %v3317, %v3490
    %v3492 = vlaneseq
    %v3493 = vshrl.u32 %v3492, 7
    %v3494 = vsub.s32 4, %v3493
    %v3495 = vrot.slane %v3317, %v3494
    %v3496 = vlaneseq
    %v3497 = vshrl.u32 %v3496, 7
    %v3498 = vsub.s32 5, %v3497
    %v3499 = vrot.slane %v3317, %v3498
    %v3500 = vlaneseq
    %v3501 = vshrl.u32 %v3500, 7
    %v3502 = vsub.s32 6, %v3501
    %v3503 = vrot.slane %v3317, %v3502
    %v3504 = vlaneseq
    %v3505 = vshrl.u32 %v3504, 7
    %v3506 = vsub.s32 7, %v3505
    %v3507 = vrot.slane %v3317, %v3506
    %v3508 = vlaneseq
    %v3509 = vshrl.u32 %v3508, 7
    %v3510 = vsub.s32 0, %v3509
    %v3511 = vrot.slane %v3318, %v3510
    %v3512 = vlaneseq
    %v3513 = vshrl.u32 %v3512, 7
    %v3514 = vsub.s32 1, %v3513
    %v3515 = vrot.slane %v3318, %v3514
    %v3516 = vlaneseq
    %v3517 = vshrl.u32 %v3516, 7
    %v3518 = vsub.s32 2, %v3517
    %v3519 = vrot.slane %v3318, %v3518
    %v3520 = vlaneseq
    %v3521 = vshrl.u32 %v3520, 7
    %v3522 = vsub.s32 3, %v3521
    %v3523 = vrot.slane %v3318, %v3522
    %v3524 = vlaneseq
    %v3525 = vshrl.u32 %v3524, 7
    %v3526 = vsub.s32 4, %v3525
    %v3527 = vrot.slane %v3318, %v3526
    %v3528 = vlaneseq
    %v3529 = vshrl.u32 %v3528, 7
    %v3530 = vsub.s32 5, %v3529
    %v3531 = vrot.slane %v3318, %v3530
    %v3532 = vlaneseq
    %v3533 = vshrl.u32 %v3532, 7
    %v3534 = vsub.s32 6, %v3533
    %v3535 = vrot.slane %v3318, %v3534
    %v3536 = vlaneseq
    %v3537 = vshrl.u32 %v3536, 7
    %v3538 = vsub.s32 7, %v3537
    %v3539 = vrot.slane %v3318, %v3538
    %v3540 = vlaneseq
    %v3541 = vshrl.u32 %v3540, 7
    %v3542 = vsub.s32 0, %v3541
    %v3543 = vrot.slane %v3319, %v3542
    %v3544 = vlaneseq
    %v3545 = vshrl.u32 %v3544, 7
    %v3546 = vsub.s32 1, %v3545
    %v3547 = vrot.slane %v3319, %v3546
    %v3548 = vlaneseq
    %v3549 = vshrl.u32 %v3548, 7
    %v3550 = vsub.s32 2, %v3549
    %v3551 = vrot.slane %v3319, %v3550
    %v3552 = vlaneseq
    %v3553 = vshrl.u32 %v3552, 7
    %v3554 = vsub.s32 3, %v3553
    %v3555 = vrot.slane %v3319, %v3554
    %v3556 = vlaneseq
    %v3557 = vshrl.u32 %v3556, 7
    %v3558 = vsub.s32 4, %v3557
    %v3559 = vrot.slane %v3319, %v3558
    %v3560 = vlaneseq
    %v3561 = vshrl.u32 %v3560, 7
    %v3562 = vsub.s32 5, %v3561
    %v3563 = vrot.slane %v3319, %v3562
    %v3564 = vlaneseq
    %v3565 = vshrl.u32 %v3564, 7
    %v3566 = vsub.s32 6, %v3565
    %v3567 = vrot.slane %v3319, %v3566
    %v3568 = vlaneseq
    %v3569 = vshrl.u32 %v3568, 7
    %v3570 = vsub.s32 7, %v3569
    %v3571 = vrot.slane %v3319, %v3570
    %v3572 = vlaneseq
    %v3573 = vshrl.u32 %v3572, 7
    %v3574 = vsub.s32 0, %v3573
    %v3575 = vrot.slane %v3320, %v3574
    %v3576 = vlaneseq
    %v3577 = vshrl.u32 %v3576, 7
    %v3578 = vsub.s32 1, %v3577
    %v3579 = vrot.slane %v3320, %v3578
    %v3580 = vlaneseq
    %v3581 = vshrl.u32 %v3580, 7
    %v3582 = vsub.s32 2, %v3581
    %v3583 = vrot.slane %v3320, %v3582
    %v3584 = vlaneseq
    %v3585 = vshrl.u32 %v3584, 7
    %v3586 = vsub.s32 3, %v3585
    %v3587 = vrot.slane %v3320, %v3586
    %v3588 = vlaneseq
    %v3589 = vshrl.u32 %v3588, 7
    %v3590 = vsub.s32 4, %v3589
    %v3591 = vrot.slane %v3320, %v3590
    %v3592 = vlaneseq
    %v3593 = vshrl.u32 %v3592, 7
    %v3594 = vsub.s32 5, %v3593
    %v3595 = vrot.slane %v3320, %v3594
    %v3596 = vlaneseq
    %v3597 = vshrl.u32 %v3596, 7
    %v3598 = vsub.s32 6, %v3597
    %v3599 = vrot.slane %v3320, %v3598
    %v3600 = vlaneseq
    %v3601 = vshrl.u32 %v3600, 7
    %v3602 = vsub.s32 7, %v3601
    %v3603 = vrot.slane %v3320, %v3602
    %v3604 = vlaneseq
    %v3605 = vshrl.u32 %v3604, 7
    %v3606 = vsub.s32 0, %v3605
    %v3607 = vrot.slane %v3321, %v3606
    %v3608 = vlaneseq
    %v3609 = vshrl.u32 %v3608, 7
    %v3610 = vsub.s32 1, %v3609
    %v3611 = vrot.slane %v3321, %v3610
    %v3612 = vlaneseq
    %v3613 = vshrl.u32 %v3612, 7
    %v3614 = vsub.s32 2, %v3613
    %v3615 = vrot.slane %v3321, %v3614
    %v3616 = vlaneseq
    %v3617 = vshrl.u32 %v3616, 7
    %v3618 = vsub.s32 3, %v3617
    %v3619 = vrot.slane %v3321, %v3618
    %v3620 = vlaneseq
    %v3621 = vshrl.u32 %v3620, 7
    %v3622 = vsub.s32 4, %v3621
    %v3623 = vrot.slane %v3321, %v3622
    %v3624 = vlaneseq
    %v3625 = vshrl.u32 %v3624, 7
    %v3626 = vsub.s32 5, %v3625
    %v3627 = vrot.slane %v3321, %v3626
    %v3628 = vlaneseq
    %v3629 = vshrl.u32 %v3628, 7
    %v3630 = vsub.s32 6, %v3629
    %v3631 = vrot.slane %v3321, %v3630
    %v3632 = vlaneseq
    %v3633 = vshrl.u32 %v3632, 7
    %v3634 = vsub.s32 7, %v3633
    %v3635 = vrot.slane %v3321, %v3634
    %v3636 = vlaneseq
    %v3637 = vshrl.u32 %v3636, 7
    %v3638 = vsub.s32 0, %v3637
    %v3639 = vrot.slane %v3322, %v3638
    %v3640 = vlaneseq
    %v3641 = vshrl.u32 %v3640, 7
    %v3642 = vsub.s32 1, %v3641
    %v3643 = vrot.slane %v3322, %v3642
    %v3644 = vlaneseq
    %v3645 = vshrl.u32 %v3644, 7
    %v3646 = vsub.s32 2, %v3645
    %v3647 = vrot.slane %v3322, %v3646
    %v3648 = vlaneseq
    %v3649 = vshrl.u32 %v3648, 7
    %v3650 = vsub.s32 3, %v3649
    %v3651 = vrot.slane %v3322, %v3650
    %v3652 = vlaneseq
    %v3653 = vshrl.u32 %v3652, 7
    %v3654 = vsub.s32 4, %v3653
    %v3655 = vrot.slane %v3322, %v3654
    %v3656 = vlaneseq
    %v3657 = vshrl.u32 %v3656, 7
    %v3658 = vsub.s32 5, %v3657
    %v3659 = vrot.slane %v3322, %v3658
    %v3660 = vlaneseq
    %v3661 = vshrl.u32 %v3660, 7
    %v3662 = vsub.s32 6, %v3661
    %v3663 = vrot.slane %v3322, %v3662
    %v3664 = vlaneseq
    %v3665 = vshrl.u32 %v3664, 7
    %v3666 = vsub.s32 7, %v3665
    %v3667 = vrot.slane %v3322, %v3666
    %v3668 = vlaneseq
    %v3669 = vshrl.u32 %v3668, 7
    %v3670 = vsub.s32 0, %v3669
    %v3671 = vrot.slane %v3323, %v3670
    %v3672 = vlaneseq
    %v3673 = vshrl.u32 %v3672, 7
    %v3674 = vsub.s32 1, %v3673
    %v3675 = vrot.slane %v3323, %v3674
    %v3676 = vlaneseq
    %v3677 = vshrl.u32 %v3676, 7
    %v3678 = vsub.s32 2, %v3677
    %v3679 = vrot.slane %v3323, %v3678
    %v3680 = vlaneseq
    %v3681 = vshrl.u32 %v3680, 7
    %v3682 = vsub.s32 3, %v3681
    %v3683 = vrot.slane %v3323, %v3682
    %v3684 = vlaneseq
    %v3685 = vshrl.u32 %v3684, 7
    %v3686 = vsub.s32 4, %v3685
    %v3687 = vrot.slane %v3323, %v3686
    %v3688 = vlaneseq
    %v3689 = vshrl.u32 %v3688, 7
    %v3690 = vsub.s32 5, %v3689
    %v3691 = vrot.slane %v3323, %v3690
    %v3692 = vlaneseq
    %v3693 = vshrl.u32 %v3692, 7
    %v3694 = vsub.s32 6, %v3693
    %v3695 = vrot.slane %v3323, %v3694
    %v3696 = vlaneseq
    %v3697 = vshrl.u32 %v3696, 7
    %v3698 = vsub.s32 7, %v3697
    %v3699 = vrot.slane %v3323, %v3698
    %v3700 = vlaneseq
    %v3701 = vshrl.u32 %v3700, 7
    %v3702 = vsub.s32 0, %v3701
    %v3703 = vrot.slane %v3324, %v3702
    %v3704 = vlaneseq
    %v3705 = vshrl.u32 %v3704, 7
    %v3706 = vsub.s32 1, %v3705
    %v3707 = vrot.slane %v3324, %v3706
    %v3708 = vlaneseq
    %v3709 = vshrl.u32 %v3708, 7
    %v3710 = vsub.s32 2, %v3709
    %v3711 = vrot.slane %v3324, %v3710
    %v3712 = vlaneseq
    %v3713 = vshrl.u32 %v3712, 7
    %v3714 = vsub.s32 3, %v3713
    %v3715 = vrot.slane %v3324, %v3714
    %v3716 = vlaneseq
    %v3717 = vshrl.u32 %v3716, 7
    %v3718 = vsub.s32 4, %v3717
    %v3719 = vrot.slane %v3324, %v3718
    %v3720 = vlaneseq
    %v3721 = vshrl.u32 %v3720, 7
    %v3722 = vsub.s32 5, %v3721
    %v3723 = vrot.slane %v3324, %v3722
    %v3724 = vlaneseq
    %v3725 = vshrl.u32 %v3724, 7
    %v3726 = vsub.s32 6, %v3725
    %v3727 = vrot.slane %v3324, %v3726
    %v3728 = vlaneseq
    %v3729 = vshrl.u32 %v3728, 7
    %v3730 = vsub.s32 7, %v3729
    %v3731 = vrot.slane %v3324, %v3730
    %v3732 = vlaneseq
    %v3733 = vshrl.u32 %v3732, 7
    %v3734 = vsub.s32 0, %v3733
    %v3735 = vrot.slane %v3325, %v3734
    %v3736 = vlaneseq
    %v3737 = vshrl.u32 %v3736, 7
    %v3738 = vsub.s32 1, %v3737
    %v3739 = vrot.slane %v3325, %v3738
    %v3740 = vlaneseq
    %v3741 = vshrl.u32 %v3740, 7
    %v3742 = vsub.s32 2, %v3741
    %v3743 = vrot.slane %v3325, %v3742
    %v3744 = vlaneseq
    %v3745 = vshrl.u32 %v3744, 7
    %v3746 = vsub.s32 3, %v3745
    %v3747 = vrot.slane %v3325, %v3746
    %v3748 = vlaneseq
    %v3749 = vshrl.u32 %v3748, 7
    %v3750 = vsub.s32 4, %v3749
    %v3751 = vrot.slane %v3325, %v3750
    %v3752 = vlaneseq
    %v3753 = vshrl.u32 %v3752, 7
    %v3754 = vsub.s32 5, %v3753
    %v3755 = vrot.slane %v3325, %v3754
    %v3756 = vlaneseq
    %v3757 = vshrl.u32 %v3756, 7
    %v3758 = vsub.s32 6, %v3757
    %v3759 = vrot.slane %v3325, %v3758
    %v3760 = vlaneseq
    %v3761 = vshrl.u32 %v3760, 7
    %v3762 = vsub.s32 7, %v3761
    %v3763 = vrot.slane %v3325, %v3762
    %v3764 = vlaneseq
    %v3765 = vshrl.u32 %v3764, 7
    %v3766 = vsub.s32 0, %v3765
    %v3767 = vrot.slane %v3326, %v3766
    %v3768 = vlaneseq
    %v3769 = vshrl.u32 %v3768, 7
    %v3770 = vsub.s32 1, %v3769
    %v3771 = vrot.slane %v3326, %v3770
    %v3772 = vlaneseq
    %v3773 = vshrl.u32 %v3772, 7
    %v3774 = vsub.s32 2, %v3773
    %v3775 = vrot.slane %v3326, %v3774
    %v3776 = vlaneseq
    %v3777 = vshrl.u32 %v3776, 7
    %v3778 = vsub.s32 3, %v3777
    %v3779 = vrot.slane %v3326, %v3778
    %v3780 = vlaneseq
    %v3781 = vshrl.u32 %v3780, 7
    %v3782 = vsub.s32 4, %v3781
    %v3783 = vrot.slane %v3326, %v3782
    %v3784 = vlaneseq
    %v3785 = vshrl.u32 %v3784, 7
    %v3786 = vsub.s32 5, %v3785
    %v3787 = vrot.slane %v3326, %v3786
    %v3788 = vlaneseq
    %v3789 = vshrl.u32 %v3788, 7
    %v3790 = vsub.s32 6, %v3789
    %v3791 = vrot.slane %v3326, %v3790
    %v3792 = vlaneseq
    %v3793 = vshrl.u32 %v3792, 7
    %v3794 = vsub.s32 7, %v3793
    %v3795 = vrot.slane %v3326, %v3794
    %v3796 = vlaneseq
    %v3797 = vshrl.u32 %v3796, 7
    %v3798 = vsub.s32 0, %v3797
    %v3799 = vrot.slane %v3327, %v3798
    %v3800 = vlaneseq
    %v3801 = vshrl.u32 %v3800, 7
    %v3802 = vsub.s32 1, %v3801
    %v3803 = vrot.slane %v3327, %v3802
    %v3804 = vlaneseq
    %v3805 = vshrl.u32 %v3804, 7
    %v3806 = vsub.s32 2, %v3805
    %v3807 = vrot.slane %v3327, %v3806
    %v3808 = vlaneseq
    %v3809 = vshrl.u32 %v3808, 7
    %v3810 = vsub.s32 3, %v3809
    %v3811 = vrot.slane %v3327, %v3810
    %v3812 = vlaneseq
    %v3813 = vshrl.u32 %v3812, 7
    %v3814 = vsub.s32 4, %v3813
    %v3815 = vrot.slane %v3327, %v3814
    %v3816 = vlaneseq
    %v3817 = vshrl.u32 %v3816, 7
    %v3818 = vsub.s32 5, %v3817
    %v3819 = vrot.slane %v3327, %v3818
    %v3820 = vlaneseq
    %v3821 = vshrl.u32 %v3820, 7
    %v3822 = vsub.s32 6, %v3821
    %v3823 = vrot.slane %v3327, %v3822
    %v3824 = vlaneseq
    %v3825 = vshrl.u32 %v3824, 7
    %v3826 = vsub.s32 7, %v3825
    %v3827 = vrot.slane %v3327, %v3826
    %v3828 = vlaneseq
    %v3829 = vshrl.u32 %v3828, 7
    %v3830 = vsub.s32 0, %v3829
    %v3831 = vrot.slane %v3328, %v3830
    %v3832 = vlaneseq
    %v3833 = vshrl.u32 %v3832, 7
    %v3834 = vsub.s32 1, %v3833
    %v3835 = vrot.slane %v3328, %v3834
    %v3836 = vlaneseq
    %v3837 = vshrl.u32 %v3836, 7
    %v3838 = vsub.s32 2, %v3837
    %v3839 = vrot.slane %v3328, %v3838
    %v3840 = vlaneseq
    %v3841 = vshrl.u32 %v3840, 7
    %v3842 = vsub.s32 3, %v3841
    %v3843 = vrot.slane %v3328, %v3842
    %v3844 = vlaneseq
    %v3845 = vshrl.u32 %v3844, 7
    %v3846 = vsub.s32 4, %v3845
    %v3847 = vrot.slane %v3328, %v3846
    %v3848 = vlaneseq
    %v3849 = vshrl.u32 %v3848, 7
    %v3850 = vsub.s32 5, %v3849
    %v3851 = vrot.slane %v3328, %v3850
    %v3852 = vlaneseq
    %v3853 = vshrl.u32 %v3852, 7
    %v3854 = vsub.s32 6, %v3853
    %v3855 = vrot.slane %v3328, %v3854
    %v3856 = vlaneseq
    %v3857 = vshrl.u32 %v3856, 7
    %v3858 = vsub.s32 7, %v3857
    %v3859 = vrot.slane %v3328, %v3858
    %v3860 = vlaneseq
    %v3861 = vshrl.u32 %v3860, 7
    %v3862 = vsub.s32 0, %v3861
    %v3863 = vrot.slane %v3329, %v3862
    %v3864 = vlaneseq
    %v3865 = vshrl.u32 %v3864, 7
    %v3866 = vsub.s32 1, %v3865
    %v3867 = vrot.slane %v3329, %v3866
    %v3868 = vlaneseq
    %v3869 = vshrl.u32 %v3868, 7
    %v3870 = vsub.s32 2, %v3869
    %v3871 = vrot.slane %v3329, %v3870
    %v3872 = vlaneseq
    %v3873 = vshrl.u32 %v3872, 7
    %v3874 = vsub.s32 3, %v3873
    %v3875 = vrot.slane %v3329, %v3874
    %v3876 = vlaneseq
    %v3877 = vshrl.u32 %v3876, 7
    %v3878 = vsub.s32 4, %v3877
    %v3879 = vrot.slane %v3329, %v3878
    %v3880 = vlaneseq
    %v3881 = vshrl.u32 %v3880, 7
    %v3882 = vsub.s32 5, %v3881
    %v3883 = vrot.slane %v3329, %v3882
    %v3884 = vlaneseq
    %v3885 = vshrl.u32 %v3884, 7
    %v3886 = vsub.s32 6, %v3885
    %v3887 = vrot.slane %v3329, %v3886
    %v3888 = vlaneseq
    %v3889 = vshrl.u32 %v3888, 7
    %v3890 = vsub.s32 7, %v3889
    %v3891 = vrot.slane %v3329, %v3890
    %v3892 = vlaneseq
    %v3893 = vshrl.u32 %v3892, 7
    %v3894 = vsub.s32 0, %v3893
    %v3895 = vrot.slane %v3330, %v3894
    %v3896 = vlaneseq
    %v3897 = vshrl.u32 %v3896, 7
    %v3898 = vsub.s32 1, %v3897
    %v3899 = vrot.slane %v3330, %v3898
    %v3900 = vlaneseq
    %v3901 = vshrl.u32 %v3900, 7
    %v3902 = vsub.s32 2, %v3901
    %v3903 = vrot.slane %v3330, %v3902
    %v3904 = vlaneseq
    %v3905 = vshrl.u32 %v3904, 7
    %v3906 = vsub.s32 3, %v3905
    %v3907 = vrot.slane %v3330, %v3906
    %v3908 = vlaneseq
    %v3909 = vshrl.u32 %v3908, 7
    %v3910 = vsub.s32 4, %v3909
    %v3911 = vrot.slane %v3330, %v3910
    %v3912 = vlaneseq
    %v3913 = vshrl.u32 %v3912, 7
    %v3914 = vsub.s32 5, %v3913
    %v3915 = vrot.slane %v3330, %v3914
    %v3916 = vlaneseq
    %v3917 = vshrl.u32 %v3916, 7
    %v3918 = vsub.s32 6, %v3917
    %v3919 = vrot.slane %v3330, %v3918
    %v3920 = vlaneseq
    %v3921 = vshrl.u32 %v3920, 7
    %v3922 = vsub.s32 7, %v3921
    %v3923 = vrot.slane %v3330, %v3922
    %v3924 = vlaneseq
    %v3925 = vshrl.u32 %v3924, 7
    %v3926 = vsub.s32 0, %v3925
    %v3927 = vrot.slane %v3331, %v3926
    %v3928 = vlaneseq
    %v3929 = vshrl.u32 %v3928, 7
    %v3930 = vsub.s32 1, %v3929
    %v3931 = vrot.slane %v3331, %v3930
    %v3932 = vlaneseq
    %v3933 = vshrl.u32 %v3932, 7
    %v3934 = vsub.s32 2, %v3933
    %v3935 = vrot.slane %v3331, %v3934
    %v3936 = vlaneseq
    %v3937 = vshrl.u32 %v3936, 7
    %v3938 = vsub.s32 3, %v3937
    %v3939 = vrot.slane %v3331, %v3938
    %v3940 = vlaneseq
    %v3941 = vshrl.u32 %v3940, 7
    %v3942 = vsub.s32 4, %v3941
    %v3943 = vrot.slane %v3331, %v3942
    %v3944 = vlaneseq
    %v3945 = vshrl.u32 %v3944, 7
    %v3946 = vsub.s32 5, %v3945
    %v3947 = vrot.slane %v3331, %v3946
    %v3948 = vlaneseq
    %v3949 = vshrl.u32 %v3948, 7
    %v3950 = vsub.s32 6, %v3949
    %v3951 = vrot.slane %v3331, %v3950
    %v3952 = vlaneseq
    %v3953 = vshrl.u32 %v3952, 7
    %v3954 = vsub.s32 7, %v3953
    %v3955 = vrot.slane %v3331, %v3954
    %v3956 = vlaneseq
    %v3957 = vshrl.u32 %v3956, 7
    %v3958 = vsub.s32 0, %v3957
    %v3959 = vrot.slane %v3332, %v3958
    %v3960 = vlaneseq
    %v3961 = vshrl.u32 %v3960, 7
    %v3962 = vsub.s32 1, %v3961
    %v3963 = vrot.slane %v3332, %v3962
    %v3964 = vlaneseq
    %v3965 = vshrl.u32 %v3964, 7
    %v3966 = vsub.s32 2, %v3965
    %v3967 = vrot.slane %v3332, %v3966
    %v3968 = vlaneseq
    %v3969 = vshrl.u32 %v3968, 7
    %v3970 = vsub.s32 3, %v3969
    %v3971 = vrot.slane %v3332, %v3970
    %v3972 = vlaneseq
    %v3973 = vshrl.u32 %v3972, 7
    %v3974 = vsub.s32 4, %v3973
    %v3975 = vrot.slane %v3332, %v3974
    %v3976 = vlaneseq
    %v3977 = vshrl.u32 %v3976, 7
    %v3978 = vsub.s32 5, %v3977
    %v3979 = vrot.slane %v3332, %v3978
    %v3980 = vlaneseq
    %v3981 = vshrl.u32 %v3980, 7
    %v3982 = vsub.s32 6, %v3981
    %v3983 = vrot.slane %v3332, %v3982
    %v3984 = vlaneseq
    %v3985 = vshrl.u32 %v3984, 7
    %v3986 = vsub.s32 7, %v3985
    %v3987 = vrot.slane %v3332, %v3986
    %v3988 = vlaneseq
    %v3989 = vshrl.u32 %v3988, 7
    %v3990 = vsub.s32 0, %v3989
    %v3991 = vrot.slane %v3333, %v3990
    %v3992 = vlaneseq
    %v3993 = vshrl.u32 %v3992, 7
    %v3994 = vsub.s32 1, %v3993
    %v3995 = vrot.slane %v3333, %v3994
    %v3996 = vlaneseq
    %v3997 = vshrl.u32 %v3996, 7
    %v3998 = vsub.s32 2, %v3997
    %v3999 = vrot.slane %v3333, %v3998
    %v4000 = vlaneseq
    %v4001 = vshrl.u32 %v4000, 7
    %v4002 = vsub.s32 3, %v4001
    %v4003 = vrot.slane %v3333, %v4002
    %v4004 = vlaneseq
    %v4005 = vshrl.u32 %v4004, 7
    %v4006 = vsub.s32 4, %v4005
    %v4007 = vrot.slane %v3333, %v4006
    %v4008 = vlaneseq
    %v4009 = vshrl.u32 %v4008, 7
    %v4010 = vsub.s32 5, %v4009
    %v4011 = vrot.slane %v3333, %v4010
    %v4012 = vlaneseq
    %v4013 = vshrl.u32 %v4012, 7
    %v4014 = vsub.s32 6, %v4013
    %v4015 = vrot.slane %v3333, %v4014
    %v4016 = vlaneseq
    %v4017 = vshrl.u32 %v4016, 7
    %v4018 = vsub.s32 7, %v4017
    %v4019 = vrot.slane %v3333, %v4018
    %v4020 = vlaneseq
    %v4021 = vshrl.u32 %v4020, 7
    %v4022 = vsub.s32 0, %v4021
    %v4023 = vrot.slane %v3334, %v4022
    %v4024 = vlaneseq
    %v4025 = vshrl.u32 %v4024, 7
    %v4026 = vsub.s32 1, %v4025
    %v4027 = vrot.slane %v3334, %v4026
    %v4028 = vlaneseq
    %v4029 = vshrl.u32 %v4028, 7
    %v4030 = vsub.s32 2, %v4029
    %v4031 = vrot.slane %v3334, %v4030
    %v4032 = vlaneseq
    %v4033 = vshrl.u32 %v4032, 7
    %v4034 = vsub.s32 3, %v4033
    %v4035 = vrot.slane %v3334, %v4034
    %v4036 = vlaneseq
    %v4037 = vshrl.u32 %v4036, 7
    %v4038 = vsub.s32 4, %v4037
    %v4039 = vrot.slane %v3334, %v4038
    %v4040 = vlaneseq
    %v4041 = vshrl.u32 %v4040, 7
    %v4042 = vsub.s32 5, %v4041
    %v4043 = vrot.slane %v3334, %v4042
    %v4044 = vlaneseq
    %v4045 = vshrl.u32 %v4044, 7
    %v4046 = vsub.s32 6, %v4045
    %v4047 = vrot.slane %v3334, %v4046
    %v4048 = vlaneseq
    %v4049 = vshrl.u32 %v4048, 7
    %v4050 = vsub.s32 7, %v4049
    %v4051 = vrot.slane %v3334, %v4050
    %v4052 = vlaneseq
    %v4053 = vshrl.u32 %v4052, 7
    %v4054 = vsub.s32 0, %v4053
    %v4055 = vrot.slane %v3335, %v4054
    %v4056 = vlaneseq
    %v4057 = vshrl.u32 %v4056, 7
    %v4058 = vsub.s32 1, %v4057
    %v4059 = vrot.slane %v3335, %v4058
    %v4060 = vlaneseq
    %v4061 = vshrl.u32 %v4060, 7
    %v4062 = vsub.s32 2, %v4061
    %v4063 = vrot.slane %v3335, %v4062
    %v4064 = vlaneseq
    %v4065 = vshrl.u32 %v4064, 7
    %v4066 = vsub.s32 3, %v4065
    %v4067 = vrot.slane %v3335, %v4066
    %v4068 = vlaneseq
    %v4069 = vshrl.u32 %v4068, 7
    %v4070 = vsub.s32 4, %v4069
    %v4071 = vrot.slane %v3335, %v4070
    %v4072 = vlaneseq
    %v4073 = vshrl.u32 %v4072, 7
    %v4074 = vsub.s32 5, %v4073
    %v4075 = vrot.slane %v3335, %v4074
    %v4076 = vlaneseq
    %v4077 = vshrl.u32 %v4076, 7
    %v4078 = vsub.s32 6, %v4077
    %v4079 = vrot.slane %v3335, %v4078
    %v4080 = vlaneseq
    %v4081 = vshrl.u32 %v4080, 7
    %v4082 = vsub.s32 7, %v4081
    %v4083 = vrot.slane %v3335, %v4082
    %v4084 = vlaneseq
    %v4085 = vshrl.u32 %v4084, 7
    %v4086 = vsub.s32 0, %v4085
    %v4087 = vrot.slane %v3336, %v4086
    %v4088 = vlaneseq
    %v4089 = vshrl.u32 %v4088, 7
    %v4090 = vsub.s32 1, %v4089
    %v4091 = vrot.slane %v3336, %v4090
    %v4092 = vlaneseq
    %v4093 = vshrl.u32 %v4092, 7
    %v4094 = vsub.s32 2, %v4093
    %v4095 = vrot.slane %v3336, %v4094
    %v4096 = vlaneseq
    %v4097 = vshrl.u32 %v4096, 7
    %v4098 = vsub.s32 3, %v4097
    %v4099 = vrot.slane %v3336, %v4098
    %v4100 = vlaneseq
    %v4101 = vshrl.u32 %v4100, 7
    %v4102 = vsub.s32 4, %v4101
    %v4103 = vrot.slane %v3336, %v4102
    %v4104 = vlaneseq
    %v4105 = vshrl.u32 %v4104, 7
    %v4106 = vsub.s32 5, %v4105
    %v4107 = vrot.slane %v3336, %v4106
    %v4108 = vlaneseq
    %v4109 = vshrl.u32 %v4108, 7
    %v4110 = vsub.s32 6, %v4109
    %v4111 = vrot.slane %v3336, %v4110
    %v4112 = vlaneseq
    %v4113 = vshrl.u32 %v4112, 7
    %v4114 = vsub.s32 7, %v4113
    %v4115 = vrot.slane %v3336, %v4114
    %v4116 = vlaneseq
    %v4117 = vshrl.u32 %v4116, 7
    %v4118 = vsub.s32 0, %v4117
    %v4119 = vrot.slane %v3337, %v4118
    %v4120 = vlaneseq
    %v4121 = vshrl.u32 %v4120, 7
    %v4122 = vsub.s32 1, %v4121
    %v4123 = vrot.slane %v3337, %v4122
    %v4124 = vlaneseq
    %v4125 = vshrl.u32 %v4124, 7
    %v4126 = vsub.s32 2, %v4125
    %v4127 = vrot.slane %v3337, %v4126
    %v4128 = vlaneseq
    %v4129 = vshrl.u32 %v4128, 7
    %v4130 = vsub.s32 3, %v4129
    %v4131 = vrot.slane %v3337, %v4130
    %v4132 = vlaneseq
    %v4133 = vshrl.u32 %v4132, 7
    %v4134 = vsub.s32 4, %v4133
    %v4135 = vrot.slane %v3337, %v4134
    %v4136 = vlaneseq
    %v4137 = vshrl.u32 %v4136, 7
    %v4138 = vsub.s32 5, %v4137
    %v4139 = vrot.slane %v3337, %v4138
    %v4140 = vlaneseq
    %v4141 = vshrl.u32 %v4140, 7
    %v4142 = vsub.s32 6, %v4141
    %v4143 = vrot.slane %v3337, %v4142
    %v4144 = vlaneseq
    %v4145 = vshrl.u32 %v4144, 7
    %v4146 = vsub.s32 7, %v4145
    %v4147 = vrot.slane %v3337, %v4146
    %v4148 = vlaneseq
    %v4149 = vshrl.u32 %v4148, 7
    %v4150 = vsub.s32 0, %v4149
    %v4151 = vrot.slane %v3338, %v4150
    %v4152 = vlaneseq
    %v4153 = vshrl.u32 %v4152, 7
    %v4154 = vsub.s32 1, %v4153
    %v4155 = vrot.slane %v3338, %v4154
    %v4156 = vlaneseq
    %v4157 = vshrl.u32 %v4156, 7
    %v4158 = vsub.s32 2, %v4157
    %v4159 = vrot.slane %v3338, %v4158
    %v4160 = vlaneseq
    %v4161 = vshrl.u32 %v4160, 7
    %v4162 = vsub.s32 3, %v4161
    %v4163 = vrot.slane %v3338, %v4162
    %v4164 = vlaneseq
    %v4165 = vshrl.u32 %v4164, 7
    %v4166 = vsub.s32 4, %v4165
    %v4167 = vrot.slane %v3338, %v4166
    %v4168 = vlaneseq
    %v4169 = vshrl.u32 %v4168, 7
    %v4170 = vsub.s32 5, %v4169
    %v4171 = vrot.slane %v3338, %v4170
    %v4172 = vlaneseq
    %v4173 = vshrl.u32 %v4172, 7
    %v4174 = vsub.s32 6, %v4173
    %v4175 = vrot.slane %v3338, %v4174
    %v4176 = vlaneseq
    %v4177 = vshrl.u32 %v4176, 7
    %v4178 = vsub.s32 7, %v4177
    %v4179 = vrot.slane %v3338, %v4178
    %v4180 = vlaneseq
    %v4181 = vshrl.u32 %v4180, 7
    %v4182 = vsub.s32 0, %v4181
    %v4183 = vrot.slane %v3339, %v4182
    %v4184 = vlaneseq
    %v4185 = vshrl.u32 %v4184, 7
    %v4186 = vsub.s32 1, %v4185
    %v4187 = vrot.slane %v3339, %v4186
    %v4188 = vlaneseq
    %v4189 = vshrl.u32 %v4188, 7
    %v4190 = vsub.s32 2, %v4189
    %v4191 = vrot.slane %v3339, %v4190
    %v4192 = vlaneseq
    %v4193 = vshrl.u32 %v4192, 7
    %v4194 = vsub.s32 3, %v4193
    %v4195 = vrot.slane %v3339, %v4194
    %v4196 = vlaneseq
    %v4197 = vshrl.u32 %v4196, 7
    %v4198 = vsub.s32 4, %v4197
    %v4199 = vrot.slane %v3339, %v4198
    %v4200 = vlaneseq
    %v4201 = vshrl.u32 %v4200, 7
    %v4202 = vsub.s32 5, %v4201
    %v4203 = vrot.slane %v3339, %v4202
    %v4204 = vlaneseq
    %v4205 = vshrl.u32 %v4204, 7
    %v4206 = vsub.s32 6, %v4205
    %v4207 = vrot.slane %v3339, %v4206
    %v4208 = vlaneseq
    %v4209 = vshrl.u32 %v4208, 7
    %v4210 = vsub.s32 7, %v4209
    %v4211 = vrot.slane %v3339, %v4210
    %v4212 = vlaneseq
    %v4213 = vshrl.u32 %v4212, 7
    %v4214 = vsub.s32 0, %v4213
    %v4215 = vrot.slane %v3340, %v4214
    %v4216 = vlaneseq
    %v4217 = vshrl.u32 %v4216, 7
    %v4218 = vsub.s32 1, %v4217
    %v4219 = vrot.slane %v3340, %v4218
    %v4220 = vlaneseq
    %v4221 = vshrl.u32 %v4220, 7
    %v4222 = vsub.s32 2, %v4221
    %v4223 = vrot.slane %v3340, %v4222
    %v4224 = vlaneseq
    %v4225 = vshrl.u32 %v4224, 7
    %v4226 = vsub.s32 3, %v4225
    %v4227 = vrot.slane %v3340, %v4226
    %v4228 = vlaneseq
    %v4229 = vshrl.u32 %v4228, 7
    %v4230 = vsub.s32 4, %v4229
    %v4231 = vrot.slane %v3340, %v4230
    %v4232 = vlaneseq
    %v4233 = vshrl.u32 %v4232, 7
    %v4234 = vsub.s32 5, %v4233
    %v4235 = vrot.slane %v3340, %v4234
    %v4236 = vlaneseq
    %v4237 = vshrl.u32 %v4236, 7
    %v4238 = vsub.s32 6, %v4237
    %v4239 = vrot.slane %v3340, %v4238
    %v4240 = vlaneseq
    %v4241 = vshrl.u32 %v4240, 7
    %v4242 = vsub.s32 7, %v4241
    %v4243 = vrot.slane %v3340, %v4242
    %v4244 = vlaneseq
    %v4245 = vshrl.u32 %v4244, 7
    %v4246 = vsub.s32 0, %v4245
    %v4247 = vrot.slane %v3341, %v4246
    %v4248 = vlaneseq
    %v4249 = vshrl.u32 %v4248, 7
    %v4250 = vsub.s32 1, %v4249
    %v4251 = vrot.slane %v3341, %v4250
    %v4252 = vlaneseq
    %v4253 = vshrl.u32 %v4252, 7
    %v4254 = vsub.s32 2, %v4253
    %v4255 = vrot.slane %v3341, %v4254
    %v4256 = vlaneseq
    %v4257 = vshrl.u32 %v4256, 7
    %v4258 = vsub.s32 3, %v4257
    %v4259 = vrot.slane %v3341, %v4258
    %v4260 = vlaneseq
    %v4261 = vshrl.u32 %v4260, 7
    %v4262 = vsub.s32 4, %v4261
    %v4263 = vrot.slane %v3341, %v4262
    %v4264 = vlaneseq
    %v4265 = vshrl.u32 %v4264, 7
    %v4266 = vsub.s32 5, %v4265
    %v4267 = vrot.slane %v3341, %v4266
    %v4268 = vlaneseq
    %v4269 = vshrl.u32 %v4268, 7
    %v4270 = vsub.s32 6, %v4269
    %v4271 = vrot.slane %v3341, %v4270
    %v4272 = vlaneseq
    %v4273 = vshrl.u32 %v4272, 7
    %v4274 = vsub.s32 7, %v4273
    %v4275 = vrot.slane %v3341, %v4274
    %v4276 = vlaneseq
    %v4277 = vshrl.u32 %v4276, 7
    %v4278 = vsub.s32 0, %v4277
    %v4279 = vrot.slane %v3342, %v4278
    %v4280 = vlaneseq
    %v4281 = vshrl.u32 %v4280, 7
    %v4282 = vsub.s32 1, %v4281
    %v4283 = vrot.slane %v3342, %v4282
    %v4284 = vlaneseq
    %v4285 = vshrl.u32 %v4284, 7
    %v4286 = vsub.s32 2, %v4285
    %v4287 = vrot.slane %v3342, %v4286
    %v4288 = vlaneseq
    %v4289 = vshrl.u32 %v4288, 7
    %v4290 = vsub.s32 3, %v4289
    %v4291 = vrot.slane %v3342, %v4290
    %v4292 = vlaneseq
    %v4293 = vshrl.u32 %v4292, 7
    %v4294 = vsub.s32 4, %v4293
    %v4295 = vrot.slane %v3342, %v4294
    %v4296 = vlaneseq
    %v4297 = vshrl.u32 %v4296, 7
    %v4298 = vsub.s32 5, %v4297
    %v4299 = vrot.slane %v3342, %v4298
    %v4300 = vlaneseq
    %v4301 = vshrl.u32 %v4300, 7
    %v4302 = vsub.s32 6, %v4301
    %v4303 = vrot.slane %v3342, %v4302
    %v4304 = vlaneseq
    %v4305 = vshrl.u32 %v4304, 7
    %v4306 = vsub.s32 7, %v4305
    %v4307 = vrot.slane %v3342, %v4306
    %v4308 = vlaneseq
    %v4309 = vshrl.u32 %v4308, 7
    %v4310 = vsub.s32 0, %v4309
    %v4311 = vrot.slane %v3343, %v4310
    %v4312 = vlaneseq
    %v4313 = vshrl.u32 %v4312, 7
    %v4314 = vsub.s32 1, %v4313
    %v4315 = vrot.slane %v3343, %v4314
    %v4316 = vlaneseq
    %v4317 = vshrl.u32 %v4316, 7
    %v4318 = vsub.s32 2, %v4317
    %v4319 = vrot.slane %v3343, %v4318
    %v4320 = vlaneseq
    %v4321 = vshrl.u32 %v4320, 7
    %v4322 = vsub.s32 3, %v4321
    %v4323 = vrot.slane %v3343, %v4322
    %v4324 = vlaneseq
    %v4325 = vshrl.u32 %v4324, 7
    %v4326 = vsub.s32 4, %v4325
    %v4327 = vrot.slane %v3343, %v4326
    %v4328 = vlaneseq
    %v4329 = vshrl.u32 %v4328, 7
    %v4330 = vsub.s32 5, %v4329
    %v4331 = vrot.slane %v3343, %v4330
    %v4332 = vlaneseq
    %v4333 = vshrl.u32 %v4332, 7
    %v4334 = vsub.s32 6, %v4333
    %v4335 = vrot.slane %v3343, %v4334
    %v4336 = vlaneseq
    %v4337 = vshrl.u32 %v4336, 7
    %v4338 = vsub.s32 7, %v4337
    %v4339 = vrot.slane %v3343, %v4338
    %v4340 = vlaneseq
    %v4341 = vshrl.u32 %v4340, 7
    %v4342 = vsub.s32 0, %v4341
    %v4343 = vrot.slane %v3344, %v4342
    %v4344 = vlaneseq
    %v4345 = vshrl.u32 %v4344, 7
    %v4346 = vsub.s32 1, %v4345
    %v4347 = vrot.slane %v3344, %v4346
    %v4348 = vlaneseq
    %v4349 = vshrl.u32 %v4348, 7
    %v4350 = vsub.s32 2, %v4349
    %v4351 = vrot.slane %v3344, %v4350
    %v4352 = vlaneseq
    %v4353 = vshrl.u32 %v4352, 7
    %v4354 = vsub.s32 3, %v4353
    %v4355 = vrot.slane %v3344, %v4354
    %v4356 = vlaneseq
    %v4357 = vshrl.u32 %v4356, 7
    %v4358 = vsub.s32 4, %v4357
    %v4359 = vrot.slane %v3344, %v4358
    %v4360 = vlaneseq
    %v4361 = vshrl.u32 %v4360, 7
    %v4362 = vsub.s32 5, %v4361
    %v4363 = vrot.slane %v3344, %v4362
    %v4364 = vlaneseq
    %v4365 = vshrl.u32 %v4364, 7
    %v4366 = vsub.s32 6, %v4365
    %v4367 = vrot.slane %v3344, %v4366
    %v4368 = vlaneseq
    %v4369 = vshrl.u32 %v4368, 7
    %v4370 = vsub.s32 7, %v4369
    %v4371 = vrot.slane %v3344, %v4370
    %v4372 = vlaneseq
    %v4373 = vshrl.u32 %v4372, 7
    %v4374 = vsub.s32 0, %v4373
    %v4375 = vrot.slane %v3345, %v4374
    %v4376 = vlaneseq
    %v4377 = vshrl.u32 %v4376, 7
    %v4378 = vsub.s32 1, %v4377
    %v4379 = vrot.slane %v3345, %v4378
    %v4380 = vlaneseq
    %v4381 = vshrl.u32 %v4380, 7
    %v4382 = vsub.s32 2, %v4381
    %v4383 = vrot.slane %v3345, %v4382
    %v4384 = vlaneseq
    %v4385 = vshrl.u32 %v4384, 7
    %v4386 = vsub.s32 3, %v4385
    %v4387 = vrot.slane %v3345, %v4386
    %v4388 = vlaneseq
    %v4389 = vshrl.u32 %v4388, 7
    %v4390 = vsub.s32 4, %v4389
    %v4391 = vrot.slane %v3345, %v4390
    %v4392 = vlaneseq
    %v4393 = vshrl.u32 %v4392, 7
    %v4394 = vsub.s32 5, %v4393
    %v4395 = vrot.slane %v3345, %v4394
    %v4396 = vlaneseq
    %v4397 = vshrl.u32 %v4396, 7
    %v4398 = vsub.s32 6, %v4397
    %v4399 = vrot.slane %v3345, %v4398
    %v4400 = vlaneseq
    %v4401 = vshrl.u32 %v4400, 7
    %v4402 = vsub.s32 7, %v4401
    %v4403 = vrot.slane %v3345, %v4402
    %v4404 = vlaneseq
    %v4405 = vshrl.u32 %v4404, 7
    %v4406 = vsub.s32 0, %v4405
    %v4407 = vrot.slane %v3346, %v4406
    %v4408 = vlaneseq
    %v4409 = vshrl.u32 %v4408, 7
    %v4410 = vsub.s32 1, %v4409
    %v4411 = vrot.slane %v3346, %v4410
    %v4412 = vlaneseq
    %v4413 = vshrl.u32 %v4412, 7
    %v4414 = vsub.s32 2, %v4413
    %v4415 = vrot.slane %v3346, %v4414
    %v4416 = vlaneseq
    %v4417 = vshrl.u32 %v4416, 7
    %v4418 = vsub.s32 3, %v4417
    %v4419 = vrot.slane %v3346, %v4418
    %v4420 = vlaneseq
    %v4421 = vshrl.u32 %v4420, 7
    %v4422 = vsub.s32 4, %v4421
    %v4423 = vrot.slane %v3346, %v4422
    %v4424 = vlaneseq
    %v4425 = vshrl.u32 %v4424, 7
    %v4426 = vsub.s32 5, %v4425
    %v4427 = vrot.slane %v3346, %v4426
    %v4428 = vlaneseq
    %v4429 = vshrl.u32 %v4428, 7
    %v4430 = vsub.s32 6, %v4429
    %v4431 = vrot.slane %v3346, %v4430
    %v4432 = vlaneseq
    %v4433 = vshrl.u32 %v4432, 7
    %v4434 = vsub.s32 7, %v4433
    %v4435 = vrot.slane %v3346, %v4434
    %v4436 = vlaneseq
    %v4437 = vshrl.u32 %v4436, 7
    %v4438 = vsub.s32 0, %v4437
    %v4439 = vrot.slane %v3347, %v4438
    %v4440 = vlaneseq
    %v4441 = vshrl.u32 %v4440, 7
    %v4442 = vsub.s32 1, %v4441
    %v4443 = vrot.slane %v3347, %v4442
    %v4444 = vlaneseq
    %v4445 = vshrl.u32 %v4444, 7
    %v4446 = vsub.s32 2, %v4445
    %v4447 = vrot.slane %v3347, %v4446
    %v4448 = vlaneseq
    %v4449 = vshrl.u32 %v4448, 7
    %v4450 = vsub.s32 3, %v4449
    %v4451 = vrot.slane %v3347, %v4450
    %v4452 = vlaneseq
    %v4453 = vshrl.u32 %v4452, 7
    %v4454 = vsub.s32 4, %v4453
    %v4455 = vrot.slane %v3347, %v4454
    %v4456 = vlaneseq
    %v4457 = vshrl.u32 %v4456, 7
    %v4458 = vsub.s32 5, %v4457
    %v4459 = vrot.slane %v3347, %v4458
    %v4460 = vlaneseq
    %v4461 = vshrl.u32 %v4460, 7
    %v4462 = vsub.s32 6, %v4461
    %v4463 = vrot.slane %v3347, %v4462
    %v4464 = vlaneseq
    %v4465 = vshrl.u32 %v4464, 7
    %v4466 = vsub.s32 7, %v4465
    %v4467 = vrot.slane %v3347, %v4466
    %v4468 = vcombine.low %v3447, %v3451
    %v4469 = vcombine.low %v3455, %v3459
    %v4470 = vcombine.low %v3463, %v3467
    %v4471 = vcombine.low %v3471, %v3475
    %v4473 = vunpack.c.l.s4 1966171168
    %v4474 = vunpack.c.0.s8 %v4473
    %v4475 = vlaneseq
    %v4476 = vshrl.u32 %v4475, 7
    %v4477 = vsub.s32 %v4474, %v4476
    %v4478 = vrot.slane %v4468, %v4477
    %v4480 = vunpack.c.l.s4 1966171168
    %v4481 = vunpack.c.0.s8 %v4480
    %v4482 = vlaneseq
    %v4483 = vshrl.u32 %v4482, 7
    %v4484 = vsub.s32 %v4481, %v4483
    %v4485 = vrot.slane %v4469, %v4484
    %v4487 = vunpack.c.l.s4 1966171168
    %v4488 = vunpack.c.0.s8 %v4487
    %v4489 = vlaneseq
    %v4490 = vshrl.u32 %v4489, 7
    %v4491 = vsub.s32 %v4488, %v4490
    %v4492 = vrot.slane %v4470, %v4491
    %v4494 = vunpack.c.l.s4 1966171168
    %v4495 = vunpack.c.0.s8 %v4494
    %v4496 = vlaneseq
    %v4497 = vshrl.u32 %v4496, 7
    %v4498 = vsub.s32 %v4495, %v4497
    %v4499 = vrot.slane %v4471, %v4498
    %v4500 = vcombine.low %v4478, %v4485
    %v4501 = vcombine.low %v4492, %v4499
    %v4503 = vunpack.c.l.s4 1966171168
    %v4504 = vunpack.c.0.s8 %v4503
    %v4505 = vlaneseq
    %v4506 = vshrl.u32 %v4505, 7
    %v4507 = vsub.s32 %v4504, %v4506
    %v4508 = vrot.slane %v4500, %v4507
    %v4510 = vunpack.c.l.s4 1966171168
    %v4511 = vunpack.c.0.s8 %v4510
    %v4512 = vlaneseq
    %v4513 = vshrl.u32 %v4512, 7
    %v4514 = vsub.s32 %v4511, %v4513
    %v4515 = vrot.slane %v4501, %v4514
    %v4516 = vcombine.low %v4508, %v4515
    %v4517 = vcombine.low %v3479, %v3483
    %v4518 = vcombine.low %v3487, %v3491
    %v4519 = vcombine.low %v3495, %v3499
    %v4520 = vcombine.low %v3503, %v3507
    %v4522 = vunpack.c.l.s4 1966171168
    %v4523 = vunpack.c.0.s8 %v4522
    %v4524 = vlaneseq
    %v4525 = vshrl.u32 %v4524, 7
    %v4526 = vsub.s32 %v4523, %v4525
    %v4527 = vrot.slane %v4517, %v4526
    %v4529 = vunpack.c.l.s4 1966171168
    %v4530 = vunpack.c.0.s8 %v4529
    %v4531 = vlaneseq
    %v4532 = vshrl.u32 %v4531, 7
    %v4533 = vsub.s32 %v4530, %v4532
    %v4534 = vrot.slane %v4518, %v4533
    %v4536 = vunpack.c.l.s4 1966171168
    %v4537 = vunpack.c.0.s8 %v4536
    %v4538 = vlaneseq
    %v4539 = vshrl.u32 %v4538, 7
    %v4540 = vsub.s32 %v4537, %v4539
    %v4541 = vrot.slane %v4519, %v4540
    %v4543 = vunpack.c.l.s4 1966171168
    %v4544 = vunpack.c.0.s8 %v4543
    %v4545 = vlaneseq
    %v4546 = vshrl.u32 %v4545, 7
    %v4547 = vsub.s32 %v4544, %v4546
    %v4548 = vrot.slane %v4520, %v4547
    %v4549 = vcombine.low %v4527, %v4534
    %v4550 = vcombine.low %v4541, %v4548
    %v4552 = vunpack.c.l.s4 1966171168
    %v4553 = vunpack.c.0.s8 %v4552
    %v4554 = vlaneseq
    %v4555 = vshrl.u32 %v4554, 7
    %v4556 = vsub.s32 %v4553, %v4555
    %v4557 = vrot.slane %v4549, %v4556
    %v4559 = vunpack.c.l.s4 1966171168
    %v4560 = vunpack.c.0.s8 %v4559
    %v4561 = vlaneseq
    %v4562 = vshrl.u32 %v4561, 7
    %v4563 = vsub.s32 %v4560, %v4562
    %v4564 = vrot.slane %v4550, %v4563
    %v4565 = vcombine.low %v4557, %v4564
    %v4566 = vcombine.low %v3511, %v3515
    %v4567 = vcombine.low %v3519, %v3523
    %v4568 = vcombine.low %v3527, %v3531
    %v4569 = vcombine.low %v3535, %v3539
    %v4571 = vunpack.c.l.s4 1966171168
    %v4572 = vunpack.c.0.s8 %v4571
    %v4573 = vlaneseq
    %v4574 = vshrl.u32 %v4573, 7
    %v4575 = vsub.s32 %v4572, %v4574
    %v4576 = vrot.slane %v4566, %v4575
    %v4578 = vunpack.c.l.s4 1966171168
    %v4579 = vunpack.c.0.s8 %v4578
    %v4580 = vlaneseq
    %v4581 = vshrl.u32 %v4580, 7
    %v4582 = vsub.s32 %v4579, %v4581
    %v4583 = vrot.slane %v4567, %v4582
    %v4585 = vunpack.c.l.s4 1966171168
    %v4586 = vunpack.c.0.s8 %v4585
    %v4587 = vlaneseq
    %v4588 = vshrl.u32 %v4587, 7
    %v4589 = vsub.s32 %v4586, %v4588
    %v4590 = vrot.slane %v4568, %v4589
    %v4592 = vunpack.c.l.s4 1966171168
    %v4593 = vunpack.c.0.s8 %v4592
    %v4594 = vlaneseq
    %v4595 = vshrl.u32 %v4594, 7
    %v4596 = vsub.s32 %v4593, %v4595
    %v4597 = vrot.slane %v4569, %v4596
    %v4598 = vcombine.low %v4576, %v4583
    %v4599 = vcombine.low %v4590, %v4597
    %v4601 = vunpack.c.l.s4 1966171168
    %v4602 = vunpack.c.0.s8 %v4601
    %v4603 = vlaneseq
    %v4604 = vshrl.u32 %v4603, 7
    %v4605 = vsub.s32 %v4602, %v4604
    %v4606 = vrot.slane %v4598, %v4605
    %v4608 = vunpack.c.l.s4 1966171168
    %v4609 = vunpack.c.0.s8 %v4608
    %v4610 = vlaneseq
    %v4611 = vshrl.u32 %v4610, 7
    %v4612 = vsub.s32 %v4609, %v4611
    %v4613 = vrot.slane %v4599, %v4612
    %v4614 = vcombine.low %v4606, %v4613
    %v4615 = vcombine.low %v3543, %v3547
    %v4616 = vcombine.low %v3551, %v3555
    %v4617 = vcombine.low %v3559, %v3563
    %v4618 = vcombine.low %v3567, %v3571
    %v4620 = vunpack.c.l.s4 1966171168
    %v4621 = vunpack.c.0.s8 %v4620
    %v4622 = vlaneseq
    %v4623 = vshrl.u32 %v4622, 7
    %v4624 = vsub.s32 %v4621, %v4623
    %v4625 = vrot.slane %v4615, %v4624
    %v4627 = vunpack.c.l.s4 1966171168
    %v4628 = vunpack.c.0.s8 %v4627
    %v4629 = vlaneseq
    %v4630 = vshrl.u32 %v4629, 7
    %v4631 = vsub.s32 %v4628, %v4630
    %v4632 = vrot.slane %v4616, %v4631
    %v4634 = vunpack.c.l.s4 1966171168
    %v4635 = vunpack.c.0.s8 %v4634
    %v4636 = vlaneseq
    %v4637 = vshrl.u32 %v4636, 7
    %v4638 = vsub.s32 %v4635, %v4637
    %v4639 = vrot.slane %v4617, %v4638
    %v4641 = vunpack.c.l.s4 1966171168
    %v4642 = vunpack.c.0.s8 %v4641
    %v4643 = vlaneseq
    %v4644 = vshrl.u32 %v4643, 7
    %v4645 = vsub.s32 %v4642, %v4644
    %v4646 = vrot.slane %v4618, %v4645
    %v4647 = vcombine.low %v4625, %v4632
    %v4648 = vcombine.low %v4639, %v4646
    %v4650 = vunpack.c.l.s4 1966171168
    %v4651 = vunpack.c.0.s8 %v4650
    %v4652 = vlaneseq
    %v4653 = vshrl.u32 %v4652, 7
    %v4654 = vsub.s32 %v4651, %v4653
    %v4655 = vrot.slane %v4647, %v4654
    %v4657 = vunpack.c.l.s4 1966171168
    %v4658 = vunpack.c.0.s8 %v4657
    %v4659 = vlaneseq
    %v4660 = vshrl.u32 %v4659, 7
    %v4661 = vsub.s32 %v4658, %v4660
    %v4662 = vrot.slane %v4648, %v4661
    %v4663 = vcombine.low %v4655, %v4662
    %v4664 = vcombine.low %v3575, %v3579
    %v4665 = vcombine.low %v3583, %v3587
    %v4666 = vcombine.low %v3591, %v3595
    %v4667 = vcombine.low %v3599, %v3603
    %v4669 = vunpack.c.l.s4 1966171168
    %v4670 = vunpack.c.0.s8 %v4669
    %v4671 = vlaneseq
    %v4672 = vshrl.u32 %v4671, 7
    %v4673 = vsub.s32 %v4670, %v4672
    %v4674 = vrot.slane %v4664, %v4673
    %v4676 = vunpack.c.l.s4 1966171168
    %v4677 = vunpack.c.0.s8 %v4676
    %v4678 = vlaneseq
    %v4679 = vshrl.u32 %v4678, 7
    %v4680 = vsub.s32 %v4677, %v4679
    %v4681 = vrot.slane %v4665, %v4680
    %v4683 = vunpack.c.l.s4 1966171168
    %v4684 = vunpack.c.0.s8 %v4683
    %v4685 = vlaneseq
    %v4686 = vshrl.u32 %v4685, 7
    %v4687 = vsub.s32 %v4684, %v4686
    %v4688 = vrot.slane %v4666, %v4687
    %v4690 = vunpack.c.l.s4 1966171168
    %v4691 = vunpack.c.0.s8 %v4690
    %v4692 = vlaneseq
    %v4693 = vshrl.u32 %v4692, 7
    %v4694 = vsub.s32 %v4691, %v4693
    %v4695 = vrot.slane %v4667, %v4694
    %v4696 = vcombine.low %v4674, %v4681
    %v4697 = vcombine.low %v4688, %v4695
    %v4699 = vunpack.c.l.s4 1966171168
    %v4700 = vunpack.c.0.s8 %v4699
    %v4701 = vlaneseq
    %v4702 = vshrl.u32 %v4701, 7
    %v4703 = vsub.s32 %v4700, %v4702
    %v4704 = vrot.slane %v4696, %v4703
    %v4706 = vunpack.c.l.s4 1966171168
    %v4707 = vunpack.c.0.s8 %v4706
    %v4708 = vlaneseq
    %v4709 = vshrl.u32 %v4708, 7
    %v4710 = vsub.s32 %v4707, %v4709
    %v4711 = vrot.slane %v4697, %v4710
    %v4712 = vcombine.low %v4704, %v4711
    %v4713 = vcombine.low %v3607, %v3611
    %v4714 = vcombine.low %v3615, %v3619
    %v4715 = vcombine.low %v3623, %v3627
    %v4716 = vcombine.low %v3631, %v3635
    %v4718 = vunpack.c.l.s4 1966171168
    %v4719 = vunpack.c.0.s8 %v4718
    %v4720 = vlaneseq
    %v4721 = vshrl.u32 %v4720, 7
    %v4722 = vsub.s32 %v4719, %v4721
    %v4723 = vrot.slane %v4713, %v4722
    %v4725 = vunpack.c.l.s4 1966171168
    %v4726 = vunpack.c.0.s8 %v4725
    %v4727 = vlaneseq
    %v4728 = vshrl.u32 %v4727, 7
    %v4729 = vsub.s32 %v4726, %v4728
    %v4730 = vrot.slane %v4714, %v4729
    %v4732 = vunpack.c.l.s4 1966171168
    %v4733 = vunpack.c.0.s8 %v4732
    %v4734 = vlaneseq
    %v4735 = vshrl.u32 %v4734, 7
    %v4736 = vsub.s32 %v4733, %v4735
    %v4737 = vrot.slane %v4715, %v4736
    %v4739 = vunpack.c.l.s4 1966171168
    %v4740 = vunpack.c.0.s8 %v4739
    %v4741 = vlaneseq
    %v4742 = vshrl.u32 %v4741, 7
    %v4743 = vsub.s32 %v4740, %v4742
    %v4744 = vrot.slane %v4716, %v4743
    %v4745 = vcombine.low %v4723, %v4730
    %v4746 = vcombine.low %v4737, %v4744
    %v4748 = vunpack.c.l.s4 1966171168
    %v4749 = vunpack.c.0.s8 %v4748
    %v4750 = vlaneseq
    %v4751 = vshrl.u32 %v4750, 7
    %v4752 = vsub.s32 %v4749, %v4751
    %v4753 = vrot.slane %v4745, %v4752
    %v4755 = vunpack.c.l.s4 1966171168
    %v4756 = vunpack.c.0.s8 %v4755
    %v4757 = vlaneseq
    %v4758 = vshrl.u32 %v4757, 7
    %v4759 = vsub.s32 %v4756, %v4758
    %v4760 = vrot.slane %v4746, %v4759
    %v4761 = vcombine.low %v4753, %v4760
    %v4762 = vcombine.low %v3639, %v3643
    %v4763 = vcombine.low %v3647, %v3651
    %v4764 = vcombine.low %v3655, %v3659
    %v4765 = vcombine.low %v3663, %v3667
    %v4767 = vunpack.c.l.s4 1966171168
    %v4768 = vunpack.c.0.s8 %v4767
    %v4769 = vlaneseq
    %v4770 = vshrl.u32 %v4769, 7
    %v4771 = vsub.s32 %v4768, %v4770
    %v4772 = vrot.slane %v4762, %v4771
    %v4774 = vunpack.c.l.s4 1966171168
    %v4775 = vunpack.c.0.s8 %v4774
    %v4776 = vlaneseq
    %v4777 = vshrl.u32 %v4776, 7
    %v4778 = vsub.s32 %v4775, %v4777
    %v4779 = vrot.slane %v4763, %v4778
    %v4781 = vunpack.c.l.s4 1966171168
    %v4782 = vunpack.c.0.s8 %v4781
    %v4783 = vlaneseq
    %v4784 = vshrl.u32 %v4783, 7
    %v4785 = vsub.s32 %v4782, %v4784
    %v4786 = vrot.slane %v4764, %v4785
    %v4788 = vunpack.c.l.s4 1966171168
    %v4789 = vunpack.c.0.s8 %v4788
    %v4790 = vlaneseq
    %v4791 = vshrl.u32 %v4790, 7
    %v4792 = vsub.s32 %v4789, %v4791
    %v4793 = vrot.slane %v4765, %v4792
    %v4794 = vcombine.low %v4772, %v4779
    %v4795 = vcombine.low %v4786, %v4793
    %v4797 = vunpack.c.l.s4 1966171168
    %v4798 = vunpack.c.0.s8 %v4797
    %v4799 = vlaneseq
    %v4800 = vshrl.u32 %v4799, 7
    %v4801 = vsub.s32 %v4798, %v4800
    %v4802 = vrot.slane %v4794, %v4801
    %v4804 = vunpack.c.l.s4 1966171168
    %v4805 = vunpack.c.0.s8 %v4804
    %v4806 = vlaneseq
    %v4807 = vshrl.u32 %v4806, 7
    %v4808 = vsub.s32 %v4805, %v4807
    %v4809 = vrot.slane %v4795, %v4808
    %v4810 = vcombine.low %v4802, %v4809
    %v4811 = vcombine.low %v3671, %v3675
    %v4812 = vcombine.low %v3679, %v3683
    %v4813 = vcombine.low %v3687, %v3691
    %v4814 = vcombine.low %v3695, %v3699
    %v4816 = vunpack.c.l.s4 1966171168
    %v4817 = vunpack.c.0.s8 %v4816
    %v4818 = vlaneseq
    %v4819 = vshrl.u32 %v4818, 7
    %v4820 = vsub.s32 %v4817, %v4819
    %v4821 = vrot.slane %v4811, %v4820
    %v4823 = vunpack.c.l.s4 1966171168
    %v4824 = vunpack.c.0.s8 %v4823
    %v4825 = vlaneseq
    %v4826 = vshrl.u32 %v4825, 7
    %v4827 = vsub.s32 %v4824, %v4826
    %v4828 = vrot.slane %v4812, %v4827
    %v4830 = vunpack.c.l.s4 1966171168
    %v4831 = vunpack.c.0.s8 %v4830
    %v4832 = vlaneseq
    %v4833 = vshrl.u32 %v4832, 7
    %v4834 = vsub.s32 %v4831, %v4833
    %v4835 = vrot.slane %v4813, %v4834
    %v4837 = vunpack.c.l.s4 1966171168
    %v4838 = vunpack.c.0.s8 %v4837
    %v4839 = vlaneseq
    %v4840 = vshrl.u32 %v4839, 7
    %v4841 = vsub.s32 %v4838, %v4840
    %v4842 = vrot.slane %v4814, %v4841
    %v4843 = vcombine.low %v4821, %v4828
    %v4844 = vcombine.low %v4835, %v4842
    %v4846 = vunpack.c.l.s4 1966171168
    %v4847 = vunpack.c.0.s8 %v4846
    %v4848 = vlaneseq
    %v4849 = vshrl.u32 %v4848, 7
    %v4850 = vsub.s32 %v4847, %v4849
    %v4851 = vrot.slane %v4843, %v4850
    %v4853 = vunpack.c.l.s4 1966171168
    %v4854 = vunpack.c.0.s8 %v4853
    %v4855 = vlaneseq
    %v4856 = vshrl.u32 %v4855, 7
    %v4857 = vsub.s32 %v4854, %v4856
    %v4858 = vrot.slane %v4844, %v4857
    %v4859 = vcombine.low %v4851, %v4858
    %v4860 = vcombine.low %v3703, %v3707
    %v4861 = vcombine.low %v3711, %v3715
    %v4862 = vcombine.low %v3719, %v3723
    %v4863 = vcombine.low %v3727, %v3731
    %v4865 = vunpack.c.l.s4 1966171168
    %v4866 = vunpack.c.0.s8 %v4865
    %v4867 = vlaneseq
    %v4868 = vshrl.u32 %v4867, 7
    %v4869 = vsub.s32 %v4866, %v4868
    %v4870 = vrot.slane %v4860, %v4869
    %v4872 = vunpack.c.l.s4 1966171168
    %v4873 = vunpack.c.0.s8 %v4872
    %v4874 = vlaneseq
    %v4875 = vshrl.u32 %v4874, 7
    %v4876 = vsub.s32 %v4873, %v4875
    %v4877 = vrot.slane %v4861, %v4876
    %v4879 = vunpack.c.l.s4 1966171168
    %v4880 = vunpack.c.0.s8 %v4879
    %v4881 = vlaneseq
    %v4882 = vshrl.u32 %v4881, 7
    %v4883 = vsub.s32 %v4880, %v4882
    %v4884 = vrot.slane %v4862, %v4883
    %v4886 = vunpack.c.l.s4 1966171168
    %v4887 = vunpack.c.0.s8 %v4886
    %v4888 = vlaneseq
    %v4889 = vshrl.u32 %v4888, 7
    %v4890 = vsub.s32 %v4887, %v4889
    %v4891 = vrot.slane %v4863, %v4890
    %v4892 = vcombine.low %v4870, %v4877
    %v4893 = vcombine.low %v4884, %v4891
    %v4895 = vunpack.c.l.s4 1966171168
    %v4896 = vunpack.c.0.s8 %v4895
    %v4897 = vlaneseq
    %v4898 = vshrl.u32 %v4897, 7
    %v4899 = vsub.s32 %v4896, %v4898
    %v4900 = vrot.slane %v4892, %v4899
    %v4902 = vunpack.c.l.s4 1966171168
    %v4903 = vunpack.c.0.s8 %v4902
    %v4904 = vlaneseq
    %v4905 = vshrl.u32 %v4904, 7
    %v4906 = vsub.s32 %v4903, %v4905
    %v4907 = vrot.slane %v4893, %v4906
    %v4908 = vcombine.low %v4900, %v4907
    %v4909 = vcombine.low %v3735, %v3739
    %v4910 = vcombine.low %v3743, %v3747
    %v4911 = vcombine.low %v3751, %v3755
    %v4912 = vcombine.low %v3759, %v3763
    %v4914 = vunpack.c.l.s4 1966171168
    %v4915 = vunpack.c.0.s8 %v4914
    %v4916 = vlaneseq
    %v4917 = vshrl.u32 %v4916, 7
    %v4918 = vsub.s32 %v4915, %v4917
    %v4919 = vrot.slane %v4909, %v4918
    %v4921 = vunpack.c.l.s4 1966171168
    %v4922 = vunpack.c.0.s8 %v4921
    %v4923 = vlaneseq
    %v4924 = vshrl.u32 %v4923, 7
    %v4925 = vsub.s32 %v4922, %v4924
    %v4926 = vrot.slane %v4910, %v4925
    %v4928 = vunpack.c.l.s4 1966171168
    %v4929 = vunpack.c.0.s8 %v4928
    %v4930 = vlaneseq
    %v4931 = vshrl.u32 %v4930, 7
    %v4932 = vsub.s32 %v4929, %v4931
    %v4933 = vrot.slane %v4911, %v4932
    %v4935 = vunpack.c.l.s4 1966171168
    %v4936 = vunpack.c.0.s8 %v4935
    %v4937 = vlaneseq
    %v4938 = vshrl.u32 %v4937, 7
    %v4939 = vsub.s32 %v4936, %v4938
    %v4940 = vrot.slane %v4912, %v4939
    %v4941 = vcombine.low %v4919, %v4926
    %v4942 = vcombine.low %v4933, %v4940
    %v4944 = vunpack.c.l.s4 1966171168
    %v4945 = vunpack.c.0.s8 %v4944
    %v4946 = vlaneseq
    %v4947 = vshrl.u32 %v4946, 7
    %v4948 = vsub.s32 %v4945, %v4947
    %v4949 = vrot.slane %v4941, %v4948
    %v4951 = vunpack.c.l.s4 1966171168
    %v4952 = vunpack.c.0.s8 %v4951
    %v4953 = vlaneseq
    %v4954 = vshrl.u32 %v4953, 7
    %v4955 = vsub.s32 %v4952, %v4954
    %v4956 = vrot.slane %v4942, %v4955
    %v4957 = vcombine.low %v4949, %v4956
    %v4958 = vcombine.low %v3767, %v3771
    %v4959 = vcombine.low %v3775, %v3779
    %v4960 = vcombine.low %v3783, %v3787
    %v4961 = vcombine.low %v3791, %v3795
    %v4963 = vunpack.c.l.s4 1966171168
    %v4964 = vunpack.c.0.s8 %v4963
    %v4965 = vlaneseq
    %v4966 = vshrl.u32 %v4965, 7
    %v4967 = vsub.s32 %v4964, %v4966
    %v4968 = vrot.slane %v4958, %v4967
    %v4970 = vunpack.c.l.s4 1966171168
    %v4971 = vunpack.c.0.s8 %v4970
    %v4972 = vlaneseq
    %v4973 = vshrl.u32 %v4972, 7
    %v4974 = vsub.s32 %v4971, %v4973
    %v4975 = vrot.slane %v4959, %v4974
    %v4977 = vunpack.c.l.s4 1966171168
    %v4978 = vunpack.c.0.s8 %v4977
    %v4979 = vlaneseq
    %v4980 = vshrl.u32 %v4979, 7
    %v4981 = vsub.s32 %v4978, %v4980
    %v4982 = vrot.slane %v4960, %v4981
    %v4984 = vunpack.c.l.s4 1966171168
    %v4985 = vunpack.c.0.s8 %v4984
    %v4986 = vlaneseq
    %v4987 = vshrl.u32 %v4986, 7
    %v4988 = vsub.s32 %v4985, %v4987
    %v4989 = vrot.slane %v4961, %v4988
    %v4990 = vcombine.low %v4968, %v4975
    %v4991 = vcombine.low %v4982, %v4989
    %v4993 = vunpack.c.l.s4 1966171168
    %v4994 = vunpack.c.0.s8 %v4993
    %v4995 = vlaneseq
    %v4996 = vshrl.u32 %v4995, 7
    %v4997 = vsub.s32 %v4994, %v4996
    %v4998 = vrot.slane %v4990, %v4997
    %v5000 = vunpack.c.l.s4 1966171168
    %v5001 = vunpack.c.0.s8 %v5000
    %v5002 = vlaneseq
    %v5003 = vshrl.u32 %v5002, 7
    %v5004 = vsub.s32 %v5001, %v5003
    %v5005 = vrot.slane %v4991, %v5004
    %v5006 = vcombine.low %v4998, %v5005
    %v5007 = vcombine.low %v3799, %v3803
    %v5008 = vcombine.low %v3807, %v3811
    %v5009 = vcombine.low %v3815, %v3819
    %v5010 = vcombine.low %v3823, %v3827
    %v5012 = vunpack.c.l.s4 1966171168
    %v5013 = vunpack.c.0.s8 %v5012
    %v5014 = vlaneseq
    %v5015 = vshrl.u32 %v5014, 7
    %v5016 = vsub.s32 %v5013, %v5015
    %v5017 = vrot.slane %v5007, %v5016
    %v5019 = vunpack.c.l.s4 1966171168
    %v5020 = vunpack.c.0.s8 %v5019
    %v5021 = vlaneseq
    %v5022 = vshrl.u32 %v5021, 7
    %v5023 = vsub.s32 %v5020, %v5022
    %v5024 = vrot.slane %v5008, %v5023
    %v5026 = vunpack.c.l.s4 1966171168
    %v5027 = vunpack.c.0.s8 %v5026
    %v5028 = vlaneseq
    %v5029 = vshrl.u32 %v5028, 7
    %v5030 = vsub.s32 %v5027, %v5029
    %v5031 = vrot.slane %v5009, %v5030
    %v5033 = vunpack.c.l.s4 1966171168
    %v5034 = vunpack.c.0.s8 %v5033
    %v5035 = vlaneseq
    %v5036 = vshrl.u32 %v5035, 7
    %v5037 = vsub.s32 %v5034, %v5036
    %v5038 = vrot.slane %v5010, %v5037
    %v5039 = vcombine.low %v5017, %v5024
    %v5040 = vcombine.low %v5031, %v5038
    %v5042 = vunpack.c.l.s4 1966171168
    %v5043 = vunpack.c.0.s8 %v5042
    %v5044 = vlaneseq
    %v5045 = vshrl.u32 %v5044, 7
    %v5046 = vsub.s32 %v5043, %v5045
    %v5047 = vrot.slane %v5039, %v5046
    %v5049 = vunpack.c.l.s4 1966171168
    %v5050 = vunpack.c.0.s8 %v5049
    %v5051 = vlaneseq
    %v5052 = vshrl.u32 %v5051, 7
    %v5053 = vsub.s32 %v5050, %v5052
    %v5054 = vrot.slane %v5040, %v5053
    %v5055 = vcombine.low %v5047, %v5054
    %v5056 = vcombine.low %v3831, %v3835
    %v5057 = vcombine.low %v3839, %v3843
    %v5058 = vcombine.low %v3847, %v3851
    %v5059 = vcombine.low %v3855, %v3859
    %v5061 = vunpack.c.l.s4 1966171168
    %v5062 = vunpack.c.0.s8 %v5061
    %v5063 = vlaneseq
    %v5064 = vshrl.u32 %v5063, 7
    %v5065 = vsub.s32 %v5062, %v5064
    %v5066 = vrot.slane %v5056, %v5065
    %v5068 = vunpack.c.l.s4 1966171168
    %v5069 = vunpack.c.0.s8 %v5068
    %v5070 = vlaneseq
    %v5071 = vshrl.u32 %v5070, 7
    %v5072 = vsub.s32 %v5069, %v5071
    %v5073 = vrot.slane %v5057, %v5072
    %v5075 = vunpack.c.l.s4 1966171168
    %v5076 = vunpack.c.0.s8 %v5075
    %v5077 = vlaneseq
    %v5078 = vshrl.u32 %v5077, 7
    %v5079 = vsub.s32 %v5076, %v5078
    %v5080 = vrot.slane %v5058, %v5079
    %v5082 = vunpack.c.l.s4 1966171168
    %v5083 = vunpack.c.0.s8 %v5082
    %v5084 = vlaneseq
    %v5085 = vshrl.u32 %v5084, 7
    %v5086 = vsub.s32 %v5083, %v5085
    %v5087 = vrot.slane %v5059, %v5086
    %v5088 = vcombine.low %v5066, %v5073
    %v5089 = vcombine.low %v5080, %v5087
    %v5091 = vunpack.c.l.s4 1966171168
    %v5092 = vunpack.c.0.s8 %v5091
    %v5093 = vlaneseq
    %v5094 = vshrl.u32 %v5093, 7
    %v5095 = vsub.s32 %v5092, %v5094
    %v5096 = vrot.slane %v5088, %v5095
    %v5098 = vunpack.c.l.s4 1966171168
    %v5099 = vunpack.c.0.s8 %v5098
    %v5100 = vlaneseq
    %v5101 = vshrl.u32 %v5100, 7
    %v5102 = vsub.s32 %v5099, %v5101
    %v5103 = vrot.slane %v5089, %v5102
    %v5104 = vcombine.low %v5096, %v5103
    %v5105 = vcombine.low %v3863, %v3867
    %v5106 = vcombine.low %v3871, %v3875
    %v5107 = vcombine.low %v3879, %v3883
    %v5108 = vcombine.low %v3887, %v3891
    %v5110 = vunpack.c.l.s4 1966171168
    %v5111 = vunpack.c.0.s8 %v5110
    %v5112 = vlaneseq
    %v5113 = vshrl.u32 %v5112, 7
    %v5114 = vsub.s32 %v5111, %v5113
    %v5115 = vrot.slane %v5105, %v5114
    %v5117 = vunpack.c.l.s4 1966171168
    %v5118 = vunpack.c.0.s8 %v5117
    %v5119 = vlaneseq
    %v5120 = vshrl.u32 %v5119, 7
    %v5121 = vsub.s32 %v5118, %v5120
    %v5122 = vrot.slane %v5106, %v5121
    %v5124 = vunpack.c.l.s4 1966171168
    %v5125 = vunpack.c.0.s8 %v5124
    %v5126 = vlaneseq
    %v5127 = vshrl.u32 %v5126, 7
    %v5128 = vsub.s32 %v5125, %v5127
    %v5129 = vrot.slane %v5107, %v5128
    %v5131 = vunpack.c.l.s4 1966171168
    %v5132 = vunpack.c.0.s8 %v5131
    %v5133 = vlaneseq
    %v5134 = vshrl.u32 %v5133, 7
    %v5135 = vsub.s32 %v5132, %v5134
    %v5136 = vrot.slane %v5108, %v5135
    %v5137 = vcombine.low %v5115, %v5122
    %v5138 = vcombine.low %v5129, %v5136
    %v5140 = vunpack.c.l.s4 1966171168
    %v5141 = vunpack.c.0.s8 %v5140
    %v5142 = vlaneseq
    %v5143 = vshrl.u32 %v5142, 7
    %v5144 = vsub.s32 %v5141, %v5143
    %v5145 = vrot.slane %v5137, %v5144
    %v5147 = vunpack.c.l.s4 1966171168
    %v5148 = vunpack.c.0.s8 %v5147
    %v5149 = vlaneseq
    %v5150 = vshrl.u32 %v5149, 7
    %v5151 = vsub.s32 %v5148, %v5150
    %v5152 = vrot.slane %v5138, %v5151
    %v5153 = vcombine.low %v5145, %v5152
    %v5154 = vcombine.low %v3895, %v3899
    %v5155 = vcombine.low %v3903, %v3907
    %v5156 = vcombine.low %v3911, %v3915
    %v5157 = vcombine.low %v3919, %v3923
    %v5159 = vunpack.c.l.s4 1966171168
    %v5160 = vunpack.c.0.s8 %v5159
    %v5161 = vlaneseq
    %v5162 = vshrl.u32 %v5161, 7
    %v5163 = vsub.s32 %v5160, %v5162
    %v5164 = vrot.slane %v5154, %v5163
    %v5166 = vunpack.c.l.s4 1966171168
    %v5167 = vunpack.c.0.s8 %v5166
    %v5168 = vlaneseq
    %v5169 = vshrl.u32 %v5168, 7
    %v5170 = vsub.s32 %v5167, %v5169
    %v5171 = vrot.slane %v5155, %v5170
    %v5173 = vunpack.c.l.s4 1966171168
    %v5174 = vunpack.c.0.s8 %v5173
    %v5175 = vlaneseq
    %v5176 = vshrl.u32 %v5175, 7
    %v5177 = vsub.s32 %v5174, %v5176
    %v5178 = vrot.slane %v5156, %v5177
    %v5180 = vunpack.c.l.s4 1966171168
    %v5181 = vunpack.c.0.s8 %v5180
    %v5182 = vlaneseq
    %v5183 = vshrl.u32 %v5182, 7
    %v5184 = vsub.s32 %v5181, %v5183
    %v5185 = vrot.slane %v5157, %v5184
    %v5186 = vcombine.low %v5164, %v5171
    %v5187 = vcombine.low %v5178, %v5185
    %v5189 = vunpack.c.l.s4 1966171168
    %v5190 = vunpack.c.0.s8 %v5189
    %v5191 = vlaneseq
    %v5192 = vshrl.u32 %v5191, 7
    %v5193 = vsub.s32 %v5190, %v5192
    %v5194 = vrot.slane %v5186, %v5193
    %v5196 = vunpack.c.l.s4 1966171168
    %v5197 = vunpack.c.0.s8 %v5196
    %v5198 = vlaneseq
    %v5199 = vshrl.u32 %v5198, 7
    %v5200 = vsub.s32 %v5197, %v5199
    %v5201 = vrot.slane %v5187, %v5200
    %v5202 = vcombine.low %v5194, %v5201
    %v5203 = vcombine.low %v3927, %v3931
    %v5204 = vcombine.low %v3935, %v3939
    %v5205 = vcombine.low %v3943, %v3947
    %v5206 = vcombine.low %v3951, %v3955
    %v5208 = vunpack.c.l.s4 1966171168
    %v5209 = vunpack.c.0.s8 %v5208
    %v5210 = vlaneseq
    %v5211 = vshrl.u32 %v5210, 7
    %v5212 = vsub.s32 %v5209, %v5211
    %v5213 = vrot.slane %v5203, %v5212
    %v5215 = vunpack.c.l.s4 1966171168
    %v5216 = vunpack.c.0.s8 %v5215
    %v5217 = vlaneseq
    %v5218 = vshrl.u32 %v5217, 7
    %v5219 = vsub.s32 %v5216, %v5218
    %v5220 = vrot.slane %v5204, %v5219
    %v5222 = vunpack.c.l.s4 1966171168
    %v5223 = vunpack.c.0.s8 %v5222
    %v5224 = vlaneseq
    %v5225 = vshrl.u32 %v5224, 7
    %v5226 = vsub.s32 %v5223, %v5225
    %v5227 = vrot.slane %v5205, %v5226
    %v5229 = vunpack.c.l.s4 1966171168
    %v5230 = vunpack.c.0.s8 %v5229
    %v5231 = vlaneseq
    %v5232 = vshrl.u32 %v5231, 7
    %v5233 = vsub.s32 %v5230, %v5232
    %v5234 = vrot.slane %v5206, %v5233
    %v5235 = vcombine.low %v5213, %v5220
    %v5236 = vcombine.low %v5227, %v5234
    %v5238 = vunpack.c.l.s4 1966171168
    %v5239 = vunpack.c.0.s8 %v5238
    %v5240 = vlaneseq
    %v5241 = vshrl.u32 %v5240, 7
    %v5242 = vsub.s32 %v5239, %v5241
    %v5243 = vrot.slane %v5235, %v5242
    %v5245 = vunpack.c.l.s4 1966171168
    %v5246 = vunpack.c.0.s8 %v5245
    %v5247 = vlaneseq
    %v5248 = vshrl.u32 %v5247, 7
    %v5249 = vsub.s32 %v5246, %v5248
    %v5250 = vrot.slane %v5236, %v5249
    %v5251 = vcombine.low %v5243, %v5250
    %v5252 = vcombine.low %v3959, %v3963
    %v5253 = vcombine.low %v3967, %v3971
    %v5254 = vcombine.low %v3975, %v3979
    %v5255 = vcombine.low %v3983, %v3987
    %v5257 = vunpack.c.l.s4 1966171168
    %v5258 = vunpack.c.0.s8 %v5257
    %v5259 = vlaneseq
    %v5260 = vshrl.u32 %v5259, 7
    %v5261 = vsub.s32 %v5258, %v5260
    %v5262 = vrot.slane %v5252, %v5261
    %v5264 = vunpack.c.l.s4 1966171168
    %v5265 = vunpack.c.0.s8 %v5264
    %v5266 = vlaneseq
    %v5267 = vshrl.u32 %v5266, 7
    %v5268 = vsub.s32 %v5265, %v5267
    %v5269 = vrot.slane %v5253, %v5268
    %v5271 = vunpack.c.l.s4 1966171168
    %v5272 = vunpack.c.0.s8 %v5271
    %v5273 = vlaneseq
    %v5274 = vshrl.u32 %v5273, 7
    %v5275 = vsub.s32 %v5272, %v5274
    %v5276 = vrot.slane %v5254, %v5275
    %v5278 = vunpack.c.l.s4 1966171168
    %v5279 = vunpack.c.0.s8 %v5278
    %v5280 = vlaneseq
    %v5281 = vshrl.u32 %v5280, 7
    %v5282 = vsub.s32 %v5279, %v5281
    %v5283 = vrot.slane %v5255, %v5282
    %v5284 = vcombine.low %v5262, %v5269
    %v5285 = vcombine.low %v5276, %v5283
    %v5287 = vunpack.c.l.s4 1966171168
    %v5288 = vunpack.c.0.s8 %v5287
    %v5289 = vlaneseq
    %v5290 = vshrl.u32 %v5289, 7
    %v5291 = vsub.s32 %v5288, %v5290
    %v5292 = vrot.slane %v5284, %v5291
    %v5294 = vunpack.c.l.s4 1966171168
    %v5295 = vunpack.c.0.s8 %v5294
    %v5296 = vlaneseq
    %v5297 = vshrl.u32 %v5296, 7
    %v5298 = vsub.s32 %v5295, %v5297
    %v5299 = vrot.slane %v5285, %v5298
    %v5300 = vcombine.low %v5292, %v5299
    %v5301 = vcombine.low %v3991, %v3995
    %v5302 = vcombine.low %v3999, %v4003
    %v5303 = vcombine.low %v4007, %v4011
    %v5304 = vcombine.low %v4015, %v4019
    %v5306 = vunpack.c.l.s4 1966171168
    %v5307 = vunpack.c.0.s8 %v5306
    %v5308 = vlaneseq
    %v5309 = vshrl.u32 %v5308, 7
    %v5310 = vsub.s32 %v5307, %v5309
    %v5311 = vrot.slane %v5301, %v5310
    %v5313 = vunpack.c.l.s4 1966171168
    %v5314 = vunpack.c.0.s8 %v5313
    %v5315 = vlaneseq
    %v5316 = vshrl.u32 %v5315, 7
    %v5317 = vsub.s32 %v5314, %v5316
    %v5318 = vrot.slane %v5302, %v5317
    %v5320 = vunpack.c.l.s4 1966171168
    %v5321 = vunpack.c.0.s8 %v5320
    %v5322 = vlaneseq
    %v5323 = vshrl.u32 %v5322, 7
    %v5324 = vsub.s32 %v5321, %v5323
    %v5325 = vrot.slane %v5303, %v5324
    %v5327 = vunpack.c.l.s4 1966171168
    %v5328 = vunpack.c.0.s8 %v5327
    %v5329 = vlaneseq
    %v5330 = vshrl.u32 %v5329, 7
    %v5331 = vsub.s32 %v5328, %v5330
    %v5332 = vrot.slane %v5304, %v5331
    %v5333 = vcombine.low %v5311, %v5318
    %v5334 = vcombine.low %v5325, %v5332
    %v5336 = vunpack.c.l.s4 1966171168
    %v5337 = vunpack.c.0.s8 %v5336
    %v5338 = vlaneseq
    %v5339 = vshrl.u32 %v5338, 7
    %v5340 = vsub.s32 %v5337, %v5339
    %v5341 = vrot.slane %v5333, %v5340
    %v5343 = vunpack.c.l.s4 1966171168
    %v5344 = vunpack.c.0.s8 %v5343
    %v5345 = vlaneseq
    %v5346 = vshrl.u32 %v5345, 7
    %v5347 = vsub.s32 %v5344, %v5346
    %v5348 = vrot.slane %v5334, %v5347
    %v5349 = vcombine.low %v5341, %v5348
    %v5350 = vcombine.low %v4023, %v4027
    %v5351 = vcombine.low %v4031, %v4035
    %v5352 = vcombine.low %v4039, %v4043
    %v5353 = vcombine.low %v4047, %v4051
    %v5355 = vunpack.c.l.s4 1966171168
    %v5356 = vunpack.c.0.s8 %v5355
    %v5357 = vlaneseq
    %v5358 = vshrl.u32 %v5357, 7
    %v5359 = vsub.s32 %v5356, %v5358
    %v5360 = vrot.slane %v5350, %v5359
    %v5362 = vunpack.c.l.s4 1966171168
    %v5363 = vunpack.c.0.s8 %v5362
    %v5364 = vlaneseq
    %v5365 = vshrl.u32 %v5364, 7
    %v5366 = vsub.s32 %v5363, %v5365
    %v5367 = vrot.slane %v5351, %v5366
    %v5369 = vunpack.c.l.s4 1966171168
    %v5370 = vunpack.c.0.s8 %v5369
    %v5371 = vlaneseq
    %v5372 = vshrl.u32 %v5371, 7
    %v5373 = vsub.s32 %v5370, %v5372
    %v5374 = vrot.slane %v5352, %v5373
    %v5376 = vunpack.c.l.s4 1966171168
    %v5377 = vunpack.c.0.s8 %v5376
    %v5378 = vlaneseq
    %v5379 = vshrl.u32 %v5378, 7
    %v5380 = vsub.s32 %v5377, %v5379
    %v5381 = vrot.slane %v5353, %v5380
    %v5382 = vcombine.low %v5360, %v5367
    %v5383 = vcombine.low %v5374, %v5381
    %v5385 = vunpack.c.l.s4 1966171168
    %v5386 = vunpack.c.0.s8 %v5385
    %v5387 = vlaneseq
    %v5388 = vshrl.u32 %v5387, 7
    %v5389 = vsub.s32 %v5386, %v5388
    %v5390 = vrot.slane %v5382, %v5389
    %v5392 = vunpack.c.l.s4 1966171168
    %v5393 = vunpack.c.0.s8 %v5392
    %v5394 = vlaneseq
    %v5395 = vshrl.u32 %v5394, 7
    %v5396 = vsub.s32 %v5393, %v5395
    %v5397 = vrot.slane %v5383, %v5396
    %v5398 = vcombine.low %v5390, %v5397
    %v5399 = vcombine.low %v4055, %v4059
    %v5400 = vcombine.low %v4063, %v4067
    %v5401 = vcombine.low %v4071, %v4075
    %v5402 = vcombine.low %v4079, %v4083
    %v5404 = vunpack.c.l.s4 1966171168
    %v5405 = vunpack.c.0.s8 %v5404
    %v5406 = vlaneseq
    %v5407 = vshrl.u32 %v5406, 7
    %v5408 = vsub.s32 %v5405, %v5407
    %v5409 = vrot.slane %v5399, %v5408
    %v5411 = vunpack.c.l.s4 1966171168
    %v5412 = vunpack.c.0.s8 %v5411
    %v5413 = vlaneseq
    %v5414 = vshrl.u32 %v5413, 7
    %v5415 = vsub.s32 %v5412, %v5414
    %v5416 = vrot.slane %v5400, %v5415
    %v5418 = vunpack.c.l.s4 1966171168
    %v5419 = vunpack.c.0.s8 %v5418
    %v5420 = vlaneseq
    %v5421 = vshrl.u32 %v5420, 7
    %v5422 = vsub.s32 %v5419, %v5421
    %v5423 = vrot.slane %v5401, %v5422
    %v5425 = vunpack.c.l.s4 1966171168
    %v5426 = vunpack.c.0.s8 %v5425
    %v5427 = vlaneseq
    %v5428 = vshrl.u32 %v5427, 7
    %v5429 = vsub.s32 %v5426, %v5428
    %v5430 = vrot.slane %v5402, %v5429
    %v5431 = vcombine.low %v5409, %v5416
    %v5432 = vcombine.low %v5423, %v5430
    %v5434 = vunpack.c.l.s4 1966171168
    %v5435 = vunpack.c.0.s8 %v5434
    %v5436 = vlaneseq
    %v5437 = vshrl.u32 %v5436, 7
    %v5438 = vsub.s32 %v5435, %v5437
    %v5439 = vrot.slane %v5431, %v5438
    %v5441 = vunpack.c.l.s4 1966171168
    %v5442 = vunpack.c.0.s8 %v5441
    %v5443 = vlaneseq
    %v5444 = vshrl.u32 %v5443, 7
    %v5445 = vsub.s32 %v5442, %v5444
    %v5446 = vrot.slane %v5432, %v5445
    %v5447 = vcombine.low %v5439, %v5446
    %v5448 = vcombine.low %v4087, %v4091
    %v5449 = vcombine.low %v4095, %v4099
    %v5450 = vcombine.low %v4103, %v4107
    %v5451 = vcombine.low %v4111, %v4115
    %v5453 = vunpack.c.l.s4 1966171168
    %v5454 = vunpack.c.0.s8 %v5453
    %v5455 = vlaneseq
    %v5456 = vshrl.u32 %v5455, 7
    %v5457 = vsub.s32 %v5454, %v5456
    %v5458 = vrot.slane %v5448, %v5457
    %v5460 = vunpack.c.l.s4 1966171168
    %v5461 = vunpack.c.0.s8 %v5460
    %v5462 = vlaneseq
    %v5463 = vshrl.u32 %v5462, 7
    %v5464 = vsub.s32 %v5461, %v5463
    %v5465 = vrot.slane %v5449, %v5464
    %v5467 = vunpack.c.l.s4 1966171168
    %v5468 = vunpack.c.0.s8 %v5467
    %v5469 = vlaneseq
    %v5470 = vshrl.u32 %v5469, 7
    %v5471 = vsub.s32 %v5468, %v5470
    %v5472 = vrot.slane %v5450, %v5471
    %v5474 = vunpack.c.l.s4 1966171168
    %v5475 = vunpack.c.0.s8 %v5474
    %v5476 = vlaneseq
    %v5477 = vshrl.u32 %v5476, 7
    %v5478 = vsub.s32 %v5475, %v5477
    %v5479 = vrot.slane %v5451, %v5478
    %v5480 = vcombine.low %v5458, %v5465
    %v5481 = vcombine.low %v5472, %v5479
    %v5483 = vunpack.c.l.s4 1966171168
    %v5484 = vunpack.c.0.s8 %v5483
    %v5485 = vlaneseq
    %v5486 = vshrl.u32 %v5485, 7
    %v5487 = vsub.s32 %v5484, %v5486
    %v5488 = vrot.slane %v5480, %v5487
    %v5490 = vunpack.c.l.s4 1966171168
    %v5491 = vunpack.c.0.s8 %v5490
    %v5492 = vlaneseq
    %v5493 = vshrl.u32 %v5492, 7
    %v5494 = vsub.s32 %v5491, %v5493
    %v5495 = vrot.slane %v5481, %v5494
    %v5496 = vcombine.low %v5488, %v5495
    %v5497 = vcombine.low %v4119, %v4123
    %v5498 = vcombine.low %v4127, %v4131
    %v5499 = vcombine.low %v4135, %v4139
    %v5500 = vcombine.low %v4143, %v4147
    %v5502 = vunpack.c.l.s4 1966171168
    %v5503 = vunpack.c.0.s8 %v5502
    %v5504 = vlaneseq
    %v5505 = vshrl.u32 %v5504, 7
    %v5506 = vsub.s32 %v5503, %v5505
    %v5507 = vrot.slane %v5497, %v5506
    %v5509 = vunpack.c.l.s4 1966171168
    %v5510 = vunpack.c.0.s8 %v5509
    %v5511 = vlaneseq
    %v5512 = vshrl.u32 %v5511, 7
    %v5513 = vsub.s32 %v5510, %v5512
    %v5514 = vrot.slane %v5498, %v5513
    %v5516 = vunpack.c.l.s4 1966171168
    %v5517 = vunpack.c.0.s8 %v5516
    %v5518 = vlaneseq
    %v5519 = vshrl.u32 %v5518, 7
    %v5520 = vsub.s32 %v5517, %v5519
    %v5521 = vrot.slane %v5499, %v5520
    %v5523 = vunpack.c.l.s4 1966171168
    %v5524 = vunpack.c.0.s8 %v5523
    %v5525 = vlaneseq
    %v5526 = vshrl.u32 %v5525, 7
    %v5527 = vsub.s32 %v5524, %v5526
    %v5528 = vrot.slane %v5500, %v5527
    %v5529 = vcombine.low %v5507, %v5514
    %v5530 = vcombine.low %v5521, %v5528
    %v5532 = vunpack.c.l.s4 1966171168
    %v5533 = vunpack.c.0.s8 %v5532
    %v5534 = vlaneseq
    %v5535 = vshrl.u32 %v5534, 7
    %v5536 = vsub.s32 %v5533, %v5535
    %v5537 = vrot.slane %v5529, %v5536
    %v5539 = vunpack.c.l.s4 1966171168
    %v5540 = vunpack.c.0.s8 %v5539
    %v5541 = vlaneseq
    %v5542 = vshrl.u32 %v5541, 7
    %v5543 = vsub.s32 %v5540, %v5542
    %v5544 = vrot.slane %v5530, %v5543
    %v5545 = vcombine.low %v5537, %v5544
    %v5546 = vcombine.low %v4151, %v4155
    %v5547 = vcombine.low %v4159, %v4163
    %v5548 = vcombine.low %v4167, %v4171
    %v5549 = vcombine.low %v4175, %v4179
    %v5551 = vunpack.c.l.s4 1966171168
    %v5552 = vunpack.c.0.s8 %v5551
    %v5553 = vlaneseq
    %v5554 = vshrl.u32 %v5553, 7
    %v5555 = vsub.s32 %v5552, %v5554
    %v5556 = vrot.slane %v5546, %v5555
    %v5558 = vunpack.c.l.s4 1966171168
    %v5559 = vunpack.c.0.s8 %v5558
    %v5560 = vlaneseq
    %v5561 = vshrl.u32 %v5560, 7
    %v5562 = vsub.s32 %v5559, %v5561
    %v5563 = vrot.slane %v5547, %v5562
    %v5565 = vunpack.c.l.s4 1966171168
    %v5566 = vunpack.c.0.s8 %v5565
    %v5567 = vlaneseq
    %v5568 = vshrl.u32 %v5567, 7
    %v5569 = vsub.s32 %v5566, %v5568
    %v5570 = vrot.slane %v5548, %v5569
    %v5572 = vunpack.c.l.s4 1966171168
    %v5573 = vunpack.c.0.s8 %v5572
    %v5574 = vlaneseq
    %v5575 = vshrl.u32 %v5574, 7
    %v5576 = vsub.s32 %v5573, %v5575
    %v5577 = vrot.slane %v5549, %v5576
    %v5578 = vcombine.low %v5556, %v5563
    %v5579 = vcombine.low %v5570, %v5577
    %v5581 = vunpack.c.l.s4 1966171168
    %v5582 = vunpack.c.0.s8 %v5581
    %v5583 = vlaneseq
    %v5584 = vshrl.u32 %v5583, 7
    %v5585 = vsub.s32 %v5582, %v5584
    %v5586 = vrot.slane %v5578, %v5585
    %v5588 = vunpack.c.l.s4 1966171168
    %v5589 = vunpack.c.0.s8 %v5588
    %v5590 = vlaneseq
    %v5591 = vshrl.u32 %v5590, 7
    %v5592 = vsub.s32 %v5589, %v5591
    %v5593 = vrot.slane %v5579, %v5592
    %v5594 = vcombine.low %v5586, %v5593
    %v5595 = vcombine.low %v4183, %v4187
    %v5596 = vcombine.low %v4191, %v4195
    %v5597 = vcombine.low %v4199, %v4203
    %v5598 = vcombine.low %v4207, %v4211
    %v5600 = vunpack.c.l.s4 1966171168
    %v5601 = vunpack.c.0.s8 %v5600
    %v5602 = vlaneseq
    %v5603 = vshrl.u32 %v5602, 7
    %v5604 = vsub.s32 %v5601, %v5603
    %v5605 = vrot.slane %v5595, %v5604
    %v5607 = vunpack.c.l.s4 1966171168
    %v5608 = vunpack.c.0.s8 %v5607
    %v5609 = vlaneseq
    %v5610 = vshrl.u32 %v5609, 7
    %v5611 = vsub.s32 %v5608, %v5610
    %v5612 = vrot.slane %v5596, %v5611
    %v5614 = vunpack.c.l.s4 1966171168
    %v5615 = vunpack.c.0.s8 %v5614
    %v5616 = vlaneseq
    %v5617 = vshrl.u32 %v5616, 7
    %v5618 = vsub.s32 %v5615, %v5617
    %v5619 = vrot.slane %v5597, %v5618
    %v5621 = vunpack.c.l.s4 1966171168
    %v5622 = vunpack.c.0.s8 %v5621
    %v5623 = vlaneseq
    %v5624 = vshrl.u32 %v5623, 7
    %v5625 = vsub.s32 %v5622, %v5624
    %v5626 = vrot.slane %v5598, %v5625
    %v5627 = vcombine.low %v5605, %v5612
    %v5628 = vcombine.low %v5619, %v5626
    %v5630 = vunpack.c.l.s4 1966171168
    %v5631 = vunpack.c.0.s8 %v5630
    %v5632 = vlaneseq
    %v5633 = vshrl.u32 %v5632, 7
    %v5634 = vsub.s32 %v5631, %v5633
    %v5635 = vrot.slane %v5627, %v5634
    %v5637 = vunpack.c.l.s4 1966171168
    %v5638 = vunpack.c.0.s8 %v5637
    %v5639 = vlaneseq
    %v5640 = vshrl.u32 %v5639, 7
    %v5641 = vsub.s32 %v5638, %v5640
    %v5642 = vrot.slane %v5628, %v5641
    %v5643 = vcombine.low %v5635, %v5642
    %v5644 = vcombine.low %v4215, %v4219
    %v5645 = vcombine.low %v4223, %v4227
    %v5646 = vcombine.low %v4231, %v4235
    %v5647 = vcombine.low %v4239, %v4243
    %v5649 = vunpack.c.l.s4 1966171168
    %v5650 = vunpack.c.0.s8 %v5649
    %v5651 = vlaneseq
    %v5652 = vshrl.u32 %v5651, 7
    %v5653 = vsub.s32 %v5650, %v5652
    %v5654 = vrot.slane %v5644, %v5653
    %v5656 = vunpack.c.l.s4 1966171168
    %v5657 = vunpack.c.0.s8 %v5656
    %v5658 = vlaneseq
    %v5659 = vshrl.u32 %v5658, 7
    %v5660 = vsub.s32 %v5657, %v5659
    %v5661 = vrot.slane %v5645, %v5660
    %v5663 = vunpack.c.l.s4 1966171168
    %v5664 = vunpack.c.0.s8 %v5663
    %v5665 = vlaneseq
    %v5666 = vshrl.u32 %v5665, 7
    %v5667 = vsub.s32 %v5664, %v5666
    %v5668 = vrot.slane %v5646, %v5667
    %v5670 = vunpack.c.l.s4 1966171168
    %v5671 = vunpack.c.0.s8 %v5670
    %v5672 = vlaneseq
    %v5673 = vshrl.u32 %v5672, 7
    %v5674 = vsub.s32 %v5671, %v5673
    %v5675 = vrot.slane %v5647, %v5674
    %v5676 = vcombine.low %v5654, %v5661
    %v5677 = vcombine.low %v5668, %v5675
    %v5679 = vunpack.c.l.s4 1966171168
    %v5680 = vunpack.c.0.s8 %v5679
    %v5681 = vlaneseq
    %v5682 = vshrl.u32 %v5681, 7
    %v5683 = vsub.s32 %v5680, %v5682
    %v5684 = vrot.slane %v5676, %v5683
    %v5686 = vunpack.c.l.s4 1966171168
    %v5687 = vunpack.c.0.s8 %v5686
    %v5688 = vlaneseq
    %v5689 = vshrl.u32 %v5688, 7
    %v5690 = vsub.s32 %v5687, %v5689
    %v5691 = vrot.slane %v5677, %v5690
    %v5692 = vcombine.low %v5684, %v5691
    %v5693 = vcombine.low %v4247, %v4251
    %v5694 = vcombine.low %v4255, %v4259
    %v5695 = vcombine.low %v4263, %v4267
    %v5696 = vcombine.low %v4271, %v4275
    %v5698 = vunpack.c.l.s4 1966171168
    %v5699 = vunpack.c.0.s8 %v5698
    %v5700 = vlaneseq
    %v5701 = vshrl.u32 %v5700, 7
    %v5702 = vsub.s32 %v5699, %v5701
    %v5703 = vrot.slane %v5693, %v5702
    %v5705 = vunpack.c.l.s4 1966171168
    %v5706 = vunpack.c.0.s8 %v5705
    %v5707 = vlaneseq
    %v5708 = vshrl.u32 %v5707, 7
    %v5709 = vsub.s32 %v5706, %v5708
    %v5710 = vrot.slane %v5694, %v5709
    %v5712 = vunpack.c.l.s4 1966171168
    %v5713 = vunpack.c.0.s8 %v5712
    %v5714 = vlaneseq
    %v5715 = vshrl.u32 %v5714, 7
    %v5716 = vsub.s32 %v5713, %v5715
    %v5717 = vrot.slane %v5695, %v5716
    %v5719 = vunpack.c.l.s4 1966171168
    %v5720 = vunpack.c.0.s8 %v5719
    %v5721 = vlaneseq
    %v5722 = vshrl.u32 %v5721, 7
    %v5723 = vsub.s32 %v5720, %v5722
    %v5724 = vrot.slane %v5696, %v5723
    %v5725 = vcombine.low %v5703, %v5710
    %v5726 = vcombine.low %v5717, %v5724
    %v5728 = vunpack.c.l.s4 1966171168
    %v5729 = vunpack.c.0.s8 %v5728
    %v5730 = vlaneseq
    %v5731 = vshrl.u32 %v5730, 7
    %v5732 = vsub.s32 %v5729, %v5731
    %v5733 = vrot.slane %v5725, %v5732
    %v5735 = vunpack.c.l.s4 1966171168
    %v5736 = vunpack.c.0.s8 %v5735
    %v5737 = vlaneseq
    %v5738 = vshrl.u32 %v5737, 7
    %v5739 = vsub.s32 %v5736, %v5738
    %v5740 = vrot.slane %v5726, %v5739
    %v5741 = vcombine.low %v5733, %v5740
    %v5742 = vcombine.low %v4279, %v4283
    %v5743 = vcombine.low %v4287, %v4291
    %v5744 = vcombine.low %v4295, %v4299
    %v5745 = vcombine.low %v4303, %v4307
    %v5747 = vunpack.c.l.s4 1966171168
    %v5748 = vunpack.c.0.s8 %v5747
    %v5749 = vlaneseq
    %v5750 = vshrl.u32 %v5749, 7
    %v5751 = vsub.s32 %v5748, %v5750
    %v5752 = vrot.slane %v5742, %v5751
    %v5754 = vunpack.c.l.s4 1966171168
    %v5755 = vunpack.c.0.s8 %v5754
    %v5756 = vlaneseq
    %v5757 = vshrl.u32 %v5756, 7
    %v5758 = vsub.s32 %v5755, %v5757
    %v5759 = vrot.slane %v5743, %v5758
    %v5761 = vunpack.c.l.s4 1966171168
    %v5762 = vunpack.c.0.s8 %v5761
    %v5763 = vlaneseq
    %v5764 = vshrl.u32 %v5763, 7
    %v5765 = vsub.s32 %v5762, %v5764
    %v5766 = vrot.slane %v5744, %v5765
    %v5768 = vunpack.c.l.s4 1966171168
    %v5769 = vunpack.c.0.s8 %v5768
    %v5770 = vlaneseq
    %v5771 = vshrl.u32 %v5770, 7
    %v5772 = vsub.s32 %v5769, %v5771
    %v5773 = vrot.slane %v5745, %v5772
    %v5774 = vcombine.low %v5752, %v5759
    %v5775 = vcombine.low %v5766, %v5773
    %v5777 = vunpack.c.l.s4 1966171168
    %v5778 = vunpack.c.0.s8 %v5777
    %v5779 = vlaneseq
    %v5780 = vshrl.u32 %v5779, 7
    %v5781 = vsub.s32 %v5778, %v5780
    %v5782 = vrot.slane %v5774, %v5781
    %v5784 = vunpack.c.l.s4 1966171168
    %v5785 = vunpack.c.0.s8 %v5784
    %v5786 = vlaneseq
    %v5787 = vshrl.u32 %v5786, 7
    %v5788 = vsub.s32 %v5785, %v5787
    %v5789 = vrot.slane %v5775, %v5788
    %v5790 = vcombine.low %v5782, %v5789
    %v5791 = vcombine.low %v4311, %v4315
    %v5792 = vcombine.low %v4319, %v4323
    %v5793 = vcombine.low %v4327, %v4331
    %v5794 = vcombine.low %v4335, %v4339
    %v5796 = vunpack.c.l.s4 1966171168
    %v5797 = vunpack.c.0.s8 %v5796
    %v5798 = vlaneseq
    %v5799 = vshrl.u32 %v5798, 7
    %v5800 = vsub.s32 %v5797, %v5799
    %v5801 = vrot.slane %v5791, %v5800
    %v5803 = vunpack.c.l.s4 1966171168
    %v5804 = vunpack.c.0.s8 %v5803
    %v5805 = vlaneseq
    %v5806 = vshrl.u32 %v5805, 7
    %v5807 = vsub.s32 %v5804, %v5806
    %v5808 = vrot.slane %v5792, %v5807
    %v5810 = vunpack.c.l.s4 1966171168
    %v5811 = vunpack.c.0.s8 %v5810
    %v5812 = vlaneseq
    %v5813 = vshrl.u32 %v5812, 7
    %v5814 = vsub.s32 %v5811, %v5813
    %v5815 = vrot.slane %v5793, %v5814
    %v5817 = vunpack.c.l.s4 1966171168
    %v5818 = vunpack.c.0.s8 %v5817
    %v5819 = vlaneseq
    %v5820 = vshrl.u32 %v5819, 7
    %v5821 = vsub.s32 %v5818, %v5820
    %v5822 = vrot.slane %v5794, %v5821
    %v5823 = vcombine.low %v5801, %v5808
    %v5824 = vcombine.low %v5815, %v5822
    %v5826 = vunpack.c.l.s4 1966171168
    %v5827 = vunpack.c.0.s8 %v5826
    %v5828 = vlaneseq
    %v5829 = vshrl.u32 %v5828, 7
    %v5830 = vsub.s32 %v5827, %v5829
    %v5831 = vrot.slane %v5823, %v5830
    %v5833 = vunpack.c.l.s4 1966171168
    %v5834 = vunpack.c.0.s8 %v5833
    %v5835 = vlaneseq
    %v5836 = vshrl.u32 %v5835, 7
    %v5837 = vsub.s32 %v5834, %v5836
    %v5838 = vrot.slane %v5824, %v5837
    %v5839 = vcombine.low %v5831, %v5838
    %v5840 = vcombine.low %v4343, %v4347
    %v5841 = vcombine.low %v4351, %v4355
    %v5842 = vcombine.low %v4359, %v4363
    %v5843 = vcombine.low %v4367, %v4371
    %v5845 = vunpack.c.l.s4 1966171168
    %v5846 = vunpack.c.0.s8 %v5845
    %v5847 = vlaneseq
    %v5848 = vshrl.u32 %v5847, 7
    %v5849 = vsub.s32 %v5846, %v5848
    %v5850 = vrot.slane %v5840, %v5849
    %v5852 = vunpack.c.l.s4 1966171168
    %v5853 = vunpack.c.0.s8 %v5852
    %v5854 = vlaneseq
    %v5855 = vshrl.u32 %v5854, 7
    %v5856 = vsub.s32 %v5853, %v5855
    %v5857 = vrot.slane %v5841, %v5856
    %v5859 = vunpack.c.l.s4 1966171168
    %v5860 = vunpack.c.0.s8 %v5859
    %v5861 = vlaneseq
    %v5862 = vshrl.u32 %v5861, 7
    %v5863 = vsub.s32 %v5860, %v5862
    %v5864 = vrot.slane %v5842, %v5863
    %v5866 = vunpack.c.l.s4 1966171168
    %v5867 = vunpack.c.0.s8 %v5866
    %v5868 = vlaneseq
    %v5869 = vshrl.u32 %v5868, 7
    %v5870 = vsub.s32 %v5867, %v5869
    %v5871 = vrot.slane %v5843, %v5870
    %v5872 = vcombine.low %v5850, %v5857
    %v5873 = vcombine.low %v5864, %v5871
    %v5875 = vunpack.c.l.s4 1966171168
    %v5876 = vunpack.c.0.s8 %v5875
    %v5877 = vlaneseq
    %v5878 = vshrl.u32 %v5877, 7
    %v5879 = vsub.s32 %v5876, %v5878
    %v5880 = vrot.slane %v5872, %v5879
    %v5882 = vunpack.c.l.s4 1966171168
    %v5883 = vunpack.c.0.s8 %v5882
    %v5884 = vlaneseq
    %v5885 = vshrl.u32 %v5884, 7
    %v5886 = vsub.s32 %v5883, %v5885
    %v5887 = vrot.slane %v5873, %v5886
    %v5888 = vcombine.low %v5880, %v5887
    %v5889 = vcombine.low %v4375, %v4379
    %v5890 = vcombine.low %v4383, %v4387
    %v5891 = vcombine.low %v4391, %v4395
    %v5892 = vcombine.low %v4399, %v4403
    %v5894 = vunpack.c.l.s4 1966171168
    %v5895 = vunpack.c.0.s8 %v5894
    %v5896 = vlaneseq
    %v5897 = vshrl.u32 %v5896, 7
    %v5898 = vsub.s32 %v5895, %v5897
    %v5899 = vrot.slane %v5889, %v5898
    %v5901 = vunpack.c.l.s4 1966171168
    %v5902 = vunpack.c.0.s8 %v5901
    %v5903 = vlaneseq
    %v5904 = vshrl.u32 %v5903, 7
    %v5905 = vsub.s32 %v5902, %v5904
    %v5906 = vrot.slane %v5890, %v5905
    %v5908 = vunpack.c.l.s4 1966171168
    %v5909 = vunpack.c.0.s8 %v5908
    %v5910 = vlaneseq
    %v5911 = vshrl.u32 %v5910, 7
    %v5912 = vsub.s32 %v5909, %v5911
    %v5913 = vrot.slane %v5891, %v5912
    %v5915 = vunpack.c.l.s4 1966171168
    %v5916 = vunpack.c.0.s8 %v5915
    %v5917 = vlaneseq
    %v5918 = vshrl.u32 %v5917, 7
    %v5919 = vsub.s32 %v5916, %v5918
    %v5920 = vrot.slane %v5892, %v5919
    %v5921 = vcombine.low %v5899, %v5906
    %v5922 = vcombine.low %v5913, %v5920
    %v5924 = vunpack.c.l.s4 1966171168
    %v5925 = vunpack.c.0.s8 %v5924
    %v5926 = vlaneseq
    %v5927 = vshrl.u32 %v5926, 7
    %v5928 = vsub.s32 %v5925, %v5927
    %v5929 = vrot.slane %v5921, %v5928
    %v5931 = vunpack.c.l.s4 1966171168
    %v5932 = vunpack.c.0.s8 %v5931
    %v5933 = vlaneseq
    %v5934 = vshrl.u32 %v5933, 7
    %v5935 = vsub.s32 %v5932, %v5934
    %v5936 = vrot.slane %v5922, %v5935
    %v5937 = vcombine.low %v5929, %v5936
    %v5938 = vcombine.low %v4407, %v4411
    %v5939 = vcombine.low %v4415, %v4419
    %v5940 = vcombine.low %v4423, %v4427
    %v5941 = vcombine.low %v4431, %v4435
    %v5943 = vunpack.c.l.s4 1966171168
    %v5944 = vunpack.c.0.s8 %v5943
    %v5945 = vlaneseq
    %v5946 = vshrl.u32 %v5945, 7
    %v5947 = vsub.s32 %v5944, %v5946
    %v5948 = vrot.slane %v5938, %v5947
    %v5950 = vunpack.c.l.s4 1966171168
    %v5951 = vunpack.c.0.s8 %v5950
    %v5952 = vlaneseq
    %v5953 = vshrl.u32 %v5952, 7
    %v5954 = vsub.s32 %v5951, %v5953
    %v5955 = vrot.slane %v5939, %v5954
    %v5957 = vunpack.c.l.s4 1966171168
    %v5958 = vunpack.c.0.s8 %v5957
    %v5959 = vlaneseq
    %v5960 = vshrl.u32 %v5959, 7
    %v5961 = vsub.s32 %v5958, %v5960
    %v5962 = vrot.slane %v5940, %v5961
    %v5964 = vunpack.c.l.s4 1966171168
    %v5965 = vunpack.c.0.s8 %v5964
    %v5966 = vlaneseq
    %v5967 = vshrl.u32 %v5966, 7
    %v5968 = vsub.s32 %v5965, %v5967
    %v5969 = vrot.slane %v5941, %v5968
    %v5970 = vcombine.low %v5948, %v5955
    %v5971 = vcombine.low %v5962, %v5969
    %v5973 = vunpack.c.l.s4 1966171168
    %v5974 = vunpack.c.0.s8 %v5973
    %v5975 = vlaneseq
    %v5976 = vshrl.u32 %v5975, 7
    %v5977 = vsub.s32 %v5974, %v5976
    %v5978 = vrot.slane %v5970, %v5977
    %v5980 = vunpack.c.l.s4 1966171168
    %v5981 = vunpack.c.0.s8 %v5980
    %v5982 = vlaneseq
    %v5983 = vshrl.u32 %v5982, 7
    %v5984 = vsub.s32 %v5981, %v5983
    %v5985 = vrot.slane %v5971, %v5984
    %v5986 = vcombine.low %v5978, %v5985
    %v5987 = vcombine.low %v4439, %v4443
    %v5988 = vcombine.low %v4447, %v4451
    %v5989 = vcombine.low %v4455, %v4459
    %v5990 = vcombine.low %v4463, %v4467
    %v5992 = vunpack.c.l.s4 1966171168
    %v5993 = vunpack.c.0.s8 %v5992
    %v5994 = vlaneseq
    %v5995 = vshrl.u32 %v5994, 7
    %v5996 = vsub.s32 %v5993, %v5995
    %v5997 = vrot.slane %v5987, %v5996
    %v5999 = vunpack.c.l.s4 1966171168
    %v6000 = vunpack.c.0.s8 %v5999
    %v6001 = vlaneseq
    %v6002 = vshrl.u32 %v6001, 7
    %v6003 = vsub.s32 %v6000, %v6002
    %v6004 = vrot.slane %v5988, %v6003
    %v6006 = vunpack.c.l.s4 1966171168
    %v6007 = vunpack.c.0.s8 %v6006
    %v6008 = vlaneseq
    %v6009 = vshrl.u32 %v6008, 7
    %v6010 = vsub.s32 %v6007, %v6009
    %v6011 = vrot.slane %v5989, %v6010
    %v6013 = vunpack.c.l.s4 1966171168
    %v6014 = vunpack.c.0.s8 %v6013
    %v6015 = vlaneseq
    %v6016 = vshrl.u32 %v6015, 7
    %v6017 = vsub.s32 %v6014, %v6016
    %v6018 = vrot.slane %v5990, %v6017
    %v6019 = vcombine.low %v5997, %v6004
    %v6020 = vcombine.low %v6011, %v6018
    %v6022 = vunpack.c.l.s4 1966171168
    %v6023 = vunpack.c.0.s8 %v6022
    %v6024 = vlaneseq
    %v6025 = vshrl.u32 %v6024, 7
    %v6026 = vsub.s32 %v6023, %v6025
    %v6027 = vrot.slane %v6019, %v6026
    %v6029 = vunpack.c.l.s4 1966171168
    %v6030 = vunpack.c.0.s8 %v6029
    %v6031 = vlaneseq
    %v6032 = vshrl.u32 %v6031, 7
    %v6033 = vsub.s32 %v6030, %v6032
    %v6034 = vrot.slane %v6020, %v6033
    %v6035 = vcombine.low %v6027, %v6034
    %6036 = vset.pattern.permute.xlu0 0
    %6037 = vperm.xlu0 %6036, %v4516
    %v6038 = vpop.permute.xlu0 %6037
    %6039 = vset.pattern.permute.xlu0 0
    %6040 = vperm.xlu0 %6039, %v4565
    %v6041 = vpop.permute.xlu0 %6040
    %6042 = vset.pattern.permute.xlu0 0
    %6043 = vperm.xlu0 %6042, %v4614
    %v6044 = vpop.permute.xlu0 %6043
    %6045 = vset.pattern.permute.xlu0 0
    %6046 = vperm.xlu0 %6045, %v4663
    %v6047 = vpop.permute.xlu0 %6046
    %6048 = vset.pattern.permute.xlu0 0
    %6049 = vperm.xlu0 %6048, %v4712
    %v6050 = vpop.permute.xlu0 %6049
    %6051 = vset.pattern.permute.xlu0 0
    %6052 = vperm.xlu0 %6051, %v4761
    %v6053 = vpop.permute.xlu0 %6052
    %6054 = vset.pattern.permute.xlu0 0
    %6055 = vperm.xlu0 %6054, %v4810
    %v6056 = vpop.permute.xlu0 %6055
    %6057 = vset.pattern.permute.xlu0 0
    %6058 = vperm.xlu0 %6057, %v4859
    %v6059 = vpop.permute.xlu0 %6058
    %6060 = vset.pattern.permute.xlu0 0
    %6061 = vperm.xlu0 %6060, %v4908
    %v6062 = vpop.permute.xlu0 %6061
    %6063 = vset.pattern.permute.xlu0 0
    %6064 = vperm.xlu0 %6063, %v4957
    %v6065 = vpop.permute.xlu0 %6064
    %6066 = vset.pattern.permute.xlu0 0
    %6067 = vperm.xlu0 %6066, %v5006
    %v6068 = vpop.permute.xlu0 %6067
    %6069 = vset.pattern.permute.xlu0 0
    %6070 = vperm.xlu0 %6069, %v5055
    %v6071 = vpop.permute.xlu0 %6070
    %6072 = vset.pattern.permute.xlu0 0
    %6073 = vperm.xlu0 %6072, %v5104
    %v6074 = vpop.permute.xlu0 %6073
    %6075 = vset.pattern.permute.xlu0 0
    %6076 = vperm.xlu0 %6075, %v5153
    %v6077 = vpop.permute.xlu0 %6076
    %6078 = vset.pattern.permute.xlu0 0
    %6079 = vperm.xlu0 %6078, %v5202
    %v6080 = vpop.permute.xlu0 %6079
    %6081 = vset.pattern.permute.xlu0 0
    %6082 = vperm.xlu0 %6081, %v5251
    %v6083 = vpop.permute.xlu0 %6082
    %6084 = vset.pattern.permute.xlu0 0
    %6085 = vperm.xlu0 %6084, %v5300
    %v6086 = vpop.permute.xlu0 %6085
    %6087 = vset.pattern.permute.xlu0 0
    %6088 = vperm.xlu0 %6087, %v5349
    %v6089 = vpop.permute.xlu0 %6088
    %6090 = vset.pattern.permute.xlu0 0
    %6091 = vperm.xlu0 %6090, %v5398
    %v6092 = vpop.permute.xlu0 %6091
    %6093 = vset.pattern.permute.xlu0 0
    %6094 = vperm.xlu0 %6093, %v5447
    %v6095 = vpop.permute.xlu0 %6094
    %6096 = vset.pattern.permute.xlu0 0
    %6097 = vperm.xlu0 %6096, %v5496
    %v6098 = vpop.permute.xlu0 %6097
    %6099 = vset.pattern.permute.xlu0 0
    %6100 = vperm.xlu0 %6099, %v5545
    %v6101 = vpop.permute.xlu0 %6100
    %6102 = vset.pattern.permute.xlu0 0
    %6103 = vperm.xlu0 %6102, %v5594
    %v6104 = vpop.permute.xlu0 %6103
    %6105 = vset.pattern.permute.xlu0 0
    %6106 = vperm.xlu0 %6105, %v5643
    %v6107 = vpop.permute.xlu0 %6106
    %6108 = vset.pattern.permute.xlu0 0
    %6109 = vperm.xlu0 %6108, %v5692
    %v6110 = vpop.permute.xlu0 %6109
    %6111 = vset.pattern.permute.xlu0 0
    %6112 = vperm.xlu0 %6111, %v5741
    %v6113 = vpop.permute.xlu0 %6112
    %6114 = vset.pattern.permute.xlu0 0
    %6115 = vperm.xlu0 %6114, %v5790
    %v6116 = vpop.permute.xlu0 %6115
    %6117 = vset.pattern.permute.xlu0 0
    %6118 = vperm.xlu0 %6117, %v5839
    %v6119 = vpop.permute.xlu0 %6118
    %6120 = vset.pattern.permute.xlu0 0
    %6121 = vperm.xlu0 %6120, %v5888
    %v6122 = vpop.permute.xlu0 %6121
    %6123 = vset.pattern.permute.xlu0 0
    %6124 = vperm.xlu0 %6123, %v5937
    %v6125 = vpop.permute.xlu0 %6124
    %6126 = vset.pattern.permute.xlu0 0
    %6127 = vperm.xlu0 %6126, %v5986
    %v6128 = vpop.permute.xlu0 %6127
    %6129 = vset.pattern.permute.xlu0 0
    %6130 = vperm.xlu0 %6129, %v6035
    %v6131 = vpop.permute.xlu0 %6130
    %v6132 = vlaneseq
    %v6133 = vand.u32 %v6132, 127
    %v6134 = vlaneseq
    %v6135 = vshrl.u32 %v6134, 7
    %v6136 = vsub.s32 %v6133, %v6135
    %v6137 = vrot.slane %v6038, %v6136
    %v6138 = vadd.s32 %v6133, 4294967288
    %v6139 = vlaneseq
    %v6140 = vshrl.u32 %v6139, 7
    %v6141 = vsub.s32 %v6138, %v6140
    %v6142 = vrot.slane %v6041, %v6141
    %vm6143 = vcmask 130112
    %v6144 = vsel %vm6143, %v6142, %v6137
    %v6145 = vadd.s32 %v6133, 4294967280
    %v6146 = vlaneseq
    %v6147 = vshrl.u32 %v6146, 7
    %v6148 = vsub.s32 %v6145, %v6147
    %v6149 = vrot.slane %v6044, %v6148
    %vm6150 = vcmask 195712
    %v6151 = vsel %vm6150, %v6149, %v6144
    %v6152 = vadd.s32 %v6133, 4294967272
    %v6153 = vlaneseq
    %v6154 = vshrl.u32 %v6153, 7
    %v6155 = vsub.s32 %v6152, %v6154
    %v6156 = vrot.slane %v6047, %v6155
    %vm6157 = vcmask 261312
    %v6158 = vsel %vm6157, %v6156, %v6151
    %v6159 = vadd.s32 %v6133, 4294967264
    %v6160 = vlaneseq
    %v6161 = vshrl.u32 %v6160, 7
    %v6162 = vsub.s32 %v6159, %v6161
    %v6163 = vrot.slane %v6050, %v6162
    %vm6164 = vcmask 326912
    %v6165 = vsel %vm6164, %v6163, %v6158
    %v6166 = vadd.s32 %v6133, 4294967256
    %v6167 = vlaneseq
    %v6168 = vshrl.u32 %v6167, 7
    %v6169 = vsub.s32 %v6166, %v6168
    %v6170 = vrot.slane %v6053, %v6169
    %vm6171 = vcmask 392512
    %v6172 = vsel %vm6171, %v6170, %v6165
    %v6173 = vadd.s32 %v6133, 4294967248
    %v6174 = vlaneseq
    %v6175 = vshrl.u32 %v6174, 7
    %v6176 = vsub.s32 %v6173, %v6175
    %v6177 = vrot.slane %v6056, %v6176
    %vm6178 = vcmask 458112
    %v6179 = vsel %vm6178, %v6177, %v6172
    %v6180 = vadd.s32 %v6133, 4294967240
    %v6181 = vlaneseq
    %v6182 = vshrl.u32 %v6181, 7
    %v6183 = vsub.s32 %v6180, %v6182
    %v6184 = vrot.slane %v6059, %v6183
    %vm6185 = vcmask 523712
    %v6186 = vsel %vm6185, %v6184, %v6179
    %v6187 = vadd.s32 %v6133, 4294967232
    %v6188 = vlaneseq
    %v6189 = vshrl.u32 %v6188, 7
    %v6190 = vsub.s32 %v6187, %v6189
    %v6191 = vrot.slane %v6062, %v6190
    %vm6192 = vcmask 589312
    %v6193 = vsel %vm6192, %v6191, %v6186
    %v6194 = vadd.s32 %v6133, 4294967224
    %v6195 = vlaneseq
    %v6196 = vshrl.u32 %v6195, 7
    %v6197 = vsub.s32 %v6194, %v6196
    %v6198 = vrot.slane %v6065, %v6197
    %vm6199 = vcmask 654912
    %v6200 = vsel %vm6199, %v6198, %v6193
    %v6201 = vadd.s32 %v6133, 4294967216
    %v6202 = vlaneseq
    %v6203 = vshrl.u32 %v6202, 7
    %v6204 = vsub.s32 %v6201, %v6203
    %v6205 = vrot.slane %v6068, %v6204
    %vm6206 = vcmask 720512
    %v6207 = vsel %vm6206, %v6205, %v6200
    %v6208 = vadd.s32 %v6133, 4294967208
    %v6209 = vlaneseq
    %v6210 = vshrl.u32 %v6209, 7
    %v6211 = vsub.s32 %v6208, %v6210
    %v6212 = vrot.slane %v6071, %v6211
    %vm6213 = vcmask 786112
    %v6214 = vsel %vm6213, %v6212, %v6207
    %v6215 = vadd.s32 %v6133, 4294967200
    %v6216 = vlaneseq
    %v6217 = vshrl.u32 %v6216, 7
    %v6218 = vsub.s32 %v6215, %v6217
    %v6219 = vrot.slane %v6074, %v6218
    %vm6220 = vcmask 851712
    %v6221 = vsel %vm6220, %v6219, %v6214
    %v6222 = vadd.s32 %v6133, 4294967192
    %v6223 = vlaneseq
    %v6224 = vshrl.u32 %v6223, 7
    %v6225 = vsub.s32 %v6222, %v6224
    %v6226 = vrot.slane %v6077, %v6225
    %vm6227 = vcmask 917312
    %v6228 = vsel %vm6227, %v6226, %v6221
    %v6229 = vadd.s32 %v6133, 4294967184
    %v6230 = vlaneseq
    %v6231 = vshrl.u32 %v6230, 7
    %v6232 = vsub.s32 %v6229, %v6231
    %v6233 = vrot.slane %v6080, %v6232
    %vm6234 = vcmask 982912
    %v6235 = vsel %vm6234, %v6233, %v6228
    %v6236 = vadd.s32 %v6133, 4294967176
    %v6237 = vlaneseq
    %v6238 = vshrl.u32 %v6237, 7
    %v6239 = vsub.s32 %v6236, %v6238
    %v6240 = vrot.slane %v6083, %v6239
    %vm6241 = vcmask 1048512
    %v6242 = vsel %vm6241, %v6240, %v6235
    %v6243 = vlaneseq
    %v6244 = vshrl.u32 %v6243, 7
    %v6245 = vsub.s32 %v6133, %v6244
    %v6246 = vrot.slane %v6086, %v6245
    %v6247 = vlaneseq
    %v6248 = vshrl.u32 %v6247, 7
    %v6249 = vsub.s32 %v6138, %v6248
    %v6250 = vrot.slane %v6089, %v6249
    %v6251 = vsel %vm6143, %v6250, %v6246
    %v6252 = vlaneseq
    %v6253 = vshrl.u32 %v6252, 7
    %v6254 = vsub.s32 %v6145, %v6253
    %v6255 = vrot.slane %v6092, %v6254
    %v6256 = vsel %vm6150, %v6255, %v6251
    %v6257 = vlaneseq
    %v6258 = vshrl.u32 %v6257, 7
    %v6259 = vsub.s32 %v6152, %v6258
    %v6260 = vrot.slane %v6095, %v6259
    %v6261 = vsel %vm6157, %v6260, %v6256
    %v6262 = vlaneseq
    %v6263 = vshrl.u32 %v6262, 7
    %v6264 = vsub.s32 %v6159, %v6263
    %v6265 = vrot.slane %v6098, %v6264
    %v6266 = vsel %vm6164, %v6265, %v6261
    %v6267 = vlaneseq
    %v6268 = vshrl.u32 %v6267, 7
    %v6269 = vsub.s32 %v6166, %v6268
    %v6270 = vrot.slane %v6101, %v6269
    %v6271 = vsel %vm6171, %v6270, %v6266
    %v6272 = vlaneseq
    %v6273 = vshrl.u32 %v6272, 7
    %v6274 = vsub.s32 %v6173, %v6273
    %v6275 = vrot.slane %v6104, %v6274
    %v6276 = vsel %vm6178, %v6275, %v6271
    %v6277 = vlaneseq
    %v6278 = vshrl.u32 %v6277, 7
    %v6279 = vsub.s32 %v6180, %v6278
    %v6280 = vrot.slane %v6107, %v6279
    %v6281 = vsel %vm6185, %v6280, %v6276
    %v6282 = vlaneseq
    %v6283 = vshrl.u32 %v6282, 7
    %v6284 = vsub.s32 %v6187, %v6283
    %v6285 = vrot.slane %v6110, %v6284
    %v6286 = vsel %vm6192, %v6285, %v6281
    %v6287 = vlaneseq
    %v6288 = vshrl.u32 %v6287, 7
    %v6289 = vsub.s32 %v6194, %v6288
    %v6290 = vrot.slane %v6113, %v6289
    %v6291 = vsel %vm6199, %v6290, %v6286
    %v6292 = vlaneseq
    %v6293 = vshrl.u32 %v6292, 7
    %v6294 = vsub.s32 %v6201, %v6293
    %v6295 = vrot.slane %v6116, %v6294
    %v6296 = vsel %vm6206, %v6295, %v6291
    %v6297 = vlaneseq
    %v6298 = vshrl.u32 %v6297, 7
    %v6299 = vsub.s32 %v6208, %v6298
    %v6300 = vrot.slane %v6119, %v6299
    %v6301 = vsel %vm6213, %v6300, %v6296
    %v6302 = vlaneseq
    %v6303 = vshrl.u32 %v6302, 7
    %v6304 = vsub.s32 %v6215, %v6303
    %v6305 = vrot.slane %v6122, %v6304
    %v6306 = vsel %vm6220, %v6305, %v6301
    %v6307 = vlaneseq
    %v6308 = vshrl.u32 %v6307, 7
    %v6309 = vsub.s32 %v6222, %v6308
    %v6310 = vrot.slane %v6125, %v6309
    %v6311 = vsel %vm6227, %v6310, %v6306
    %v6312 = vlaneseq
    %v6313 = vshrl.u32 %v6312, 7
    %v6314 = vsub.s32 %v6229, %v6313
    %v6315 = vrot.slane %v6128, %v6314
    %v6316 = vsel %vm6234, %v6315, %v6311
    %v6317 = vlaneseq
    %v6318 = vshrl.u32 %v6317, 7
    %v6319 = vsub.s32 %v6236, %v6318
    %v6320 = vrot.slane %v6131, %v6319
    %v6321 = vsel %vm6241, %v6320, %v6316
    %v6322 = vcombine.low %v6242, %v6321
    %v6324 = vunpack.c.l.s4 1966171168
    %v6325 = vunpack.c.0.s8 %v6324
    %v6326 = vlaneseq
    %v6327 = vshrl.u32 %v6326, 7
    %v6328 = vsub.s32 %v6325, %v6327
    %v6329 = vrot.slane %v6322, %v6328
    %v6331 = vunpack.c.l.s4 1966171168
    %v6332 = vunpack.c.0.s8 %v6331
    %v6333 = vlaneseq
    %v6334 = vshrl.u32 %v6333, 7
    %v6335 = vsub.s32 %v6332, %v6334
    %v6336 = vrot.slane %v6329, %v6335
    %v6338 = vlaneseq
    %vm6339 = vcmp.ge.s32.totalorder %v6338, 0
    %vm6340 = vcmp.lt.s32.totalorder %v6338, 256
    %vm6341 = vmand %vm6339, %vm6340
    %6342 = vst.msk [vmem:[#allocation11] sm:$0x3] %vm6341, %v6336
    // Predicated region
    $region38: #{flow_sequential_forward.1} parent=1 // pred_check
      _
    $region39: #{flow_sequential_forward.1} parent=1 // pred_check_branch
      %6344 = sbr.rel (0) target = $region41
    $region40: #{flow_sequential_forward.1} parent=1 // pred_region
      %s6346 = ssub.s32 8192, 8192
      %6347 = vsyncadd [#allocation4], %s6346
      %s6348 = sshll.u32 [#allocation10], 4
      %s6349 = int_to_ptr.vmem [resolvable:$true] %s6348
      %6354 = dma.vmem_to_hbm [thread:$0]  %s6349, 8192, %s5, [#allocation4], 256, 256, 16
    $region41: #{flow_sequential_forward.1} parent=1 // pred_fallthru
      _
    // Predicated region
    $region42: #{flow_sequential_forward.1} parent=1 // pred_check
      _
    $region43: #{flow_sequential_forward.1} parent=1 // pred_check_branch
      %6356 = sbr.rel (0) target = $region45
    $region44: #{flow_sequential_forward.1} parent=1 // pred_region
      %s6358 = ssub.s32 32, 32
      %6359 = vsyncadd [#allocation12], %s6358
      %s6361 = sshll.u32 [#allocation11], 4
      %s6362 = int_to_ptr.vmem [resolvable:$true] %s6361
      %6364 = dma.vmem_to_hbm [thread:$0]  %s6362, 32, %s6, [#allocation12]
    $region45: #{flow_sequential_forward.1} parent=1 // pred_fallthru
      _
    // Predicated region
    $region46: #{flow_sequential_forward.1} parent=1 // pred_check
      _
    $region47: #{flow_sequential_forward.1} parent=1 // pred_check_branch
      %6366 = sbr.rel (0) target = $region49
    $region48: #{flow_sequential_forward.1} parent=1 // pred_region
      %6367 = dma.done [#allocation4], 8192
    $region49: #{flow_sequential_forward.1} parent=1 // pred_fallthru
      _
    // Predicated region
    $region50: #{flow_sequential_forward.1} parent=1 // pred_check
      _
    $region51: #{flow_sequential_forward.1} parent=1 // pred_check_branch
      %6369 = sbr.rel (0) target = $region53
    $region52: #{flow_sequential_forward.1} parent=1 // pred_region
      %6370 = dma.done [#allocation12], 32
    $region53: #{flow_sequential_forward.1} parent=1 // pred_fallthru
      _
    %6371 = vsyncpa [#allocation3], 1
    %6372 = vsyncpa [#allocation6], 1
    %6373 = vsyncpa [#allocation9], 1
    %6374 = vsyncpa [#allocation4], 1
    %6375 = vsyncpa [#allocation12], 1

</llo_original>
